<compile_context>
chip_gen: v6e
topology: v6e:2x2x1
jax: 0.10.0
libtpu: 0.0.40
codegen_flags: <defaults>
</compile_context>

<pallas_src>
import functools
import math

import jax
import jax.numpy as jnp
from jax import lax
from jax.experimental import pallas as pl
from jax.experimental.pallas import tpu as pltpu


def rl_ap_gcn_kernel(x_ref, a_ref, w1_ref, b1_ref, w2_ref, b2_ref,
                     hw1_ref, hb1_ref, hw2_ref, hb2_ref, hw3_ref, hb3_ref,
                     rng_ref, logp_ref, scal_ref, *, niter, exploration):
    f32 = jnp.float32
    eps = f32(1e-10)

    # ---- feature MLP (node-on-lanes layout): [F,N] -> relu -> [H,N] -> [C,N]
    # (Dropout layers are identity in eval mode.)
    xt = x_ref[...]
    h = jnp.maximum(
        jnp.dot(w1_ref[...], xt, preferred_element_type=f32) + b1_ref[...], 0.0)
    local = jnp.dot(w2_ref[...], h, preferred_element_type=f32) + b2_ref[...]
    c, n = local.shape

    # Tiny fused policy|value head weights (loaded once); bias lane-broadcasts
    # hoisted out of the unrolled loop.
    hw1 = hw1_ref[...]; hw2 = hw2_ref[...]; hw3 = hw3_ref[...]
    hb1_b = jnp.broadcast_to(hb1_ref[...], (hw1.shape[0], n))
    hb2_b = jnp.broadcast_to(hb2_ref[...], (hw2.shape[0], n))
    hb3_b = jnp.broadcast_to(hb3_ref[...], (hw3.shape[0], n))

    def vpu_linear(w, b_b, inp):
        # [O,K] @ [K,N] as K broadcast-FMAs over [O,N] tiles on the VPU: the
        # contraction dims (<=8) are far too small to pay MXU round trips.
        out = b_b
        for k in range(w.shape[1]):
            out = out + w[:, k:k + 1] * inp[k:k + 1, :]
        return out

    ones_row = jnp.ones((1, n), f32)
    zeros3 = jnp.zeros((3, n), f32)
    f_niter = f32(niter)

    # Packed per-node state slab [8, N]:
    #   row 0 steps | 1 halting_log_prob | 2 halting_value | 3 halting_entropy
    #   row 4 active flag (1.0/0.0)      | rows 5-7 padding (zeros)
    state0 = jnp.concatenate([ones_row, zeros3, ones_row, zeros3], axis=0)

    def body(t, carry):
        prop, state = carry
        active = state[4:5, :] > 0.0                       # [1, N] bool

        # GCN propagation.  A is symmetric, so (A @ prop)^T == prop^T @ A:
        # a lane-dense [C,N] @ [N,N] MXU matmul.  A is loaded from VMEM inside
        # the body so its live range stays short under unrolling.
        new_prop = jnp.dot(prop, a_ref[...], preferred_element_type=f32)
        prop = jnp.where(active, new_prop, prop)

        # Fused policy+value head on the VPU: [C,N]->[2*h2,N]->[2*h4,N]->[2,N]
        z1 = jnp.maximum(vpu_linear(hw1, hb1_b, prop), 0.0)
        z2 = jnp.maximum(vpu_linear(hw2, hb2_b, z1), 0.0)
        pv = vpu_linear(hw3, hb3_b, z2)
        logits = pv[0:1, :]
        v = pv[1:2, :]

        p = jax.nn.sigmoid(logits)
        # Bernoulli entropy of the clean p (matches the torch module).
        ent = -(p * jnp.log(p + eps) + (1.0 - p) * jnp.log(1.0 - p + eps))

        rng_t = rng_ref[t]                                 # [2, N]: noise, uniform
        noisy_p = jnp.clip(p + rng_t[0:1, :] * exploration, 0.01, 0.99)
        action = rng_t[1:2, :] < noisy_p                   # [1, N] bool

        # Fold the torch trailing `if active.any():` block into the last
        # iteration: still-active nodes record this iteration's values too.
        is_last = t == niter - 1
        rec = jnp.logical_and(active, jnp.logical_or(action, is_last))
        active_new = jnp.logical_and(active, jnp.logical_not(action))

        rec_f = rec.astype(f32)
        act_f = active_new.astype(f32)
        step_val = jnp.minimum(jnp.asarray(t, f32) + 2.0, f_niter)

        vals = jnp.concatenate(
            [ones_row * step_val, jnp.log(noisy_p + eps), v, ent, act_f, zeros3],
            axis=0)
        upd = jnp.concatenate([act_f, rec_f, rec_f, rec_f, ones_row, zeros3],
                              axis=0)
        state = jnp.where(upd > 0.5, vals, state)          # one slab-wide select
        return prop, state

    # The body is serialized by the active-mask dependence: full unroll only
    # pays for small static niter; larger trip counts use unroll=2.
    unroll = True if niter <= 8 else 2
    prop, state = lax.fori_loop(0, niter, body, (local, state0), unroll=unroll)

    # log_softmax over the class (sublane) axis of [C, N]
    m = jnp.max(prop, axis=0, keepdims=True)
    z = prop - m
    lse = jnp.log(jnp.sum(jnp.exp(z), axis=0, keepdims=True))
    logp_ref[...] = z - lse

    # Single unmasked lane-dense store of the packed per-node scalars.
    scal_ref[...] = state


def _vmem_limit_bytes():
    # Generation-aware VMEM budget: physical capacity minus ~16 MiB headroom
    # (~112 MiB on v5e/v6e, ~48 MiB on v7x).  Conservative fallback of 48 MiB.
    cap = 64 * 1024 * 1024
    try:
        cap = int(getattr(pltpu.get_tpu_info(), "vmem_capacity_bytes", cap))
    except Exception:
        pass
    return max(32 * 1024 * 1024, cap - 16 * 1024 * 1024)


def rl_ap_gcn_forward(x, a_norm, params, noise, unif, *, niter, exploration):
    """x: [N, F]; a_norm: symmetric gcn-normalized dense adjacency [N, N];
    noise/unif: [niter, N] RNG draws (replace torch.randn_like / rand_like);
    params: torch-layout weights.  Returns (log_softmax [N, C], steps [N],
    policy_state dict of [N] arrays)."""
    n, _ = x.shape
    c = params["w2"].shape[1]
    f32 = jnp.float32

    # ---- pad node dimension to a lane-dense multiple of 128 (zero rows/cols).
    n_pad = ((n + 127) // 128) * 128
    pad = n_pad - n

    x_t = jnp.pad(jnp.asarray(x, f32).T, ((0, 0), (0, pad)))        # [F, Npad]
    a_p = jnp.pad(jnp.asarray(a_norm, f32), ((0, pad), (0, pad)))   # [Npad, Npad]

    w1t = jnp.asarray(params["w1"], f32).T                          # [H, F]
    b1c = jnp.asarray(params["b1"], f32).reshape(-1, 1)             # [H, 1]
    w2t = jnp.asarray(params["w2"], f32).T                          # [C, H]
    b2c = jnp.asarray(params["b2"], f32).reshape(-1, 1)             # [C, 1]

    def _bdiag(a, b):
        za = jnp.zeros((a.shape[0], b.shape[1]), f32)
        zb = jnp.zeros((b.shape[0], a.shape[1]), f32)
        return jnp.concatenate(
            [jnp.concatenate([a, za], axis=1),
             jnp.concatenate([zb, b], axis=1)], axis=0)

    # Fused policy|value head: concat layer-1, block-diagonal layers 2 & 3.
    hw1 = jnp.concatenate([jnp.asarray(params["pw1"], f32).T,
                           jnp.asarray(params["vw1"], f32).T], axis=0)
    hb1 = jnp.concatenate([jnp.asarray(params["pb1"], f32).reshape(-1, 1),
                           jnp.asarray(params["vb1"], f32).reshape(-1, 1)], axis=0)
    hw2 = _bdiag(jnp.asarray(params["pw2"], f32).T, jnp.asarray(params["vw2"], f32).T)
    hb2 = jnp.concatenate([jnp.asarray(params["pb2"], f32).reshape(-1, 1),
                           jnp.asarray(params["vb2"], f32).reshape(-1, 1)], axis=0)
    hw3 = _bdiag(jnp.asarray(params["pw3"], f32).T, jnp.asarray(params["vw3"], f32).T)
    hb3 = jnp.concatenate([jnp.asarray(params["pb3"], f32).reshape(-1, 1),
                           jnp.asarray(params["vb3"], f32).reshape(-1, 1)], axis=0)

    # Merge noise + uniform draws into one [niter, 2, Npad] input (one DMA).
    rng = jnp.stack([jnp.asarray(noise, f32).reshape(niter, n),
                     jnp.asarray(unif, f32).reshape(niter, n)], axis=1)
    rng = jnp.pad(rng, ((0, 0), (0, 0), (0, pad)))

    kernel = functools.partial(rl_ap_gcn_kernel,
                               niter=int(niter),
                               exploration=float(exploration))

    inputs = (x_t, a_p, w1t, b1c, w2t, b2c,
              hw1, hb1, hw2, hb2, hw3, hb3, rng)

    out_shapes = (
        jax.ShapeDtypeStruct((c, n_pad), jnp.float32),   # log_softmax [C, Npad]
        jax.ShapeDtypeStruct((8, n_pad), jnp.float32),   # packed per-node scalars
    )

    # Single invocation (no grid): whole-array, single-buffered VMEM blocks --
    # no revolving double-buffer for the resident [Npad, Npad] adjacency.
    vmem_spec = pl.BlockSpec(memory_space=pltpu.MemorySpace.VMEM)
    fn = pl.pallas_call(
        kernel,
        out_shape=out_shapes,
        in_specs=[vmem_spec] * len(inputs),
        out_specs=(vmem_spec, vmem_spec),
        compiler_params=pltpu.CompilerParams(
            vmem_limit_bytes=_vmem_limit_bytes()),
    )
    logp_t, scal = fn(*inputs)

    logp = logp_t[:, :n].T                      # [N, C], matches the module output
    steps = scal[0, :n]
    policy_state = {
        "halting_log_prob": scal[1, :n],
        "halting_value": scal[2, :n],
        "halting_entropy": scal[3, :n],
    }
    return logp, steps, policy_state


if __name__ == "__main__":
    key = jax.random.PRNGKey(0)
    N, F, H, C = 16, 16, 32, 8          # nodes, features, hidden=[32], num_classes
    NITER = 6

    keys = jax.random.split(key, 12)

    # node features
    x = jax.random.normal(keys[0], (N, F), jnp.float32)

    # random undirected graph; dense gcn_norm adjacency with self loops (symmetric)
    adj_r = (jax.random.uniform(keys[1], (N, N)) < 0.3).astype(jnp.float32)
    adj = jnp.maximum(adj_r, adj_r.T) * (1.0 - jnp.eye(N, dtype=jnp.float32))
    a_hat = adj + jnp.eye(N, dtype=jnp.float32)
    deg = jnp.sum(a_hat, axis=1)
    d_inv_sqrt = 1.0 / jnp.sqrt(deg)
    a_norm = d_inv_sqrt[:, None] * a_hat * d_inv_sqrt[None, :]

    # deterministic Linear params (uniform(+-1/sqrt(fan_in)), like torch default)
    def linear_params(k, fin, fout, bias_fill=None):
        k1, k2 = jax.random.split(k)
        bound = 1.0 / math.sqrt(fin)
        w = jax.random.uniform(k1, (fin, fout), jnp.float32, -bound, bound)
        if bias_fill is not None:
            b = jnp.full((1, fout), bias_fill, jnp.float32)
        else:
            b = jax.random.uniform(k2, (1, fout), jnp.float32, -bound, bound)
        return w, b

    w1, b1 = linear_params(keys[2], F, H)
    w2, b2 = linear_params(keys[3], H, C)
    h2, h4 = C // 2, max(1, C // 4)
    pw1, pb1 = linear_params(keys[4], C, h2)
    pw2, pb2 = linear_params(keys[5], h2, h4)
    pw3, pb3 = linear_params(keys[6], h4, 1, bias_fill=-2.5)   # policy bias := -2.5
    vw1, vb1 = linear_params(keys[7], C, h2)
    vw2, vb2 = linear_params(keys[8], h2, h4)
    vw3, vb3 = linear_params(keys[9], h4, 1)

    # RNG draws for the halting policy (replace torch.randn_like / rand_like)
    noise = jax.random.normal(keys[10], (NITER, N), jnp.float32)
    unif = jax.random.uniform(keys[11], (NITER, N), jnp.float32)

    # set_epoch(0, 100): exploration decay exp(-3 * progress)
    current_epoch, total_epochs = 0, 100
    exploration = 0.1 * math.exp(-3.0 * current_epoch / total_epochs)

    params = dict(w1=w1, b1=b1, w2=w2, b2=b2,
                  pw1=pw1, pb1=pb1, pw2=pw2, pb2=pb2, pw3=pw3, pb3=pb3,
                  vw1=vw1, vb1=vb1, vw2=vw2, vb2=vb2, vw3=vw3, vb3=vb3)

    logp, steps, policy_state = rl_ap_gcn_forward(
        x, a_norm, params, noise, unif, niter=NITER, exploration=exploration)
    jax.block_until_ready((logp, steps, policy_state))
    print("KERNEL_OK")
</pallas_src>

<mosaic_0001>
module attributes {stable_mosaic.version = 11 : i64} {
  func.func @rl_ap_gcn_kernel(%arg0: memref<16x128xf32, #tpu.memory_space<vmem>>, %arg1: memref<128x128xf32, #tpu.memory_space<vmem>>, %arg2: memref<32x16xf32, #tpu.memory_space<vmem>>, %arg3: memref<32x1xf32, #tpu.memory_space<vmem>>, %arg4: memref<8x32xf32, #tpu.memory_space<vmem>>, %arg5: memref<8x1xf32, #tpu.memory_space<vmem>>, %arg6: memref<8x8xf32, #tpu.memory_space<vmem>>, %arg7: memref<8x1xf32, #tpu.memory_space<vmem>>, %arg8: memref<4x8xf32, #tpu.memory_space<vmem>>, %arg9: memref<4x1xf32, #tpu.memory_space<vmem>>, %arg10: memref<2x4xf32, #tpu.memory_space<vmem>>, %arg11: memref<2x1xf32, #tpu.memory_space<vmem>>, %arg12: memref<6x2x128xf32, #tpu.memory_space<vmem>>, %arg13: memref<8x128xf32, #tpu.memory_space<vmem>>, %arg14: memref<8x128xf32, #tpu.memory_space<vmem>>) attributes {dimension_semantics = [], scalar_prefetch = 0 : i64, scratch_operands = 0 : i64, tpu.core_type = #tpu.core_type<tc>} {
    %c0 = arith.constant 0 : index
    %c0_0 = arith.constant 0 : index
    %0 = vector.load %arg0[%c0, %c0_0] : memref<16x128xf32, #tpu.memory_space<vmem>>, vector<16x128xf32>
    %c0_1 = arith.constant 0 : index
    %c0_2 = arith.constant 0 : index
    %1 = vector.load %arg2[%c0_1, %c0_2] : memref<32x16xf32, #tpu.memory_space<vmem>>, vector<32x16xf32>
    %cst = arith.constant dense<0.000000e+00> : vector<32x128xf32>
    %2 = tpu.matmul %1, %0, %cst {dimension_numbers = #tpu.dot_dimension_numbers<[1], [0], [0], [1], [0, 0, 1, 1], [], []>} : vector<32x16xf32>, vector<16x128xf32>, vector<32x128xf32> -> vector<32x128xf32>
    %c0_3 = arith.constant 0 : index
    %c0_4 = arith.constant 0 : index
    %3 = vector.load %arg3[%c0_3, %c0_4] : memref<32x1xf32, #tpu.memory_space<vmem>>, vector<32x1xf32>
    %4 = vector.broadcast %3 : vector<32x1xf32> to vector<32x128xf32>
    %5 = arith.addf %2, %4 : vector<32x128xf32>
    %cst_5 = arith.constant 0.000000e+00 : f32
    %6 = vector.broadcast %cst_5 : f32 to vector<32x128xf32>
    %7 = arith.maximumf %5, %6 : vector<32x128xf32>
    %c0_6 = arith.constant 0 : index
    %c0_7 = arith.constant 0 : index
    %8 = vector.load %arg4[%c0_6, %c0_7] : memref<8x32xf32, #tpu.memory_space<vmem>>, vector<8x32xf32>
    %cst_8 = arith.constant dense<0.000000e+00> : vector<8x128xf32>
    %9 = tpu.matmul %8, %7, %cst_8 {dimension_numbers = #tpu.dot_dimension_numbers<[1], [0], [0], [1], [0, 0, 1, 1], [], []>} : vector<8x32xf32>, vector<32x128xf32>, vector<8x128xf32> -> vector<8x128xf32>
    %c0_9 = arith.constant 0 : index
    %c0_10 = arith.constant 0 : index
    %10 = vector.load %arg5[%c0_9, %c0_10] : memref<8x1xf32, #tpu.memory_space<vmem>>, vector<8x1xf32>
    %11 = vector.broadcast %10 : vector<8x1xf32> to vector<8x128xf32>
    %12 = arith.addf %9, %11 : vector<8x128xf32>
    %c0_11 = arith.constant 0 : index
    %c0_12 = arith.constant 0 : index
    %13 = vector.load %arg6[%c0_11, %c0_12] : memref<8x8xf32, #tpu.memory_space<vmem>>, vector<8x8xf32>
    %c0_13 = arith.constant 0 : index
    %c0_14 = arith.constant 0 : index
    %14 = vector.load %arg8[%c0_13, %c0_14] : memref<4x8xf32, #tpu.memory_space<vmem>>, vector<4x8xf32>
    %c0_15 = arith.constant 0 : index
    %c0_16 = arith.constant 0 : index
    %15 = vector.load %arg10[%c0_15, %c0_16] : memref<2x4xf32, #tpu.memory_space<vmem>>, vector<2x4xf32>
    %c0_17 = arith.constant 0 : index
    %c0_18 = arith.constant 0 : index
    %16 = vector.load %arg7[%c0_17, %c0_18] : memref<8x1xf32, #tpu.memory_space<vmem>>, vector<8x1xf32>
    %17 = vector.shape_cast %16 : vector<8x1xf32> to vector<8x1xf32>
    %18 = vector.broadcast %17 : vector<8x1xf32> to vector<8x128xf32>
    %c0_19 = arith.constant 0 : index
    %c0_20 = arith.constant 0 : index
    %19 = vector.load %arg9[%c0_19, %c0_20] : memref<4x1xf32, #tpu.memory_space<vmem>>, vector<4x1xf32>
    %20 = vector.shape_cast %19 : vector<4x1xf32> to vector<4x1xf32>
    %21 = vector.broadcast %20 : vector<4x1xf32> to vector<4x128xf32>
    %c0_21 = arith.constant 0 : index
    %c0_22 = arith.constant 0 : index
    %22 = vector.load %arg11[%c0_21, %c0_22] : memref<2x1xf32, #tpu.memory_space<vmem>>, vector<2x1xf32>
    %23 = vector.shape_cast %22 : vector<2x1xf32> to vector<2x1xf32>
    %24 = vector.broadcast %23 : vector<2x1xf32> to vector<2x128xf32>
    %cst_23 = arith.constant 1.000000e+00 : f32
    %25 = vector.broadcast %cst_23 : f32 to vector<1x128xf32>
    %cst_24 = arith.constant 0.000000e+00 : f32
    %26 = vector.broadcast %cst_24 : f32 to vector<3x128xf32>
    %27 = tpu.concatenate %25, %26, %25, %26 in 0 : vector<1x128xf32>, vector<3x128xf32>, vector<1x128xf32>, vector<3x128xf32> -> vector<8x128xf32>
    %cst_25 = arith.constant 1.000000e-10 : f32
    %cst_26 = arith.constant 6.000000e+00 : f32
    %c0_i32 = arith.constant 0 : i32
    %28 = vector.extract_strided_slice %27 {offsets = [4, 0], sizes = [1, 128], strides = [1, 1]} : vector<8x128xf32> to vector<1x128xf32>
    %cst_27 = arith.constant 0.000000e+00 : f32
    %29 = vector.broadcast %cst_27 : f32 to vector<1x128xf32>
    %30 = arith.cmpf ogt, %28, %29 : vector<1x128xf32>
    %c0_28 = arith.constant 0 : index
    %c0_29 = arith.constant 0 : index
    %31 = vector.load %arg1[%c0_28, %c0_29] : memref<128x128xf32, #tpu.memory_space<vmem>>, vector<128x128xf32>
    %cst_30 = arith.constant dense<0.000000e+00> : vector<8x128xf32>
    %32 = tpu.matmul %12, %31, %cst_30 {dimension_numbers = #tpu.dot_dimension_numbers<[1], [0], [0], [1], [0, 0, 1, 1], [], []>} : vector<8x128xf32>, vector<128x128xf32>, vector<8x128xf32> -> vector<8x128xf32>
    %33 = vector.shape_cast %30 : vector<1x128xi1> to vector<1x128xi1>
    %34 = vector.broadcast %33 : vector<1x128xi1> to vector<8x128xi1>
    %35 = arith.select %34, %32, %12 : vector<8x128xi1>, vector<8x128xf32>
    %36 = vector.extract_strided_slice %13 {offsets = [0, 0], sizes = [8, 1], strides = [1, 1]} : vector<8x8xf32> to vector<8x1xf32>
    %37 = vector.extract_strided_slice %35 {offsets = [0, 0], sizes = [1, 128], strides = [1, 1]} : vector<8x128xf32> to vector<1x128xf32>
    %38 = vector.broadcast %36 : vector<8x1xf32> to vector<8x128xf32>
    %39 = vector.broadcast %37 : vector<1x128xf32> to vector<8x128xf32>
    %40 = arith.mulf %38, %39 : vector<8x128xf32>
    %41 = arith.addf %18, %40 : vector<8x128xf32>
    %42 = vector.extract_strided_slice %13 {offsets = [0, 1], sizes = [8, 1], strides = [1, 1]} : vector<8x8xf32> to vector<8x1xf32>
    %43 = vector.extract_strided_slice %35 {offsets = [1, 0], sizes = [1, 128], strides = [1, 1]} : vector<8x128xf32> to vector<1x128xf32>
    %44 = vector.broadcast %42 : vector<8x1xf32> to vector<8x128xf32>
    %45 = vector.broadcast %43 : vector<1x128xf32> to vector<8x128xf32>
    %46 = arith.mulf %44, %45 : vector<8x128xf32>
    %47 = arith.addf %41, %46 : vector<8x128xf32>
    %48 = vector.extract_strided_slice %13 {offsets = [0, 2], sizes = [8, 1], strides = [1, 1]} : vector<8x8xf32> to vector<8x1xf32>
    %49 = vector.extract_strided_slice %35 {offsets = [2, 0], sizes = [1, 128], strides = [1, 1]} : vector<8x128xf32> to vector<1x128xf32>
    %50 = vector.broadcast %48 : vector<8x1xf32> to vector<8x128xf32>
    %51 = vector.broadcast %49 : vector<1x128xf32> to vector<8x128xf32>
    %52 = arith.mulf %50, %51 : vector<8x128xf32>
    %53 = arith.addf %47, %52 : vector<8x128xf32>
    %54 = vector.extract_strided_slice %13 {offsets = [0, 3], sizes = [8, 1], strides = [1, 1]} : vector<8x8xf32> to vector<8x1xf32>
    %55 = vector.extract_strided_slice %35 {offsets = [3, 0], sizes = [1, 128], strides = [1, 1]} : vector<8x128xf32> to vector<1x128xf32>
    %56 = vector.broadcast %54 : vector<8x1xf32> to vector<8x128xf32>
    %57 = vector.broadcast %55 : vector<1x128xf32> to vector<8x128xf32>
    %58 = arith.mulf %56, %57 : vector<8x128xf32>
    %59 = arith.addf %53, %58 : vector<8x128xf32>
    %60 = vector.extract_strided_slice %13 {offsets = [0, 4], sizes = [8, 1], strides = [1, 1]} : vector<8x8xf32> to vector<8x1xf32>
    %61 = vector.extract_strided_slice %35 {offsets = [4, 0], sizes = [1, 128], strides = [1, 1]} : vector<8x128xf32> to vector<1x128xf32>
    %62 = vector.broadcast %60 : vector<8x1xf32> to vector<8x128xf32>
    %63 = vector.broadcast %61 : vector<1x128xf32> to vector<8x128xf32>
    %64 = arith.mulf %62, %63 : vector<8x128xf32>
    %65 = arith.addf %59, %64 : vector<8x128xf32>
    %66 = vector.extract_strided_slice %13 {offsets = [0, 5], sizes = [8, 1], strides = [1, 1]} : vector<8x8xf32> to vector<8x1xf32>
    %67 = vector.extract_strided_slice %35 {offsets = [5, 0], sizes = [1, 128], strides = [1, 1]} : vector<8x128xf32> to vector<1x128xf32>
    %68 = vector.broadcast %66 : vector<8x1xf32> to vector<8x128xf32>
    %69 = vector.broadcast %67 : vector<1x128xf32> to vector<8x128xf32>
    %70 = arith.mulf %68, %69 : vector<8x128xf32>
    %71 = arith.addf %65, %70 : vector<8x128xf32>
    %72 = vector.extract_strided_slice %13 {offsets = [0, 6], sizes = [8, 1], strides = [1, 1]} : vector<8x8xf32> to vector<8x1xf32>
    %73 = vector.extract_strided_slice %35 {offsets = [6, 0], sizes = [1, 128], strides = [1, 1]} : vector<8x128xf32> to vector<1x128xf32>
    %74 = vector.broadcast %72 : vector<8x1xf32> to vector<8x128xf32>
    %75 = vector.broadcast %73 : vector<1x128xf32> to vector<8x128xf32>
    %76 = arith.mulf %74, %75 : vector<8x128xf32>
    %77 = arith.addf %71, %76 : vector<8x128xf32>
    %78 = vector.extract_strided_slice %13 {offsets = [0, 7], sizes = [8, 1], strides = [1, 1]} : vector<8x8xf32> to vector<8x1xf32>
    %79 = vector.extract_strided_slice %35 {offsets = [7, 0], sizes = [1, 128], strides = [1, 1]} : vector<8x128xf32> to vector<1x128xf32>
    %80 = vector.broadcast %78 : vector<8x1xf32> to vector<8x128xf32>
    %81 = vector.broadcast %79 : vector<1x128xf32> to vector<8x128xf32>
    %82 = arith.mulf %80, %81 : vector<8x128xf32>
    %83 = arith.addf %77, %82 : vector<8x128xf32>
    %cst_31 = arith.constant 0.000000e+00 : f32
    %84 = vector.broadcast %cst_31 : f32 to vector<8x128xf32>
    %85 = arith.maximumf %83, %84 : vector<8x128xf32>
    %86 = vector.extract_strided_slice %14 {offsets = [0, 0], sizes = [4, 1], strides = [1, 1]} : vector<4x8xf32> to vector<4x1xf32>
    %87 = vector.extract_strided_slice %85 {offsets = [0, 0], sizes = [1, 128], strides = [1, 1]} : vector<8x128xf32> to vector<1x128xf32>
    %88 = vector.broadcast %86 : vector<4x1xf32> to vector<4x128xf32>
    %89 = vector.broadcast %87 : vector<1x128xf32> to vector<4x128xf32>
    %90 = arith.mulf %88, %89 : vector<4x128xf32>
    %91 = arith.addf %21, %90 : vector<4x128xf32>
    %92 = vector.extract_strided_slice %14 {offsets = [0, 1], sizes = [4, 1], strides = [1, 1]} : vector<4x8xf32> to vector<4x1xf32>
    %93 = vector.extract_strided_slice %85 {offsets = [1, 0], sizes = [1, 128], strides = [1, 1]} : vector<8x128xf32> to vector<1x128xf32>
    %94 = vector.broadcast %92 : vector<4x1xf32> to vector<4x128xf32>
    %95 = vector.broadcast %93 : vector<1x128xf32> to vector<4x128xf32>
    %96 = arith.mulf %94, %95 : vector<4x128xf32>
    %97 = arith.addf %91, %96 : vector<4x128xf32>
    %98 = vector.extract_strided_slice %14 {offsets = [0, 2], sizes = [4, 1], strides = [1, 1]} : vector<4x8xf32> to vector<4x1xf32>
    %99 = vector.extract_strided_slice %85 {offsets = [2, 0], sizes = [1, 128], strides = [1, 1]} : vector<8x128xf32> to vector<1x128xf32>
    %100 = vector.broadcast %98 : vector<4x1xf32> to vector<4x128xf32>
    %101 = vector.broadcast %99 : vector<1x128xf32> to vector<4x128xf32>
    %102 = arith.mulf %100, %101 : vector<4x128xf32>
    %103 = arith.addf %97, %102 : vector<4x128xf32>
    %104 = vector.extract_strided_slice %14 {offsets = [0, 3], sizes = [4, 1], strides = [1, 1]} : vector<4x8xf32> to vector<4x1xf32>
    %105 = vector.extract_strided_slice %85 {offsets = [3, 0], sizes = [1, 128], strides = [1, 1]} : vector<8x128xf32> to vector<1x128xf32>
    %106 = vector.broadcast %104 : vector<4x1xf32> to vector<4x128xf32>
    %107 = vector.broadcast %105 : vector<1x128xf32> to vector<4x128xf32>
    %108 = arith.mulf %106, %107 : vector<4x128xf32>
    %109 = arith.addf %103, %108 : vector<4x128xf32>
    %110 = vector.extract_strided_slice %14 {offsets = [0, 4], sizes = [4, 1], strides = [1, 1]} : vector<4x8xf32> to vector<4x1xf32>
    %111 = vector.extract_strided_slice %85 {offsets = [4, 0], sizes = [1, 128], strides = [1, 1]} : vector<8x128xf32> to vector<1x128xf32>
    %112 = vector.broadcast %110 : vector<4x1xf32> to vector<4x128xf32>
    %113 = vector.broadcast %111 : vector<1x128xf32> to vector<4x128xf32>
    %114 = arith.mulf %112, %113 : vector<4x128xf32>
    %115 = arith.addf %109, %114 : vector<4x128xf32>
    %116 = vector.extract_strided_slice %14 {offsets = [0, 5], sizes = [4, 1], strides = [1, 1]} : vector<4x8xf32> to vector<4x1xf32>
    %117 = vector.extract_strided_slice %85 {offsets = [5, 0], sizes = [1, 128], strides = [1, 1]} : vector<8x128xf32> to vector<1x128xf32>
    %118 = vector.broadcast %116 : vector<4x1xf32> to vector<4x128xf32>
    %119 = vector.broadcast %117 : vector<1x128xf32> to vector<4x128xf32>
    %120 = arith.mulf %118, %119 : vector<4x128xf32>
    %121 = arith.addf %115, %120 : vector<4x128xf32>
    %122 = vector.extract_strided_slice %14 {offsets = [0, 6], sizes = [4, 1], strides = [1, 1]} : vector<4x8xf32> to vector<4x1xf32>
    %123 = vector.extract_strided_slice %85 {offsets = [6, 0], sizes = [1, 128], strides = [1, 1]} : vector<8x128xf32> to vector<1x128xf32>
    %124 = vector.broadcast %122 : vector<4x1xf32> to vector<4x128xf32>
    %125 = vector.broadcast %123 : vector<1x128xf32> to vector<4x128xf32>
    %126 = arith.mulf %124, %125 : vector<4x128xf32>
    %127 = arith.addf %121, %126 : vector<4x128xf32>
    %128 = vector.extract_strided_slice %14 {offsets = [0, 7], sizes = [4, 1], strides = [1, 1]} : vector<4x8xf32> to vector<4x1xf32>
    %129 = vector.extract_strided_slice %85 {offsets = [7, 0], sizes = [1, 128], strides = [1, 1]} : vector<8x128xf32> to vector<1x128xf32>
    %130 = vector.broadcast %128 : vector<4x1xf32> to vector<4x128xf32>
    %131 = vector.broadcast %129 : vector<1x128xf32> to vector<4x128xf32>
    %132 = arith.mulf %130, %131 : vector<4x128xf32>
    %133 = arith.addf %127, %132 : vector<4x128xf32>
    %cst_32 = arith.constant 0.000000e+00 : f32
    %134 = vector.broadcast %cst_32 : f32 to vector<4x128xf32>
    %135 = arith.maximumf %133, %134 : vector<4x128xf32>
    %136 = vector.extract_strided_slice %15 {offsets = [0, 0], sizes = [2, 1], strides = [1, 1]} : vector<2x4xf32> to vector<2x1xf32>
    %137 = vector.extract_strided_slice %135 {offsets = [0, 0], sizes = [1, 128], strides = [1, 1]} : vector<4x128xf32> to vector<1x128xf32>
    %138 = vector.broadcast %136 : vector<2x1xf32> to vector<2x128xf32>
    %139 = vector.broadcast %137 : vector<1x128xf32> to vector<2x128xf32>
    %140 = arith.mulf %138, %139 : vector<2x128xf32>
    %141 = arith.addf %24, %140 : vector<2x128xf32>
    %142 = vector.extract_strided_slice %15 {offsets = [0, 1], sizes = [2, 1], strides = [1, 1]} : vector<2x4xf32> to vector<2x1xf32>
    %143 = vector.extract_strided_slice %135 {offsets = [1, 0], sizes = [1, 128], strides = [1, 1]} : vector<4x128xf32> to vector<1x128xf32>
    %144 = vector.broadcast %142 : vector<2x1xf32> to vector<2x128xf32>
    %145 = vector.broadcast %143 : vector<1x128xf32> to vector<2x128xf32>
    %146 = arith.mulf %144, %145 : vector<2x128xf32>
    %147 = arith.addf %141, %146 : vector<2x128xf32>
    %148 = vector.extract_strided_slice %15 {offsets = [0, 2], sizes = [2, 1], strides = [1, 1]} : vector<2x4xf32> to vector<2x1xf32>
    %149 = vector.extract_strided_slice %135 {offsets = [2, 0], sizes = [1, 128], strides = [1, 1]} : vector<4x128xf32> to vector<1x128xf32>
    %150 = vector.broadcast %148 : vector<2x1xf32> to vector<2x128xf32>
    %151 = vector.broadcast %149 : vector<1x128xf32> to vector<2x128xf32>
    %152 = arith.mulf %150, %151 : vector<2x128xf32>
    %153 = arith.addf %147, %152 : vector<2x128xf32>
    %154 = vector.extract_strided_slice %15 {offsets = [0, 3], sizes = [2, 1], strides = [1, 1]} : vector<2x4xf32> to vector<2x1xf32>
    %155 = vector.extract_strided_slice %135 {offsets = [3, 0], sizes = [1, 128], strides = [1, 1]} : vector<4x128xf32> to vector<1x128xf32>
    %156 = vector.broadcast %154 : vector<2x1xf32> to vector<2x128xf32>
    %157 = vector.broadcast %155 : vector<1x128xf32> to vector<2x128xf32>
    %158 = arith.mulf %156, %157 : vector<2x128xf32>
    %159 = arith.addf %153, %158 : vector<2x128xf32>
    %160 = vector.extract_strided_slice %159 {offsets = [0, 0], sizes = [1, 128], strides = [1, 1]} : vector<2x128xf32> to vector<1x128xf32>
    %161 = vector.extract_strided_slice %159 {offsets = [1, 0], sizes = [1, 128], strides = [1, 1]} : vector<2x128xf32> to vector<1x128xf32>
    %162 = arith.negf %160 : vector<1x128xf32>
    %163 = math.exp %162 : vector<1x128xf32>
    %cst_33 = arith.constant 1.000000e+00 : f32
    %164 = vector.broadcast %cst_33 : f32 to vector<1x128xf32>
    %165 = arith.addf %164, %163 : vector<1x128xf32>
    %166 = arith.divf %164, %165 : vector<1x128xf32>
    %167 = vector.broadcast %cst_25 : f32 to vector<1x128xf32>
    %168 = arith.addf %166, %167 : vector<1x128xf32>
    %169 = math.log %168 : vector<1x128xf32>
    %170 = arith.mulf %166, %169 : vector<1x128xf32>
    %cst_34 = arith.constant 1.000000e+00 : f32
    %171 = vector.broadcast %cst_34 : f32 to vector<1x128xf32>
    %172 = arith.subf %171, %166 : vector<1x128xf32>
    %cst_35 = arith.constant 1.000000e+00 : f32
    %173 = vector.broadcast %cst_35 : f32 to vector<1x128xf32>
    %174 = arith.subf %173, %166 : vector<1x128xf32>
    %175 = vector.broadcast %cst_25 : f32 to vector<1x128xf32>
    %176 = arith.addf %174, %175 : vector<1x128xf32>
    %177 = math.log %176 : vector<1x128xf32>
    %178 = arith.mulf %172, %177 : vector<1x128xf32>
    %179 = arith.addf %170, %178 : vector<1x128xf32>
    %cst_36 = arith.constant 0.000000e+00 : f32
    %180 = vector.broadcast %cst_36 : f32 to vector<1x128xf32>
    %181 = arith.subf %180, %179 : vector<1x128xf32>
    %182 = arith.index_cast %c0_i32 : i32 to index
    %c0_37 = arith.constant 0 : index
    %c0_38 = arith.constant 0 : index
    %183 = vector.load %arg12[%182, %c0_37, %c0_38] : memref<6x2x128xf32, #tpu.memory_space<vmem>>, vector<1x2x128xf32>
    %184 = vector.shape_cast %183 : vector<1x2x128xf32> to vector<2x128xf32>
    %185 = vector.extract_strided_slice %184 {offsets = [0, 0], sizes = [1, 128], strides = [1, 1]} : vector<2x128xf32> to vector<1x128xf32>
    %cst_39 = arith.constant 1.000000e-01 : f32
    %186 = vector.broadcast %cst_39 : f32 to vector<1x128xf32>
    %187 = arith.mulf %185, %186 : vector<1x128xf32>
    %188 = arith.addf %166, %187 : vector<1x128xf32>
    %cst_40 = arith.constant 0.00999999977 : f32
    %cst_41 = arith.constant 9.900000e-01 : f32
    %189 = vector.broadcast %cst_40 : f32 to vector<1x128xf32>
    %190 = arith.maximumf %189, %188 : vector<1x128xf32>
    %191 = vector.broadcast %cst_41 : f32 to vector<1x128xf32>
    %192 = arith.minimumf %191, %190 : vector<1x128xf32>
    %193 = vector.extract_strided_slice %184 {offsets = [1, 0], sizes = [1, 128], strides = [1, 1]} : vector<2x128xf32> to vector<1x128xf32>
    %194 = arith.cmpf olt, %193, %192 : vector<1x128xf32>
    %c5_i32 = arith.constant 5 : i32
    %195 = arith.cmpi eq, %c0_i32, %c5_i32 : i32
    %196 = vector.broadcast %195 : i1 to vector<1x128xi1>
    %197 = arith.ori %194, %196 : vector<1x128xi1>
    %198 = arith.andi %30, %197 : vector<1x128xi1>
    %cst_42 = arith.constant dense<true> : vector<1x128xi1>
    %199 = arith.xori %194, %cst_42 : vector<1x128xi1>
    %200 = arith.andi %30, %199 : vector<1x128xi1>
    %201 = arith.extui %198 : vector<1x128xi1> to vector<1x128xi32>
    %202 = arith.sitofp %201 : vector<1x128xi32> to vector<1x128xf32>
    %203 = arith.extui %200 : vector<1x128xi1> to vector<1x128xi32>
    %204 = arith.sitofp %203 : vector<1x128xi32> to vector<1x128xf32>
    %205 = arith.sitofp %c0_i32 : i32 to f32
    %cst_43 = arith.constant 2.000000e+00 : f32
    %206 = arith.addf %205, %cst_43 : f32
    %207 = arith.minimumf %206, %cst_26 : f32
    %208 = vector.broadcast %207 : f32 to vector<1x128xf32>
    %209 = arith.mulf %25, %208 : vector<1x128xf32>
    %210 = vector.broadcast %cst_25 : f32 to vector<1x128xf32>
    %211 = arith.addf %192, %210 : vector<1x128xf32>
    %212 = math.log %211 : vector<1x128xf32>
    %213 = tpu.concatenate %209, %212, %161, %181, %204, %26 in 0 : vector<1x128xf32>, vector<1x128xf32>, vector<1x128xf32>, vector<1x128xf32>, vector<1x128xf32>, vector<3x128xf32> -> vector<8x128xf32>
    %214 = tpu.concatenate %204, %202, %202, %202, %25, %26 in 0 : vector<1x128xf32>, vector<1x128xf32>, vector<1x128xf32>, vector<1x128xf32>, vector<1x128xf32>, vector<3x128xf32> -> vector<8x128xf32>
    %cst_44 = arith.constant 5.000000e-01 : f32
    %215 = vector.broadcast %cst_44 : f32 to vector<8x128xf32>
    %216 = arith.cmpf ogt, %214, %215 : vector<8x128xf32>
    %217 = arith.select %216, %213, %27 : vector<8x128xi1>, vector<8x128xf32>
    %c1_i32 = arith.constant 1 : i32
    %218 = vector.extract_strided_slice %217 {offsets = [4, 0], sizes = [1, 128], strides = [1, 1]} : vector<8x128xf32> to vector<1x128xf32>
    %cst_45 = arith.constant 0.000000e+00 : f32
    %219 = vector.broadcast %cst_45 : f32 to vector<1x128xf32>
    %220 = arith.cmpf ogt, %218, %219 : vector<1x128xf32>
    %c0_46 = arith.constant 0 : index
    %c0_47 = arith.constant 0 : index
    %221 = vector.load %arg1[%c0_46, %c0_47] : memref<128x128xf32, #tpu.memory_space<vmem>>, vector<128x128xf32>
    %cst_48 = arith.constant dense<0.000000e+00> : vector<8x128xf32>
    %222 = tpu.matmul %35, %221, %cst_48 {dimension_numbers = #tpu.dot_dimension_numbers<[1], [0], [0], [1], [0, 0, 1, 1], [], []>} : vector<8x128xf32>, vector<128x128xf32>, vector<8x128xf32> -> vector<8x128xf32>
    %223 = vector.shape_cast %220 : vector<1x128xi1> to vector<1x128xi1>
    %224 = vector.broadcast %223 : vector<1x128xi1> to vector<8x128xi1>
    %225 = arith.select %224, %222, %35 : vector<8x128xi1>, vector<8x128xf32>
    %226 = vector.extract_strided_slice %13 {offsets = [0, 0], sizes = [8, 1], strides = [1, 1]} : vector<8x8xf32> to vector<8x1xf32>
    %227 = vector.extract_strided_slice %225 {offsets = [0, 0], sizes = [1, 128], strides = [1, 1]} : vector<8x128xf32> to vector<1x128xf32>
    %228 = vector.broadcast %226 : vector<8x1xf32> to vector<8x128xf32>
    %229 = vector.broadcast %227 : vector<1x128xf32> to vector<8x128xf32>
    %230 = arith.mulf %228, %229 : vector<8x128xf32>
    %231 = arith.addf %18, %230 : vector<8x128xf32>
    %232 = vector.extract_strided_slice %13 {offsets = [0, 1], sizes = [8, 1], strides = [1, 1]} : vector<8x8xf32> to vector<8x1xf32>
    %233 = vector.extract_strided_slice %225 {offsets = [1, 0], sizes = [1, 128], strides = [1, 1]} : vector<8x128xf32> to vector<1x128xf32>
    %234 = vector.broadcast %232 : vector<8x1xf32> to vector<8x128xf32>
    %235 = vector.broadcast %233 : vector<1x128xf32> to vector<8x128xf32>
    %236 = arith.mulf %234, %235 : vector<8x128xf32>
    %237 = arith.addf %231, %236 : vector<8x128xf32>
    %238 = vector.extract_strided_slice %13 {offsets = [0, 2], sizes = [8, 1], strides = [1, 1]} : vector<8x8xf32> to vector<8x1xf32>
    %239 = vector.extract_strided_slice %225 {offsets = [2, 0], sizes = [1, 128], strides = [1, 1]} : vector<8x128xf32> to vector<1x128xf32>
    %240 = vector.broadcast %238 : vector<8x1xf32> to vector<8x128xf32>
    %241 = vector.broadcast %239 : vector<1x128xf32> to vector<8x128xf32>
    %242 = arith.mulf %240, %241 : vector<8x128xf32>
    %243 = arith.addf %237, %242 : vector<8x128xf32>
    %244 = vector.extract_strided_slice %13 {offsets = [0, 3], sizes = [8, 1], strides = [1, 1]} : vector<8x8xf32> to vector<8x1xf32>
    %245 = vector.extract_strided_slice %225 {offsets = [3, 0], sizes = [1, 128], strides = [1, 1]} : vector<8x128xf32> to vector<1x128xf32>
    %246 = vector.broadcast %244 : vector<8x1xf32> to vector<8x128xf32>
    %247 = vector.broadcast %245 : vector<1x128xf32> to vector<8x128xf32>
    %248 = arith.mulf %246, %247 : vector<8x128xf32>
    %249 = arith.addf %243, %248 : vector<8x128xf32>
    %250 = vector.extract_strided_slice %13 {offsets = [0, 4], sizes = [8, 1], strides = [1, 1]} : vector<8x8xf32> to vector<8x1xf32>
    %251 = vector.extract_strided_slice %225 {offsets = [4, 0], sizes = [1, 128], strides = [1, 1]} : vector<8x128xf32> to vector<1x128xf32>
    %252 = vector.broadcast %250 : vector<8x1xf32> to vector<8x128xf32>
    %253 = vector.broadcast %251 : vector<1x128xf32> to vector<8x128xf32>
    %254 = arith.mulf %252, %253 : vector<8x128xf32>
    %255 = arith.addf %249, %254 : vector<8x128xf32>
    %256 = vector.extract_strided_slice %13 {offsets = [0, 5], sizes = [8, 1], strides = [1, 1]} : vector<8x8xf32> to vector<8x1xf32>
    %257 = vector.extract_strided_slice %225 {offsets = [5, 0], sizes = [1, 128], strides = [1, 1]} : vector<8x128xf32> to vector<1x128xf32>
    %258 = vector.broadcast %256 : vector<8x1xf32> to vector<8x128xf32>
    %259 = vector.broadcast %257 : vector<1x128xf32> to vector<8x128xf32>
    %260 = arith.mulf %258, %259 : vector<8x128xf32>
    %261 = arith.addf %255, %260 : vector<8x128xf32>
    %262 = vector.extract_strided_slice %13 {offsets = [0, 6], sizes = [8, 1], strides = [1, 1]} : vector<8x8xf32> to vector<8x1xf32>
    %263 = vector.extract_strided_slice %225 {offsets = [6, 0], sizes = [1, 128], strides = [1, 1]} : vector<8x128xf32> to vector<1x128xf32>
    %264 = vector.broadcast %262 : vector<8x1xf32> to vector<8x128xf32>
    %265 = vector.broadcast %263 : vector<1x128xf32> to vector<8x128xf32>
    %266 = arith.mulf %264, %265 : vector<8x128xf32>
    %267 = arith.addf %261, %266 : vector<8x128xf32>
    %268 = vector.extract_strided_slice %13 {offsets = [0, 7], sizes = [8, 1], strides = [1, 1]} : vector<8x8xf32> to vector<8x1xf32>
    %269 = vector.extract_strided_slice %225 {offsets = [7, 0], sizes = [1, 128], strides = [1, 1]} : vector<8x128xf32> to vector<1x128xf32>
    %270 = vector.broadcast %268 : vector<8x1xf32> to vector<8x128xf32>
    %271 = vector.broadcast %269 : vector<1x128xf32> to vector<8x128xf32>
    %272 = arith.mulf %270, %271 : vector<8x128xf32>
    %273 = arith.addf %267, %272 : vector<8x128xf32>
    %cst_49 = arith.constant 0.000000e+00 : f32
    %274 = vector.broadcast %cst_49 : f32 to vector<8x128xf32>
    %275 = arith.maximumf %273, %274 : vector<8x128xf32>
    %276 = vector.extract_strided_slice %14 {offsets = [0, 0], sizes = [4, 1], strides = [1, 1]} : vector<4x8xf32> to vector<4x1xf32>
    %277 = vector.extract_strided_slice %275 {offsets = [0, 0], sizes = [1, 128], strides = [1, 1]} : vector<8x128xf32> to vector<1x128xf32>
    %278 = vector.broadcast %276 : vector<4x1xf32> to vector<4x128xf32>
    %279 = vector.broadcast %277 : vector<1x128xf32> to vector<4x128xf32>
    %280 = arith.mulf %278, %279 : vector<4x128xf32>
    %281 = arith.addf %21, %280 : vector<4x128xf32>
    %282 = vector.extract_strided_slice %14 {offsets = [0, 1], sizes = [4, 1], strides = [1, 1]} : vector<4x8xf32> to vector<4x1xf32>
    %283 = vector.extract_strided_slice %275 {offsets = [1, 0], sizes = [1, 128], strides = [1, 1]} : vector<8x128xf32> to vector<1x128xf32>
    %284 = vector.broadcast %282 : vector<4x1xf32> to vector<4x128xf32>
    %285 = vector.broadcast %283 : vector<1x128xf32> to vector<4x128xf32>
    %286 = arith.mulf %284, %285 : vector<4x128xf32>
    %287 = arith.addf %281, %286 : vector<4x128xf32>
    %288 = vector.extract_strided_slice %14 {offsets = [0, 2], sizes = [4, 1], strides = [1, 1]} : vector<4x8xf32> to vector<4x1xf32>
    %289 = vector.extract_strided_slice %275 {offsets = [2, 0], sizes = [1, 128], strides = [1, 1]} : vector<8x128xf32> to vector<1x128xf32>
    %290 = vector.broadcast %288 : vector<4x1xf32> to vector<4x128xf32>
    %291 = vector.broadcast %289 : vector<1x128xf32> to vector<4x128xf32>
    %292 = arith.mulf %290, %291 : vector<4x128xf32>
    %293 = arith.addf %287, %292 : vector<4x128xf32>
    %294 = vector.extract_strided_slice %14 {offsets = [0, 3], sizes = [4, 1], strides = [1, 1]} : vector<4x8xf32> to vector<4x1xf32>
    %295 = vector.extract_strided_slice %275 {offsets = [3, 0], sizes = [1, 128], strides = [1, 1]} : vector<8x128xf32> to vector<1x128xf32>
    %296 = vector.broadcast %294 : vector<4x1xf32> to vector<4x128xf32>
    %297 = vector.broadcast %295 : vector<1x128xf32> to vector<4x128xf32>
    %298 = arith.mulf %296, %297 : vector<4x128xf32>
    %299 = arith.addf %293, %298 : vector<4x128xf32>
    %300 = vector.extract_strided_slice %14 {offsets = [0, 4], sizes = [4, 1], strides = [1, 1]} : vector<4x8xf32> to vector<4x1xf32>
    %301 = vector.extract_strided_slice %275 {offsets = [4, 0], sizes = [1, 128], strides = [1, 1]} : vector<8x128xf32> to vector<1x128xf32>
    %302 = vector.broadcast %300 : vector<4x1xf32> to vector<4x128xf32>
    %303 = vector.broadcast %301 : vector<1x128xf32> to vector<4x128xf32>
    %304 = arith.mulf %302, %303 : vector<4x128xf32>
    %305 = arith.addf %299, %304 : vector<4x128xf32>
    %306 = vector.extract_strided_slice %14 {offsets = [0, 5], sizes = [4, 1], strides = [1, 1]} : vector<4x8xf32> to vector<4x1xf32>
    %307 = vector.extract_strided_slice %275 {offsets = [5, 0], sizes = [1, 128], strides = [1, 1]} : vector<8x128xf32> to vector<1x128xf32>
    %308 = vector.broadcast %306 : vector<4x1xf32> to vector<4x128xf32>
    %309 = vector.broadcast %307 : vector<1x128xf32> to vector<4x128xf32>
    %310 = arith.mulf %308, %309 : vector<4x128xf32>
    %311 = arith.addf %305, %310 : vector<4x128xf32>
    %312 = vector.extract_strided_slice %14 {offsets = [0, 6], sizes = [4, 1], strides = [1, 1]} : vector<4x8xf32> to vector<4x1xf32>
    %313 = vector.extract_strided_slice %275 {offsets = [6, 0], sizes = [1, 128], strides = [1, 1]} : vector<8x128xf32> to vector<1x128xf32>
    %314 = vector.broadcast %312 : vector<4x1xf32> to vector<4x128xf32>
    %315 = vector.broadcast %313 : vector<1x128xf32> to vector<4x128xf32>
    %316 = arith.mulf %314, %315 : vector<4x128xf32>
    %317 = arith.addf %311, %316 : vector<4x128xf32>
    %318 = vector.extract_strided_slice %14 {offsets = [0, 7], sizes = [4, 1], strides = [1, 1]} : vector<4x8xf32> to vector<4x1xf32>
    %319 = vector.extract_strided_slice %275 {offsets = [7, 0], sizes = [1, 128], strides = [1, 1]} : vector<8x128xf32> to vector<1x128xf32>
    %320 = vector.broadcast %318 : vector<4x1xf32> to vector<4x128xf32>
    %321 = vector.broadcast %319 : vector<1x128xf32> to vector<4x128xf32>
    %322 = arith.mulf %320, %321 : vector<4x128xf32>
    %323 = arith.addf %317, %322 : vector<4x128xf32>
    %cst_50 = arith.constant 0.000000e+00 : f32
    %324 = vector.broadcast %cst_50 : f32 to vector<4x128xf32>
    %325 = arith.maximumf %323, %324 : vector<4x128xf32>
    %326 = vector.extract_strided_slice %15 {offsets = [0, 0], sizes = [2, 1], strides = [1, 1]} : vector<2x4xf32> to vector<2x1xf32>
    %327 = vector.extract_strided_slice %325 {offsets = [0, 0], sizes = [1, 128], strides = [1, 1]} : vector<4x128xf32> to vector<1x128xf32>
    %328 = vector.broadcast %326 : vector<2x1xf32> to vector<2x128xf32>
    %329 = vector.broadcast %327 : vector<1x128xf32> to vector<2x128xf32>
    %330 = arith.mulf %328, %329 : vector<2x128xf32>
    %331 = arith.addf %24, %330 : vector<2x128xf32>
    %332 = vector.extract_strided_slice %15 {offsets = [0, 1], sizes = [2, 1], strides = [1, 1]} : vector<2x4xf32> to vector<2x1xf32>
    %333 = vector.extract_strided_slice %325 {offsets = [1, 0], sizes = [1, 128], strides = [1, 1]} : vector<4x128xf32> to vector<1x128xf32>
    %334 = vector.broadcast %332 : vector<2x1xf32> to vector<2x128xf32>
    %335 = vector.broadcast %333 : vector<1x128xf32> to vector<2x128xf32>
    %336 = arith.mulf %334, %335 : vector<2x128xf32>
    %337 = arith.addf %331, %336 : vector<2x128xf32>
    %338 = vector.extract_strided_slice %15 {offsets = [0, 2], sizes = [2, 1], strides = [1, 1]} : vector<2x4xf32> to vector<2x1xf32>
    %339 = vector.extract_strided_slice %325 {offsets = [2, 0], sizes = [1, 128], strides = [1, 1]} : vector<4x128xf32> to vector<1x128xf32>
    %340 = vector.broadcast %338 : vector<2x1xf32> to vector<2x128xf32>
    %341 = vector.broadcast %339 : vector<1x128xf32> to vector<2x128xf32>
    %342 = arith.mulf %340, %341 : vector<2x128xf32>
    %343 = arith.addf %337, %342 : vector<2x128xf32>
    %344 = vector.extract_strided_slice %15 {offsets = [0, 3], sizes = [2, 1], strides = [1, 1]} : vector<2x4xf32> to vector<2x1xf32>
    %345 = vector.extract_strided_slice %325 {offsets = [3, 0], sizes = [1, 128], strides = [1, 1]} : vector<4x128xf32> to vector<1x128xf32>
    %346 = vector.broadcast %344 : vector<2x1xf32> to vector<2x128xf32>
    %347 = vector.broadcast %345 : vector<1x128xf32> to vector<2x128xf32>
    %348 = arith.mulf %346, %347 : vector<2x128xf32>
    %349 = arith.addf %343, %348 : vector<2x128xf32>
    %350 = vector.extract_strided_slice %349 {offsets = [0, 0], sizes = [1, 128], strides = [1, 1]} : vector<2x128xf32> to vector<1x128xf32>
    %351 = vector.extract_strided_slice %349 {offsets = [1, 0], sizes = [1, 128], strides = [1, 1]} : vector<2x128xf32> to vector<1x128xf32>
    %352 = arith.negf %350 : vector<1x128xf32>
    %353 = math.exp %352 : vector<1x128xf32>
    %cst_51 = arith.constant 1.000000e+00 : f32
    %354 = vector.broadcast %cst_51 : f32 to vector<1x128xf32>
    %355 = arith.addf %354, %353 : vector<1x128xf32>
    %356 = arith.divf %354, %355 : vector<1x128xf32>
    %357 = vector.broadcast %cst_25 : f32 to vector<1x128xf32>
    %358 = arith.addf %356, %357 : vector<1x128xf32>
    %359 = math.log %358 : vector<1x128xf32>
    %360 = arith.mulf %356, %359 : vector<1x128xf32>
    %cst_52 = arith.constant 1.000000e+00 : f32
    %361 = vector.broadcast %cst_52 : f32 to vector<1x128xf32>
    %362 = arith.subf %361, %356 : vector<1x128xf32>
    %cst_53 = arith.constant 1.000000e+00 : f32
    %363 = vector.broadcast %cst_53 : f32 to vector<1x128xf32>
    %364 = arith.subf %363, %356 : vector<1x128xf32>
    %365 = vector.broadcast %cst_25 : f32 to vector<1x128xf32>
    %366 = arith.addf %364, %365 : vector<1x128xf32>
    %367 = math.log %366 : vector<1x128xf32>
    %368 = arith.mulf %362, %367 : vector<1x128xf32>
    %369 = arith.addf %360, %368 : vector<1x128xf32>
    %cst_54 = arith.constant 0.000000e+00 : f32
    %370 = vector.broadcast %cst_54 : f32 to vector<1x128xf32>
    %371 = arith.subf %370, %369 : vector<1x128xf32>
    %372 = arith.index_cast %c1_i32 : i32 to index
    %c0_55 = arith.constant 0 : index
    %c0_56 = arith.constant 0 : index
    %373 = vector.load %arg12[%372, %c0_55, %c0_56] : memref<6x2x128xf32, #tpu.memory_space<vmem>>, vector<1x2x128xf32>
    %374 = vector.shape_cast %373 : vector<1x2x128xf32> to vector<2x128xf32>
    %375 = vector.extract_strided_slice %374 {offsets = [0, 0], sizes = [1, 128], strides = [1, 1]} : vector<2x128xf32> to vector<1x128xf32>
    %cst_57 = arith.constant 1.000000e-01 : f32
    %376 = vector.broadcast %cst_57 : f32 to vector<1x128xf32>
    %377 = arith.mulf %375, %376 : vector<1x128xf32>
    %378 = arith.addf %356, %377 : vector<1x128xf32>
    %cst_58 = arith.constant 0.00999999977 : f32
    %cst_59 = arith.constant 9.900000e-01 : f32
    %379 = vector.broadcast %cst_58 : f32 to vector<1x128xf32>
    %380 = arith.maximumf %379, %378 : vector<1x128xf32>
    %381 = vector.broadcast %cst_59 : f32 to vector<1x128xf32>
    %382 = arith.minimumf %381, %380 : vector<1x128xf32>
    %383 = vector.extract_strided_slice %374 {offsets = [1, 0], sizes = [1, 128], strides = [1, 1]} : vector<2x128xf32> to vector<1x128xf32>
    %384 = arith.cmpf olt, %383, %382 : vector<1x128xf32>
    %c5_i32_60 = arith.constant 5 : i32
    %385 = arith.cmpi eq, %c1_i32, %c5_i32_60 : i32
    %386 = vector.broadcast %385 : i1 to vector<1x128xi1>
    %387 = arith.ori %384, %386 : vector<1x128xi1>
    %388 = arith.andi %220, %387 : vector<1x128xi1>
    %cst_61 = arith.constant dense<true> : vector<1x128xi1>
    %389 = arith.xori %384, %cst_61 : vector<1x128xi1>
    %390 = arith.andi %220, %389 : vector<1x128xi1>
    %391 = arith.extui %388 : vector<1x128xi1> to vector<1x128xi32>
    %392 = arith.sitofp %391 : vector<1x128xi32> to vector<1x128xf32>
    %393 = arith.extui %390 : vector<1x128xi1> to vector<1x128xi32>
    %394 = arith.sitofp %393 : vector<1x128xi32> to vector<1x128xf32>
    %395 = arith.sitofp %c1_i32 : i32 to f32
    %cst_62 = arith.constant 2.000000e+00 : f32
    %396 = arith.addf %395, %cst_62 : f32
    %397 = arith.minimumf %396, %cst_26 : f32
    %398 = vector.broadcast %397 : f32 to vector<1x128xf32>
    %399 = arith.mulf %25, %398 : vector<1x128xf32>
    %400 = vector.broadcast %cst_25 : f32 to vector<1x128xf32>
    %401 = arith.addf %382, %400 : vector<1x128xf32>
    %402 = math.log %401 : vector<1x128xf32>
    %403 = tpu.concatenate %399, %402, %351, %371, %394, %26 in 0 : vector<1x128xf32>, vector<1x128xf32>, vector<1x128xf32>, vector<1x128xf32>, vector<1x128xf32>, vector<3x128xf32> -> vector<8x128xf32>
    %404 = tpu.concatenate %394, %392, %392, %392, %25, %26 in 0 : vector<1x128xf32>, vector<1x128xf32>, vector<1x128xf32>, vector<1x128xf32>, vector<1x128xf32>, vector<3x128xf32> -> vector<8x128xf32>
    %cst_63 = arith.constant 5.000000e-01 : f32
    %405 = vector.broadcast %cst_63 : f32 to vector<8x128xf32>
    %406 = arith.cmpf ogt, %404, %405 : vector<8x128xf32>
    %407 = arith.select %406, %403, %217 : vector<8x128xi1>, vector<8x128xf32>
    %c2_i32 = arith.constant 2 : i32
    %408 = vector.extract_strided_slice %407 {offsets = [4, 0], sizes = [1, 128], strides = [1, 1]} : vector<8x128xf32> to vector<1x128xf32>
    %cst_64 = arith.constant 0.000000e+00 : f32
    %409 = vector.broadcast %cst_64 : f32 to vector<1x128xf32>
    %410 = arith.cmpf ogt, %408, %409 : vector<1x128xf32>
    %c0_65 = arith.constant 0 : index
    %c0_66 = arith.constant 0 : index
    %411 = vector.load %arg1[%c0_65, %c0_66] : memref<128x128xf32, #tpu.memory_space<vmem>>, vector<128x128xf32>
    %cst_67 = arith.constant dense<0.000000e+00> : vector<8x128xf32>
    %412 = tpu.matmul %225, %411, %cst_67 {dimension_numbers = #tpu.dot_dimension_numbers<[1], [0], [0], [1], [0, 0, 1, 1], [], []>} : vector<8x128xf32>, vector<128x128xf32>, vector<8x128xf32> -> vector<8x128xf32>
    %413 = vector.shape_cast %410 : vector<1x128xi1> to vector<1x128xi1>
    %414 = vector.broadcast %413 : vector<1x128xi1> to vector<8x128xi1>
    %415 = arith.select %414, %412, %225 : vector<8x128xi1>, vector<8x128xf32>
    %416 = vector.extract_strided_slice %13 {offsets = [0, 0], sizes = [8, 1], strides = [1, 1]} : vector<8x8xf32> to vector<8x1xf32>
    %417 = vector.extract_strided_slice %415 {offsets = [0, 0], sizes = [1, 128], strides = [1, 1]} : vector<8x128xf32> to vector<1x128xf32>
    %418 = vector.broadcast %416 : vector<8x1xf32> to vector<8x128xf32>
    %419 = vector.broadcast %417 : vector<1x128xf32> to vector<8x128xf32>
    %420 = arith.mulf %418, %419 : vector<8x128xf32>
    %421 = arith.addf %18, %420 : vector<8x128xf32>
    %422 = vector.extract_strided_slice %13 {offsets = [0, 1], sizes = [8, 1], strides = [1, 1]} : vector<8x8xf32> to vector<8x1xf32>
    %423 = vector.extract_strided_slice %415 {offsets = [1, 0], sizes = [1, 128], strides = [1, 1]} : vector<8x128xf32> to vector<1x128xf32>
    %424 = vector.broadcast %422 : vector<8x1xf32> to vector<8x128xf32>
    %425 = vector.broadcast %423 : vector<1x128xf32> to vector<8x128xf32>
    %426 = arith.mulf %424, %425 : vector<8x128xf32>
    %427 = arith.addf %421, %426 : vector<8x128xf32>
    %428 = vector.extract_strided_slice %13 {offsets = [0, 2], sizes = [8, 1], strides = [1, 1]} : vector<8x8xf32> to vector<8x1xf32>
    %429 = vector.extract_strided_slice %415 {offsets = [2, 0], sizes = [1, 128], strides = [1, 1]} : vector<8x128xf32> to vector<1x128xf32>
    %430 = vector.broadcast %428 : vector<8x1xf32> to vector<8x128xf32>
    %431 = vector.broadcast %429 : vector<1x128xf32> to vector<8x128xf32>
    %432 = arith.mulf %430, %431 : vector<8x128xf32>
    %433 = arith.addf %427, %432 : vector<8x128xf32>
    %434 = vector.extract_strided_slice %13 {offsets = [0, 3], sizes = [8, 1], strides = [1, 1]} : vector<8x8xf32> to vector<8x1xf32>
    %435 = vector.extract_strided_slice %415 {offsets = [3, 0], sizes = [1, 128], strides = [1, 1]} : vector<8x128xf32> to vector<1x128xf32>
    %436 = vector.broadcast %434 : vector<8x1xf32> to vector<8x128xf32>
    %437 = vector.broadcast %435 : vector<1x128xf32> to vector<8x128xf32>
    %438 = arith.mulf %436, %437 : vector<8x128xf32>
    %439 = arith.addf %433, %438 : vector<8x128xf32>
    %440 = vector.extract_strided_slice %13 {offsets = [0, 4], sizes = [8, 1], strides = [1, 1]} : vector<8x8xf32> to vector<8x1xf32>
    %441 = vector.extract_strided_slice %415 {offsets = [4, 0], sizes = [1, 128], strides = [1, 1]} : vector<8x128xf32> to vector<1x128xf32>
    %442 = vector.broadcast %440 : vector<8x1xf32> to vector<8x128xf32>
    %443 = vector.broadcast %441 : vector<1x128xf32> to vector<8x128xf32>
    %444 = arith.mulf %442, %443 : vector<8x128xf32>
    %445 = arith.addf %439, %444 : vector<8x128xf32>
    %446 = vector.extract_strided_slice %13 {offsets = [0, 5], sizes = [8, 1], strides = [1, 1]} : vector<8x8xf32> to vector<8x1xf32>
    %447 = vector.extract_strided_slice %415 {offsets = [5, 0], sizes = [1, 128], strides = [1, 1]} : vector<8x128xf32> to vector<1x128xf32>
    %448 = vector.broadcast %446 : vector<8x1xf32> to vector<8x128xf32>
    %449 = vector.broadcast %447 : vector<1x128xf32> to vector<8x128xf32>
    %450 = arith.mulf %448, %449 : vector<8x128xf32>
    %451 = arith.addf %445, %450 : vector<8x128xf32>
    %452 = vector.extract_strided_slice %13 {offsets = [0, 6], sizes = [8, 1], strides = [1, 1]} : vector<8x8xf32> to vector<8x1xf32>
    %453 = vector.extract_strided_slice %415 {offsets = [6, 0], sizes = [1, 128], strides = [1, 1]} : vector<8x128xf32> to vector<1x128xf32>
    %454 = vector.broadcast %452 : vector<8x1xf32> to vector<8x128xf32>
    %455 = vector.broadcast %453 : vector<1x128xf32> to vector<8x128xf32>
    %456 = arith.mulf %454, %455 : vector<8x128xf32>
    %457 = arith.addf %451, %456 : vector<8x128xf32>
    %458 = vector.extract_strided_slice %13 {offsets = [0, 7], sizes = [8, 1], strides = [1, 1]} : vector<8x8xf32> to vector<8x1xf32>
    %459 = vector.extract_strided_slice %415 {offsets = [7, 0], sizes = [1, 128], strides = [1, 1]} : vector<8x128xf32> to vector<1x128xf32>
    %460 = vector.broadcast %458 : vector<8x1xf32> to vector<8x128xf32>
    %461 = vector.broadcast %459 : vector<1x128xf32> to vector<8x128xf32>
    %462 = arith.mulf %460, %461 : vector<8x128xf32>
    %463 = arith.addf %457, %462 : vector<8x128xf32>
    %cst_68 = arith.constant 0.000000e+00 : f32
    %464 = vector.broadcast %cst_68 : f32 to vector<8x128xf32>
    %465 = arith.maximumf %463, %464 : vector<8x128xf32>
    %466 = vector.extract_strided_slice %14 {offsets = [0, 0], sizes = [4, 1], strides = [1, 1]} : vector<4x8xf32> to vector<4x1xf32>
    %467 = vector.extract_strided_slice %465 {offsets = [0, 0], sizes = [1, 128], strides = [1, 1]} : vector<8x128xf32> to vector<1x128xf32>
    %468 = vector.broadcast %466 : vector<4x1xf32> to vector<4x128xf32>
    %469 = vector.broadcast %467 : vector<1x128xf32> to vector<4x128xf32>
    %470 = arith.mulf %468, %469 : vector<4x128xf32>
    %471 = arith.addf %21, %470 : vector<4x128xf32>
    %472 = vector.extract_strided_slice %14 {offsets = [0, 1], sizes = [4, 1], strides = [1, 1]} : vector<4x8xf32> to vector<4x1xf32>
    %473 = vector.extract_strided_slice %465 {offsets = [1, 0], sizes = [1, 128], strides = [1, 1]} : vector<8x128xf32> to vector<1x128xf32>
    %474 = vector.broadcast %472 : vector<4x1xf32> to vector<4x128xf32>
    %475 = vector.broadcast %473 : vector<1x128xf32> to vector<4x128xf32>
    %476 = arith.mulf %474, %475 : vector<4x128xf32>
    %477 = arith.addf %471, %476 : vector<4x128xf32>
    %478 = vector.extract_strided_slice %14 {offsets = [0, 2], sizes = [4, 1], strides = [1, 1]} : vector<4x8xf32> to vector<4x1xf32>
    %479 = vector.extract_strided_slice %465 {offsets = [2, 0], sizes = [1, 128], strides = [1, 1]} : vector<8x128xf32> to vector<1x128xf32>
    %480 = vector.broadcast %478 : vector<4x1xf32> to vector<4x128xf32>
    %481 = vector.broadcast %479 : vector<1x128xf32> to vector<4x128xf32>
    %482 = arith.mulf %480, %481 : vector<4x128xf32>
    %483 = arith.addf %477, %482 : vector<4x128xf32>
    %484 = vector.extract_strided_slice %14 {offsets = [0, 3], sizes = [4, 1], strides = [1, 1]} : vector<4x8xf32> to vector<4x1xf32>
    %485 = vector.extract_strided_slice %465 {offsets = [3, 0], sizes = [1, 128], strides = [1, 1]} : vector<8x128xf32> to vector<1x128xf32>
    %486 = vector.broadcast %484 : vector<4x1xf32> to vector<4x128xf32>
    %487 = vector.broadcast %485 : vector<1x128xf32> to vector<4x128xf32>
    %488 = arith.mulf %486, %487 : vector<4x128xf32>
    %489 = arith.addf %483, %488 : vector<4x128xf32>
    %490 = vector.extract_strided_slice %14 {offsets = [0, 4], sizes = [4, 1], strides = [1, 1]} : vector<4x8xf32> to vector<4x1xf32>
    %491 = vector.extract_strided_slice %465 {offsets = [4, 0], sizes = [1, 128], strides = [1, 1]} : vector<8x128xf32> to vector<1x128xf32>
    %492 = vector.broadcast %490 : vector<4x1xf32> to vector<4x128xf32>
    %493 = vector.broadcast %491 : vector<1x128xf32> to vector<4x128xf32>
    %494 = arith.mulf %492, %493 : vector<4x128xf32>
    %495 = arith.addf %489, %494 : vector<4x128xf32>
    %496 = vector.extract_strided_slice %14 {offsets = [0, 5], sizes = [4, 1], strides = [1, 1]} : vector<4x8xf32> to vector<4x1xf32>
    %497 = vector.extract_strided_slice %465 {offsets = [5, 0], sizes = [1, 128], strides = [1, 1]} : vector<8x128xf32> to vector<1x128xf32>
    %498 = vector.broadcast %496 : vector<4x1xf32> to vector<4x128xf32>
    %499 = vector.broadcast %497 : vector<1x128xf32> to vector<4x128xf32>
    %500 = arith.mulf %498, %499 : vector<4x128xf32>
    %501 = arith.addf %495, %500 : vector<4x128xf32>
    %502 = vector.extract_strided_slice %14 {offsets = [0, 6], sizes = [4, 1], strides = [1, 1]} : vector<4x8xf32> to vector<4x1xf32>
    %503 = vector.extract_strided_slice %465 {offsets = [6, 0], sizes = [1, 128], strides = [1, 1]} : vector<8x128xf32> to vector<1x128xf32>
    %504 = vector.broadcast %502 : vector<4x1xf32> to vector<4x128xf32>
    %505 = vector.broadcast %503 : vector<1x128xf32> to vector<4x128xf32>
    %506 = arith.mulf %504, %505 : vector<4x128xf32>
    %507 = arith.addf %501, %506 : vector<4x128xf32>
    %508 = vector.extract_strided_slice %14 {offsets = [0, 7], sizes = [4, 1], strides = [1, 1]} : vector<4x8xf32> to vector<4x1xf32>
    %509 = vector.extract_strided_slice %465 {offsets = [7, 0], sizes = [1, 128], strides = [1, 1]} : vector<8x128xf32> to vector<1x128xf32>
    %510 = vector.broadcast %508 : vector<4x1xf32> to vector<4x128xf32>
    %511 = vector.broadcast %509 : vector<1x128xf32> to vector<4x128xf32>
    %512 = arith.mulf %510, %511 : vector<4x128xf32>
    %513 = arith.addf %507, %512 : vector<4x128xf32>
    %cst_69 = arith.constant 0.000000e+00 : f32
    %514 = vector.broadcast %cst_69 : f32 to vector<4x128xf32>
    %515 = arith.maximumf %513, %514 : vector<4x128xf32>
    %516 = vector.extract_strided_slice %15 {offsets = [0, 0], sizes = [2, 1], strides = [1, 1]} : vector<2x4xf32> to vector<2x1xf32>
    %517 = vector.extract_strided_slice %515 {offsets = [0, 0], sizes = [1, 128], strides = [1, 1]} : vector<4x128xf32> to vector<1x128xf32>
    %518 = vector.broadcast %516 : vector<2x1xf32> to vector<2x128xf32>
    %519 = vector.broadcast %517 : vector<1x128xf32> to vector<2x128xf32>
    %520 = arith.mulf %518, %519 : vector<2x128xf32>
    %521 = arith.addf %24, %520 : vector<2x128xf32>
    %522 = vector.extract_strided_slice %15 {offsets = [0, 1], sizes = [2, 1], strides = [1, 1]} : vector<2x4xf32> to vector<2x1xf32>
    %523 = vector.extract_strided_slice %515 {offsets = [1, 0], sizes = [1, 128], strides = [1, 1]} : vector<4x128xf32> to vector<1x128xf32>
    %524 = vector.broadcast %522 : vector<2x1xf32> to vector<2x128xf32>
    %525 = vector.broadcast %523 : vector<1x128xf32> to vector<2x128xf32>
    %526 = arith.mulf %524, %525 : vector<2x128xf32>
    %527 = arith.addf %521, %526 : vector<2x128xf32>
    %528 = vector.extract_strided_slice %15 {offsets = [0, 2], sizes = [2, 1], strides = [1, 1]} : vector<2x4xf32> to vector<2x1xf32>
    %529 = vector.extract_strided_slice %515 {offsets = [2, 0], sizes = [1, 128], strides = [1, 1]} : vector<4x128xf32> to vector<1x128xf32>
    %530 = vector.broadcast %528 : vector<2x1xf32> to vector<2x128xf32>
    %531 = vector.broadcast %529 : vector<1x128xf32> to vector<2x128xf32>
    %532 = arith.mulf %530, %531 : vector<2x128xf32>
    %533 = arith.addf %527, %532 : vector<2x128xf32>
    %534 = vector.extract_strided_slice %15 {offsets = [0, 3], sizes = [2, 1], strides = [1, 1]} : vector<2x4xf32> to vector<2x1xf32>
    %535 = vector.extract_strided_slice %515 {offsets = [3, 0], sizes = [1, 128], strides = [1, 1]} : vector<4x128xf32> to vector<1x128xf32>
    %536 = vector.broadcast %534 : vector<2x1xf32> to vector<2x128xf32>
    %537 = vector.broadcast %535 : vector<1x128xf32> to vector<2x128xf32>
    %538 = arith.mulf %536, %537 : vector<2x128xf32>
    %539 = arith.addf %533, %538 : vector<2x128xf32>
    %540 = vector.extract_strided_slice %539 {offsets = [0, 0], sizes = [1, 128], strides = [1, 1]} : vector<2x128xf32> to vector<1x128xf32>
    %541 = vector.extract_strided_slice %539 {offsets = [1, 0], sizes = [1, 128], strides = [1, 1]} : vector<2x128xf32> to vector<1x128xf32>
    %542 = arith.negf %540 : vector<1x128xf32>
    %543 = math.exp %542 : vector<1x128xf32>
    %cst_70 = arith.constant 1.000000e+00 : f32
    %544 = vector.broadcast %cst_70 : f32 to vector<1x128xf32>
    %545 = arith.addf %544, %543 : vector<1x128xf32>
    %546 = arith.divf %544, %545 : vector<1x128xf32>
    %547 = vector.broadcast %cst_25 : f32 to vector<1x128xf32>
    %548 = arith.addf %546, %547 : vector<1x128xf32>
    %549 = math.log %548 : vector<1x128xf32>
    %550 = arith.mulf %546, %549 : vector<1x128xf32>
    %cst_71 = arith.constant 1.000000e+00 : f32
    %551 = vector.broadcast %cst_71 : f32 to vector<1x128xf32>
    %552 = arith.subf %551, %546 : vector<1x128xf32>
    %cst_72 = arith.constant 1.000000e+00 : f32
    %553 = vector.broadcast %cst_72 : f32 to vector<1x128xf32>
    %554 = arith.subf %553, %546 : vector<1x128xf32>
    %555 = vector.broadcast %cst_25 : f32 to vector<1x128xf32>
    %556 = arith.addf %554, %555 : vector<1x128xf32>
    %557 = math.log %556 : vector<1x128xf32>
    %558 = arith.mulf %552, %557 : vector<1x128xf32>
    %559 = arith.addf %550, %558 : vector<1x128xf32>
    %cst_73 = arith.constant 0.000000e+00 : f32
    %560 = vector.broadcast %cst_73 : f32 to vector<1x128xf32>
    %561 = arith.subf %560, %559 : vector<1x128xf32>
    %562 = arith.index_cast %c2_i32 : i32 to index
    %c0_74 = arith.constant 0 : index
    %c0_75 = arith.constant 0 : index
    %563 = vector.load %arg12[%562, %c0_74, %c0_75] : memref<6x2x128xf32, #tpu.memory_space<vmem>>, vector<1x2x128xf32>
    %564 = vector.shape_cast %563 : vector<1x2x128xf32> to vector<2x128xf32>
    %565 = vector.extract_strided_slice %564 {offsets = [0, 0], sizes = [1, 128], strides = [1, 1]} : vector<2x128xf32> to vector<1x128xf32>
    %cst_76 = arith.constant 1.000000e-01 : f32
    %566 = vector.broadcast %cst_76 : f32 to vector<1x128xf32>
    %567 = arith.mulf %565, %566 : vector<1x128xf32>
    %568 = arith.addf %546, %567 : vector<1x128xf32>
    %cst_77 = arith.constant 0.00999999977 : f32
    %cst_78 = arith.constant 9.900000e-01 : f32
    %569 = vector.broadcast %cst_77 : f32 to vector<1x128xf32>
    %570 = arith.maximumf %569, %568 : vector<1x128xf32>
    %571 = vector.broadcast %cst_78 : f32 to vector<1x128xf32>
    %572 = arith.minimumf %571, %570 : vector<1x128xf32>
    %573 = vector.extract_strided_slice %564 {offsets = [1, 0], sizes = [1, 128], strides = [1, 1]} : vector<2x128xf32> to vector<1x128xf32>
    %574 = arith.cmpf olt, %573, %572 : vector<1x128xf32>
    %c5_i32_79 = arith.constant 5 : i32
    %575 = arith.cmpi eq, %c2_i32, %c5_i32_79 : i32
    %576 = vector.broadcast %575 : i1 to vector<1x128xi1>
    %577 = arith.ori %574, %576 : vector<1x128xi1>
    %578 = arith.andi %410, %577 : vector<1x128xi1>
    %cst_80 = arith.constant dense<true> : vector<1x128xi1>
    %579 = arith.xori %574, %cst_80 : vector<1x128xi1>
    %580 = arith.andi %410, %579 : vector<1x128xi1>
    %581 = arith.extui %578 : vector<1x128xi1> to vector<1x128xi32>
    %582 = arith.sitofp %581 : vector<1x128xi32> to vector<1x128xf32>
    %583 = arith.extui %580 : vector<1x128xi1> to vector<1x128xi32>
    %584 = arith.sitofp %583 : vector<1x128xi32> to vector<1x128xf32>
    %585 = arith.sitofp %c2_i32 : i32 to f32
    %cst_81 = arith.constant 2.000000e+00 : f32
    %586 = arith.addf %585, %cst_81 : f32
    %587 = arith.minimumf %586, %cst_26 : f32
    %588 = vector.broadcast %587 : f32 to vector<1x128xf32>
    %589 = arith.mulf %25, %588 : vector<1x128xf32>
    %590 = vector.broadcast %cst_25 : f32 to vector<1x128xf32>
    %591 = arith.addf %572, %590 : vector<1x128xf32>
    %592 = math.log %591 : vector<1x128xf32>
    %593 = tpu.concatenate %589, %592, %541, %561, %584, %26 in 0 : vector<1x128xf32>, vector<1x128xf32>, vector<1x128xf32>, vector<1x128xf32>, vector<1x128xf32>, vector<3x128xf32> -> vector<8x128xf32>
    %594 = tpu.concatenate %584, %582, %582, %582, %25, %26 in 0 : vector<1x128xf32>, vector<1x128xf32>, vector<1x128xf32>, vector<1x128xf32>, vector<1x128xf32>, vector<3x128xf32> -> vector<8x128xf32>
    %cst_82 = arith.constant 5.000000e-01 : f32
    %595 = vector.broadcast %cst_82 : f32 to vector<8x128xf32>
    %596 = arith.cmpf ogt, %594, %595 : vector<8x128xf32>
    %597 = arith.select %596, %593, %407 : vector<8x128xi1>, vector<8x128xf32>
    %c3_i32 = arith.constant 3 : i32
    %598 = vector.extract_strided_slice %597 {offsets = [4, 0], sizes = [1, 128], strides = [1, 1]} : vector<8x128xf32> to vector<1x128xf32>
    %cst_83 = arith.constant 0.000000e+00 : f32
    %599 = vector.broadcast %cst_83 : f32 to vector<1x128xf32>
    %600 = arith.cmpf ogt, %598, %599 : vector<1x128xf32>
    %c0_84 = arith.constant 0 : index
    %c0_85 = arith.constant 0 : index
    %601 = vector.load %arg1[%c0_84, %c0_85] : memref<128x128xf32, #tpu.memory_space<vmem>>, vector<128x128xf32>
    %cst_86 = arith.constant dense<0.000000e+00> : vector<8x128xf32>
    %602 = tpu.matmul %415, %601, %cst_86 {dimension_numbers = #tpu.dot_dimension_numbers<[1], [0], [0], [1], [0, 0, 1, 1], [], []>} : vector<8x128xf32>, vector<128x128xf32>, vector<8x128xf32> -> vector<8x128xf32>
    %603 = vector.shape_cast %600 : vector<1x128xi1> to vector<1x128xi1>
    %604 = vector.broadcast %603 : vector<1x128xi1> to vector<8x128xi1>
    %605 = arith.select %604, %602, %415 : vector<8x128xi1>, vector<8x128xf32>
    %606 = vector.extract_strided_slice %13 {offsets = [0, 0], sizes = [8, 1], strides = [1, 1]} : vector<8x8xf32> to vector<8x1xf32>
    %607 = vector.extract_strided_slice %605 {offsets = [0, 0], sizes = [1, 128], strides = [1, 1]} : vector<8x128xf32> to vector<1x128xf32>
    %608 = vector.broadcast %606 : vector<8x1xf32> to vector<8x128xf32>
    %609 = vector.broadcast %607 : vector<1x128xf32> to vector<8x128xf32>
    %610 = arith.mulf %608, %609 : vector<8x128xf32>
    %611 = arith.addf %18, %610 : vector<8x128xf32>
    %612 = vector.extract_strided_slice %13 {offsets = [0, 1], sizes = [8, 1], strides = [1, 1]} : vector<8x8xf32> to vector<8x1xf32>
    %613 = vector.extract_strided_slice %605 {offsets = [1, 0], sizes = [1, 128], strides = [1, 1]} : vector<8x128xf32> to vector<1x128xf32>
    %614 = vector.broadcast %612 : vector<8x1xf32> to vector<8x128xf32>
    %615 = vector.broadcast %613 : vector<1x128xf32> to vector<8x128xf32>
    %616 = arith.mulf %614, %615 : vector<8x128xf32>
    %617 = arith.addf %611, %616 : vector<8x128xf32>
    %618 = vector.extract_strided_slice %13 {offsets = [0, 2], sizes = [8, 1], strides = [1, 1]} : vector<8x8xf32> to vector<8x1xf32>
    %619 = vector.extract_strided_slice %605 {offsets = [2, 0], sizes = [1, 128], strides = [1, 1]} : vector<8x128xf32> to vector<1x128xf32>
    %620 = vector.broadcast %618 : vector<8x1xf32> to vector<8x128xf32>
    %621 = vector.broadcast %619 : vector<1x128xf32> to vector<8x128xf32>
    %622 = arith.mulf %620, %621 : vector<8x128xf32>
    %623 = arith.addf %617, %622 : vector<8x128xf32>
    %624 = vector.extract_strided_slice %13 {offsets = [0, 3], sizes = [8, 1], strides = [1, 1]} : vector<8x8xf32> to vector<8x1xf32>
    %625 = vector.extract_strided_slice %605 {offsets = [3, 0], sizes = [1, 128], strides = [1, 1]} : vector<8x128xf32> to vector<1x128xf32>
    %626 = vector.broadcast %624 : vector<8x1xf32> to vector<8x128xf32>
    %627 = vector.broadcast %625 : vector<1x128xf32> to vector<8x128xf32>
    %628 = arith.mulf %626, %627 : vector<8x128xf32>
    %629 = arith.addf %623, %628 : vector<8x128xf32>
    %630 = vector.extract_strided_slice %13 {offsets = [0, 4], sizes = [8, 1], strides = [1, 1]} : vector<8x8xf32> to vector<8x1xf32>
    %631 = vector.extract_strided_slice %605 {offsets = [4, 0], sizes = [1, 128], strides = [1, 1]} : vector<8x128xf32> to vector<1x128xf32>
    %632 = vector.broadcast %630 : vector<8x1xf32> to vector<8x128xf32>
    %633 = vector.broadcast %631 : vector<1x128xf32> to vector<8x128xf32>
    %634 = arith.mulf %632, %633 : vector<8x128xf32>
    %635 = arith.addf %629, %634 : vector<8x128xf32>
    %636 = vector.extract_strided_slice %13 {offsets = [0, 5], sizes = [8, 1], strides = [1, 1]} : vector<8x8xf32> to vector<8x1xf32>
    %637 = vector.extract_strided_slice %605 {offsets = [5, 0], sizes = [1, 128], strides = [1, 1]} : vector<8x128xf32> to vector<1x128xf32>
    %638 = vector.broadcast %636 : vector<8x1xf32> to vector<8x128xf32>
    %639 = vector.broadcast %637 : vector<1x128xf32> to vector<8x128xf32>
    %640 = arith.mulf %638, %639 : vector<8x128xf32>
    %641 = arith.addf %635, %640 : vector<8x128xf32>
    %642 = vector.extract_strided_slice %13 {offsets = [0, 6], sizes = [8, 1], strides = [1, 1]} : vector<8x8xf32> to vector<8x1xf32>
    %643 = vector.extract_strided_slice %605 {offsets = [6, 0], sizes = [1, 128], strides = [1, 1]} : vector<8x128xf32> to vector<1x128xf32>
    %644 = vector.broadcast %642 : vector<8x1xf32> to vector<8x128xf32>
    %645 = vector.broadcast %643 : vector<1x128xf32> to vector<8x128xf32>
    %646 = arith.mulf %644, %645 : vector<8x128xf32>
    %647 = arith.addf %641, %646 : vector<8x128xf32>
    %648 = vector.extract_strided_slice %13 {offsets = [0, 7], sizes = [8, 1], strides = [1, 1]} : vector<8x8xf32> to vector<8x1xf32>
    %649 = vector.extract_strided_slice %605 {offsets = [7, 0], sizes = [1, 128], strides = [1, 1]} : vector<8x128xf32> to vector<1x128xf32>
    %650 = vector.broadcast %648 : vector<8x1xf32> to vector<8x128xf32>
    %651 = vector.broadcast %649 : vector<1x128xf32> to vector<8x128xf32>
    %652 = arith.mulf %650, %651 : vector<8x128xf32>
    %653 = arith.addf %647, %652 : vector<8x128xf32>
    %cst_87 = arith.constant 0.000000e+00 : f32
    %654 = vector.broadcast %cst_87 : f32 to vector<8x128xf32>
    %655 = arith.maximumf %653, %654 : vector<8x128xf32>
    %656 = vector.extract_strided_slice %14 {offsets = [0, 0], sizes = [4, 1], strides = [1, 1]} : vector<4x8xf32> to vector<4x1xf32>
    %657 = vector.extract_strided_slice %655 {offsets = [0, 0], sizes = [1, 128], strides = [1, 1]} : vector<8x128xf32> to vector<1x128xf32>
    %658 = vector.broadcast %656 : vector<4x1xf32> to vector<4x128xf32>
    %659 = vector.broadcast %657 : vector<1x128xf32> to vector<4x128xf32>
    %660 = arith.mulf %658, %659 : vector<4x128xf32>
    %661 = arith.addf %21, %660 : vector<4x128xf32>
    %662 = vector.extract_strided_slice %14 {offsets = [0, 1], sizes = [4, 1], strides = [1, 1]} : vector<4x8xf32> to vector<4x1xf32>
    %663 = vector.extract_strided_slice %655 {offsets = [1, 0], sizes = [1, 128], strides = [1, 1]} : vector<8x128xf32> to vector<1x128xf32>
    %664 = vector.broadcast %662 : vector<4x1xf32> to vector<4x128xf32>
    %665 = vector.broadcast %663 : vector<1x128xf32> to vector<4x128xf32>
    %666 = arith.mulf %664, %665 : vector<4x128xf32>
    %667 = arith.addf %661, %666 : vector<4x128xf32>
    %668 = vector.extract_strided_slice %14 {offsets = [0, 2], sizes = [4, 1], strides = [1, 1]} : vector<4x8xf32> to vector<4x1xf32>
    %669 = vector.extract_strided_slice %655 {offsets = [2, 0], sizes = [1, 128], strides = [1, 1]} : vector<8x128xf32> to vector<1x128xf32>
    %670 = vector.broadcast %668 : vector<4x1xf32> to vector<4x128xf32>
    %671 = vector.broadcast %669 : vector<1x128xf32> to vector<4x128xf32>
    %672 = arith.mulf %670, %671 : vector<4x128xf32>
    %673 = arith.addf %667, %672 : vector<4x128xf32>
    %674 = vector.extract_strided_slice %14 {offsets = [0, 3], sizes = [4, 1], strides = [1, 1]} : vector<4x8xf32> to vector<4x1xf32>
    %675 = vector.extract_strided_slice %655 {offsets = [3, 0], sizes = [1, 128], strides = [1, 1]} : vector<8x128xf32> to vector<1x128xf32>
    %676 = vector.broadcast %674 : vector<4x1xf32> to vector<4x128xf32>
    %677 = vector.broadcast %675 : vector<1x128xf32> to vector<4x128xf32>
    %678 = arith.mulf %676, %677 : vector<4x128xf32>
    %679 = arith.addf %673, %678 : vector<4x128xf32>
    %680 = vector.extract_strided_slice %14 {offsets = [0, 4], sizes = [4, 1], strides = [1, 1]} : vector<4x8xf32> to vector<4x1xf32>
    %681 = vector.extract_strided_slice %655 {offsets = [4, 0], sizes = [1, 128], strides = [1, 1]} : vector<8x128xf32> to vector<1x128xf32>
    %682 = vector.broadcast %680 : vector<4x1xf32> to vector<4x128xf32>
    %683 = vector.broadcast %681 : vector<1x128xf32> to vector<4x128xf32>
    %684 = arith.mulf %682, %683 : vector<4x128xf32>
    %685 = arith.addf %679, %684 : vector<4x128xf32>
    %686 = vector.extract_strided_slice %14 {offsets = [0, 5], sizes = [4, 1], strides = [1, 1]} : vector<4x8xf32> to vector<4x1xf32>
    %687 = vector.extract_strided_slice %655 {offsets = [5, 0], sizes = [1, 128], strides = [1, 1]} : vector<8x128xf32> to vector<1x128xf32>
    %688 = vector.broadcast %686 : vector<4x1xf32> to vector<4x128xf32>
    %689 = vector.broadcast %687 : vector<1x128xf32> to vector<4x128xf32>
    %690 = arith.mulf %688, %689 : vector<4x128xf32>
    %691 = arith.addf %685, %690 : vector<4x128xf32>
    %692 = vector.extract_strided_slice %14 {offsets = [0, 6], sizes = [4, 1], strides = [1, 1]} : vector<4x8xf32> to vector<4x1xf32>
    %693 = vector.extract_strided_slice %655 {offsets = [6, 0], sizes = [1, 128], strides = [1, 1]} : vector<8x128xf32> to vector<1x128xf32>
    %694 = vector.broadcast %692 : vector<4x1xf32> to vector<4x128xf32>
    %695 = vector.broadcast %693 : vector<1x128xf32> to vector<4x128xf32>
    %696 = arith.mulf %694, %695 : vector<4x128xf32>
    %697 = arith.addf %691, %696 : vector<4x128xf32>
    %698 = vector.extract_strided_slice %14 {offsets = [0, 7], sizes = [4, 1], strides = [1, 1]} : vector<4x8xf32> to vector<4x1xf32>
    %699 = vector.extract_strided_slice %655 {offsets = [7, 0], sizes = [1, 128], strides = [1, 1]} : vector<8x128xf32> to vector<1x128xf32>
    %700 = vector.broadcast %698 : vector<4x1xf32> to vector<4x128xf32>
    %701 = vector.broadcast %699 : vector<1x128xf32> to vector<4x128xf32>
    %702 = arith.mulf %700, %701 : vector<4x128xf32>
    %703 = arith.addf %697, %702 : vector<4x128xf32>
    %cst_88 = arith.constant 0.000000e+00 : f32
    %704 = vector.broadcast %cst_88 : f32 to vector<4x128xf32>
    %705 = arith.maximumf %703, %704 : vector<4x128xf32>
    %706 = vector.extract_strided_slice %15 {offsets = [0, 0], sizes = [2, 1], strides = [1, 1]} : vector<2x4xf32> to vector<2x1xf32>
    %707 = vector.extract_strided_slice %705 {offsets = [0, 0], sizes = [1, 128], strides = [1, 1]} : vector<4x128xf32> to vector<1x128xf32>
    %708 = vector.broadcast %706 : vector<2x1xf32> to vector<2x128xf32>
    %709 = vector.broadcast %707 : vector<1x128xf32> to vector<2x128xf32>
    %710 = arith.mulf %708, %709 : vector<2x128xf32>
    %711 = arith.addf %24, %710 : vector<2x128xf32>
    %712 = vector.extract_strided_slice %15 {offsets = [0, 1], sizes = [2, 1], strides = [1, 1]} : vector<2x4xf32> to vector<2x1xf32>
    %713 = vector.extract_strided_slice %705 {offsets = [1, 0], sizes = [1, 128], strides = [1, 1]} : vector<4x128xf32> to vector<1x128xf32>
    %714 = vector.broadcast %712 : vector<2x1xf32> to vector<2x128xf32>
    %715 = vector.broadcast %713 : vector<1x128xf32> to vector<2x128xf32>
    %716 = arith.mulf %714, %715 : vector<2x128xf32>
    %717 = arith.addf %711, %716 : vector<2x128xf32>
    %718 = vector.extract_strided_slice %15 {offsets = [0, 2], sizes = [2, 1], strides = [1, 1]} : vector<2x4xf32> to vector<2x1xf32>
    %719 = vector.extract_strided_slice %705 {offsets = [2, 0], sizes = [1, 128], strides = [1, 1]} : vector<4x128xf32> to vector<1x128xf32>
    %720 = vector.broadcast %718 : vector<2x1xf32> to vector<2x128xf32>
    %721 = vector.broadcast %719 : vector<1x128xf32> to vector<2x128xf32>
    %722 = arith.mulf %720, %721 : vector<2x128xf32>
    %723 = arith.addf %717, %722 : vector<2x128xf32>
    %724 = vector.extract_strided_slice %15 {offsets = [0, 3], sizes = [2, 1], strides = [1, 1]} : vector<2x4xf32> to vector<2x1xf32>
    %725 = vector.extract_strided_slice %705 {offsets = [3, 0], sizes = [1, 128], strides = [1, 1]} : vector<4x128xf32> to vector<1x128xf32>
    %726 = vector.broadcast %724 : vector<2x1xf32> to vector<2x128xf32>
    %727 = vector.broadcast %725 : vector<1x128xf32> to vector<2x128xf32>
    %728 = arith.mulf %726, %727 : vector<2x128xf32>
    %729 = arith.addf %723, %728 : vector<2x128xf32>
    %730 = vector.extract_strided_slice %729 {offsets = [0, 0], sizes = [1, 128], strides = [1, 1]} : vector<2x128xf32> to vector<1x128xf32>
    %731 = vector.extract_strided_slice %729 {offsets = [1, 0], sizes = [1, 128], strides = [1, 1]} : vector<2x128xf32> to vector<1x128xf32>
    %732 = arith.negf %730 : vector<1x128xf32>
    %733 = math.exp %732 : vector<1x128xf32>
    %cst_89 = arith.constant 1.000000e+00 : f32
    %734 = vector.broadcast %cst_89 : f32 to vector<1x128xf32>
    %735 = arith.addf %734, %733 : vector<1x128xf32>
    %736 = arith.divf %734, %735 : vector<1x128xf32>
    %737 = vector.broadcast %cst_25 : f32 to vector<1x128xf32>
    %738 = arith.addf %736, %737 : vector<1x128xf32>
    %739 = math.log %738 : vector<1x128xf32>
    %740 = arith.mulf %736, %739 : vector<1x128xf32>
    %cst_90 = arith.constant 1.000000e+00 : f32
    %741 = vector.broadcast %cst_90 : f32 to vector<1x128xf32>
    %742 = arith.subf %741, %736 : vector<1x128xf32>
    %cst_91 = arith.constant 1.000000e+00 : f32
    %743 = vector.broadcast %cst_91 : f32 to vector<1x128xf32>
    %744 = arith.subf %743, %736 : vector<1x128xf32>
    %745 = vector.broadcast %cst_25 : f32 to vector<1x128xf32>
    %746 = arith.addf %744, %745 : vector<1x128xf32>
    %747 = math.log %746 : vector<1x128xf32>
    %748 = arith.mulf %742, %747 : vector<1x128xf32>
    %749 = arith.addf %740, %748 : vector<1x128xf32>
    %cst_92 = arith.constant 0.000000e+00 : f32
    %750 = vector.broadcast %cst_92 : f32 to vector<1x128xf32>
    %751 = arith.subf %750, %749 : vector<1x128xf32>
    %752 = arith.index_cast %c3_i32 : i32 to index
    %c0_93 = arith.constant 0 : index
    %c0_94 = arith.constant 0 : index
    %753 = vector.load %arg12[%752, %c0_93, %c0_94] : memref<6x2x128xf32, #tpu.memory_space<vmem>>, vector<1x2x128xf32>
    %754 = vector.shape_cast %753 : vector<1x2x128xf32> to vector<2x128xf32>
    %755 = vector.extract_strided_slice %754 {offsets = [0, 0], sizes = [1, 128], strides = [1, 1]} : vector<2x128xf32> to vector<1x128xf32>
    %cst_95 = arith.constant 1.000000e-01 : f32
    %756 = vector.broadcast %cst_95 : f32 to vector<1x128xf32>
    %757 = arith.mulf %755, %756 : vector<1x128xf32>
    %758 = arith.addf %736, %757 : vector<1x128xf32>
    %cst_96 = arith.constant 0.00999999977 : f32
    %cst_97 = arith.constant 9.900000e-01 : f32
    %759 = vector.broadcast %cst_96 : f32 to vector<1x128xf32>
    %760 = arith.maximumf %759, %758 : vector<1x128xf32>
    %761 = vector.broadcast %cst_97 : f32 to vector<1x128xf32>
    %762 = arith.minimumf %761, %760 : vector<1x128xf32>
    %763 = vector.extract_strided_slice %754 {offsets = [1, 0], sizes = [1, 128], strides = [1, 1]} : vector<2x128xf32> to vector<1x128xf32>
    %764 = arith.cmpf olt, %763, %762 : vector<1x128xf32>
    %c5_i32_98 = arith.constant 5 : i32
    %765 = arith.cmpi eq, %c3_i32, %c5_i32_98 : i32
    %766 = vector.broadcast %765 : i1 to vector<1x128xi1>
    %767 = arith.ori %764, %766 : vector<1x128xi1>
    %768 = arith.andi %600, %767 : vector<1x128xi1>
    %cst_99 = arith.constant dense<true> : vector<1x128xi1>
    %769 = arith.xori %764, %cst_99 : vector<1x128xi1>
    %770 = arith.andi %600, %769 : vector<1x128xi1>
    %771 = arith.extui %768 : vector<1x128xi1> to vector<1x128xi32>
    %772 = arith.sitofp %771 : vector<1x128xi32> to vector<1x128xf32>
    %773 = arith.extui %770 : vector<1x128xi1> to vector<1x128xi32>
    %774 = arith.sitofp %773 : vector<1x128xi32> to vector<1x128xf32>
    %775 = arith.sitofp %c3_i32 : i32 to f32
    %cst_100 = arith.constant 2.000000e+00 : f32
    %776 = arith.addf %775, %cst_100 : f32
    %777 = arith.minimumf %776, %cst_26 : f32
    %778 = vector.broadcast %777 : f32 to vector<1x128xf32>
    %779 = arith.mulf %25, %778 : vector<1x128xf32>
    %780 = vector.broadcast %cst_25 : f32 to vector<1x128xf32>
    %781 = arith.addf %762, %780 : vector<1x128xf32>
    %782 = math.log %781 : vector<1x128xf32>
    %783 = tpu.concatenate %779, %782, %731, %751, %774, %26 in 0 : vector<1x128xf32>, vector<1x128xf32>, vector<1x128xf32>, vector<1x128xf32>, vector<1x128xf32>, vector<3x128xf32> -> vector<8x128xf32>
    %784 = tpu.concatenate %774, %772, %772, %772, %25, %26 in 0 : vector<1x128xf32>, vector<1x128xf32>, vector<1x128xf32>, vector<1x128xf32>, vector<1x128xf32>, vector<3x128xf32> -> vector<8x128xf32>
    %cst_101 = arith.constant 5.000000e-01 : f32
    %785 = vector.broadcast %cst_101 : f32 to vector<8x128xf32>
    %786 = arith.cmpf ogt, %784, %785 : vector<8x128xf32>
    %787 = arith.select %786, %783, %597 : vector<8x128xi1>, vector<8x128xf32>
    %c4_i32 = arith.constant 4 : i32
    %788 = vector.extract_strided_slice %787 {offsets = [4, 0], sizes = [1, 128], strides = [1, 1]} : vector<8x128xf32> to vector<1x128xf32>
    %cst_102 = arith.constant 0.000000e+00 : f32
    %789 = vector.broadcast %cst_102 : f32 to vector<1x128xf32>
    %790 = arith.cmpf ogt, %788, %789 : vector<1x128xf32>
    %c0_103 = arith.constant 0 : index
    %c0_104 = arith.constant 0 : index
    %791 = vector.load %arg1[%c0_103, %c0_104] : memref<128x128xf32, #tpu.memory_space<vmem>>, vector<128x128xf32>
    %cst_105 = arith.constant dense<0.000000e+00> : vector<8x128xf32>
    %792 = tpu.matmul %605, %791, %cst_105 {dimension_numbers = #tpu.dot_dimension_numbers<[1], [0], [0], [1], [0, 0, 1, 1], [], []>} : vector<8x128xf32>, vector<128x128xf32>, vector<8x128xf32> -> vector<8x128xf32>
    %793 = vector.shape_cast %790 : vector<1x128xi1> to vector<1x128xi1>
    %794 = vector.broadcast %793 : vector<1x128xi1> to vector<8x128xi1>
    %795 = arith.select %794, %792, %605 : vector<8x128xi1>, vector<8x128xf32>
    %796 = vector.extract_strided_slice %13 {offsets = [0, 0], sizes = [8, 1], strides = [1, 1]} : vector<8x8xf32> to vector<8x1xf32>
    %797 = vector.extract_strided_slice %795 {offsets = [0, 0], sizes = [1, 128], strides = [1, 1]} : vector<8x128xf32> to vector<1x128xf32>
    %798 = vector.broadcast %796 : vector<8x1xf32> to vector<8x128xf32>
    %799 = vector.broadcast %797 : vector<1x128xf32> to vector<8x128xf32>
    %800 = arith.mulf %798, %799 : vector<8x128xf32>
    %801 = arith.addf %18, %800 : vector<8x128xf32>
    %802 = vector.extract_strided_slice %13 {offsets = [0, 1], sizes = [8, 1], strides = [1, 1]} : vector<8x8xf32> to vector<8x1xf32>
    %803 = vector.extract_strided_slice %795 {offsets = [1, 0], sizes = [1, 128], strides = [1, 1]} : vector<8x128xf32> to vector<1x128xf32>
    %804 = vector.broadcast %802 : vector<8x1xf32> to vector<8x128xf32>
    %805 = vector.broadcast %803 : vector<1x128xf32> to vector<8x128xf32>
    %806 = arith.mulf %804, %805 : vector<8x128xf32>
    %807 = arith.addf %801, %806 : vector<8x128xf32>
    %808 = vector.extract_strided_slice %13 {offsets = [0, 2], sizes = [8, 1], strides = [1, 1]} : vector<8x8xf32> to vector<8x1xf32>
    %809 = vector.extract_strided_slice %795 {offsets = [2, 0], sizes = [1, 128], strides = [1, 1]} : vector<8x128xf32> to vector<1x128xf32>
    %810 = vector.broadcast %808 : vector<8x1xf32> to vector<8x128xf32>
    %811 = vector.broadcast %809 : vector<1x128xf32> to vector<8x128xf32>
    %812 = arith.mulf %810, %811 : vector<8x128xf32>
    %813 = arith.addf %807, %812 : vector<8x128xf32>
    %814 = vector.extract_strided_slice %13 {offsets = [0, 3], sizes = [8, 1], strides = [1, 1]} : vector<8x8xf32> to vector<8x1xf32>
    %815 = vector.extract_strided_slice %795 {offsets = [3, 0], sizes = [1, 128], strides = [1, 1]} : vector<8x128xf32> to vector<1x128xf32>
    %816 = vector.broadcast %814 : vector<8x1xf32> to vector<8x128xf32>
    %817 = vector.broadcast %815 : vector<1x128xf32> to vector<8x128xf32>
    %818 = arith.mulf %816, %817 : vector<8x128xf32>
    %819 = arith.addf %813, %818 : vector<8x128xf32>
    %820 = vector.extract_strided_slice %13 {offsets = [0, 4], sizes = [8, 1], strides = [1, 1]} : vector<8x8xf32> to vector<8x1xf32>
    %821 = vector.extract_strided_slice %795 {offsets = [4, 0], sizes = [1, 128], strides = [1, 1]} : vector<8x128xf32> to vector<1x128xf32>
    %822 = vector.broadcast %820 : vector<8x1xf32> to vector<8x128xf32>
    %823 = vector.broadcast %821 : vector<1x128xf32> to vector<8x128xf32>
    %824 = arith.mulf %822, %823 : vector<8x128xf32>
    %825 = arith.addf %819, %824 : vector<8x128xf32>
    %826 = vector.extract_strided_slice %13 {offsets = [0, 5], sizes = [8, 1], strides = [1, 1]} : vector<8x8xf32> to vector<8x1xf32>
    %827 = vector.extract_strided_slice %795 {offsets = [5, 0], sizes = [1, 128], strides = [1, 1]} : vector<8x128xf32> to vector<1x128xf32>
    %828 = vector.broadcast %826 : vector<8x1xf32> to vector<8x128xf32>
    %829 = vector.broadcast %827 : vector<1x128xf32> to vector<8x128xf32>
    %830 = arith.mulf %828, %829 : vector<8x128xf32>
    %831 = arith.addf %825, %830 : vector<8x128xf32>
    %832 = vector.extract_strided_slice %13 {offsets = [0, 6], sizes = [8, 1], strides = [1, 1]} : vector<8x8xf32> to vector<8x1xf32>
    %833 = vector.extract_strided_slice %795 {offsets = [6, 0], sizes = [1, 128], strides = [1, 1]} : vector<8x128xf32> to vector<1x128xf32>
    %834 = vector.broadcast %832 : vector<8x1xf32> to vector<8x128xf32>
    %835 = vector.broadcast %833 : vector<1x128xf32> to vector<8x128xf32>
    %836 = arith.mulf %834, %835 : vector<8x128xf32>
    %837 = arith.addf %831, %836 : vector<8x128xf32>
    %838 = vector.extract_strided_slice %13 {offsets = [0, 7], sizes = [8, 1], strides = [1, 1]} : vector<8x8xf32> to vector<8x1xf32>
    %839 = vector.extract_strided_slice %795 {offsets = [7, 0], sizes = [1, 128], strides = [1, 1]} : vector<8x128xf32> to vector<1x128xf32>
    %840 = vector.broadcast %838 : vector<8x1xf32> to vector<8x128xf32>
    %841 = vector.broadcast %839 : vector<1x128xf32> to vector<8x128xf32>
    %842 = arith.mulf %840, %841 : vector<8x128xf32>
    %843 = arith.addf %837, %842 : vector<8x128xf32>
    %cst_106 = arith.constant 0.000000e+00 : f32
    %844 = vector.broadcast %cst_106 : f32 to vector<8x128xf32>
    %845 = arith.maximumf %843, %844 : vector<8x128xf32>
    %846 = vector.extract_strided_slice %14 {offsets = [0, 0], sizes = [4, 1], strides = [1, 1]} : vector<4x8xf32> to vector<4x1xf32>
    %847 = vector.extract_strided_slice %845 {offsets = [0, 0], sizes = [1, 128], strides = [1, 1]} : vector<8x128xf32> to vector<1x128xf32>
    %848 = vector.broadcast %846 : vector<4x1xf32> to vector<4x128xf32>
    %849 = vector.broadcast %847 : vector<1x128xf32> to vector<4x128xf32>
    %850 = arith.mulf %848, %849 : vector<4x128xf32>
    %851 = arith.addf %21, %850 : vector<4x128xf32>
    %852 = vector.extract_strided_slice %14 {offsets = [0, 1], sizes = [4, 1], strides = [1, 1]} : vector<4x8xf32> to vector<4x1xf32>
    %853 = vector.extract_strided_slice %845 {offsets = [1, 0], sizes = [1, 128], strides = [1, 1]} : vector<8x128xf32> to vector<1x128xf32>
    %854 = vector.broadcast %852 : vector<4x1xf32> to vector<4x128xf32>
    %855 = vector.broadcast %853 : vector<1x128xf32> to vector<4x128xf32>
    %856 = arith.mulf %854, %855 : vector<4x128xf32>
    %857 = arith.addf %851, %856 : vector<4x128xf32>
    %858 = vector.extract_strided_slice %14 {offsets = [0, 2], sizes = [4, 1], strides = [1, 1]} : vector<4x8xf32> to vector<4x1xf32>
    %859 = vector.extract_strided_slice %845 {offsets = [2, 0], sizes = [1, 128], strides = [1, 1]} : vector<8x128xf32> to vector<1x128xf32>
    %860 = vector.broadcast %858 : vector<4x1xf32> to vector<4x128xf32>
    %861 = vector.broadcast %859 : vector<1x128xf32> to vector<4x128xf32>
    %862 = arith.mulf %860, %861 : vector<4x128xf32>
    %863 = arith.addf %857, %862 : vector<4x128xf32>
    %864 = vector.extract_strided_slice %14 {offsets = [0, 3], sizes = [4, 1], strides = [1, 1]} : vector<4x8xf32> to vector<4x1xf32>
    %865 = vector.extract_strided_slice %845 {offsets = [3, 0], sizes = [1, 128], strides = [1, 1]} : vector<8x128xf32> to vector<1x128xf32>
    %866 = vector.broadcast %864 : vector<4x1xf32> to vector<4x128xf32>
    %867 = vector.broadcast %865 : vector<1x128xf32> to vector<4x128xf32>
    %868 = arith.mulf %866, %867 : vector<4x128xf32>
    %869 = arith.addf %863, %868 : vector<4x128xf32>
    %870 = vector.extract_strided_slice %14 {offsets = [0, 4], sizes = [4, 1], strides = [1, 1]} : vector<4x8xf32> to vector<4x1xf32>
    %871 = vector.extract_strided_slice %845 {offsets = [4, 0], sizes = [1, 128], strides = [1, 1]} : vector<8x128xf32> to vector<1x128xf32>
    %872 = vector.broadcast %870 : vector<4x1xf32> to vector<4x128xf32>
    %873 = vector.broadcast %871 : vector<1x128xf32> to vector<4x128xf32>
    %874 = arith.mulf %872, %873 : vector<4x128xf32>
    %875 = arith.addf %869, %874 : vector<4x128xf32>
    %876 = vector.extract_strided_slice %14 {offsets = [0, 5], sizes = [4, 1], strides = [1, 1]} : vector<4x8xf32> to vector<4x1xf32>
    %877 = vector.extract_strided_slice %845 {offsets = [5, 0], sizes = [1, 128], strides = [1, 1]} : vector<8x128xf32> to vector<1x128xf32>
    %878 = vector.broadcast %876 : vector<4x1xf32> to vector<4x128xf32>
    %879 = vector.broadcast %877 : vector<1x128xf32> to vector<4x128xf32>
    %880 = arith.mulf %878, %879 : vector<4x128xf32>
    %881 = arith.addf %875, %880 : vector<4x128xf32>
    %882 = vector.extract_strided_slice %14 {offsets = [0, 6], sizes = [4, 1], strides = [1, 1]} : vector<4x8xf32> to vector<4x1xf32>
    %883 = vector.extract_strided_slice %845 {offsets = [6, 0], sizes = [1, 128], strides = [1, 1]} : vector<8x128xf32> to vector<1x128xf32>
    %884 = vector.broadcast %882 : vector<4x1xf32> to vector<4x128xf32>
    %885 = vector.broadcast %883 : vector<1x128xf32> to vector<4x128xf32>
    %886 = arith.mulf %884, %885 : vector<4x128xf32>
    %887 = arith.addf %881, %886 : vector<4x128xf32>
    %888 = vector.extract_strided_slice %14 {offsets = [0, 7], sizes = [4, 1], strides = [1, 1]} : vector<4x8xf32> to vector<4x1xf32>
    %889 = vector.extract_strided_slice %845 {offsets = [7, 0], sizes = [1, 128], strides = [1, 1]} : vector<8x128xf32> to vector<1x128xf32>
    %890 = vector.broadcast %888 : vector<4x1xf32> to vector<4x128xf32>
    %891 = vector.broadcast %889 : vector<1x128xf32> to vector<4x128xf32>
    %892 = arith.mulf %890, %891 : vector<4x128xf32>
    %893 = arith.addf %887, %892 : vector<4x128xf32>
    %cst_107 = arith.constant 0.000000e+00 : f32
    %894 = vector.broadcast %cst_107 : f32 to vector<4x128xf32>
    %895 = arith.maximumf %893, %894 : vector<4x128xf32>
    %896 = vector.extract_strided_slice %15 {offsets = [0, 0], sizes = [2, 1], strides = [1, 1]} : vector<2x4xf32> to vector<2x1xf32>
    %897 = vector.extract_strided_slice %895 {offsets = [0, 0], sizes = [1, 128], strides = [1, 1]} : vector<4x128xf32> to vector<1x128xf32>
    %898 = vector.broadcast %896 : vector<2x1xf32> to vector<2x128xf32>
    %899 = vector.broadcast %897 : vector<1x128xf32> to vector<2x128xf32>
    %900 = arith.mulf %898, %899 : vector<2x128xf32>
    %901 = arith.addf %24, %900 : vector<2x128xf32>
    %902 = vector.extract_strided_slice %15 {offsets = [0, 1], sizes = [2, 1], strides = [1, 1]} : vector<2x4xf32> to vector<2x1xf32>
    %903 = vector.extract_strided_slice %895 {offsets = [1, 0], sizes = [1, 128], strides = [1, 1]} : vector<4x128xf32> to vector<1x128xf32>
    %904 = vector.broadcast %902 : vector<2x1xf32> to vector<2x128xf32>
    %905 = vector.broadcast %903 : vector<1x128xf32> to vector<2x128xf32>
    %906 = arith.mulf %904, %905 : vector<2x128xf32>
    %907 = arith.addf %901, %906 : vector<2x128xf32>
    %908 = vector.extract_strided_slice %15 {offsets = [0, 2], sizes = [2, 1], strides = [1, 1]} : vector<2x4xf32> to vector<2x1xf32>
    %909 = vector.extract_strided_slice %895 {offsets = [2, 0], sizes = [1, 128], strides = [1, 1]} : vector<4x128xf32> to vector<1x128xf32>
    %910 = vector.broadcast %908 : vector<2x1xf32> to vector<2x128xf32>
    %911 = vector.broadcast %909 : vector<1x128xf32> to vector<2x128xf32>
    %912 = arith.mulf %910, %911 : vector<2x128xf32>
    %913 = arith.addf %907, %912 : vector<2x128xf32>
    %914 = vector.extract_strided_slice %15 {offsets = [0, 3], sizes = [2, 1], strides = [1, 1]} : vector<2x4xf32> to vector<2x1xf32>
    %915 = vector.extract_strided_slice %895 {offsets = [3, 0], sizes = [1, 128], strides = [1, 1]} : vector<4x128xf32> to vector<1x128xf32>
    %916 = vector.broadcast %914 : vector<2x1xf32> to vector<2x128xf32>
    %917 = vector.broadcast %915 : vector<1x128xf32> to vector<2x128xf32>
    %918 = arith.mulf %916, %917 : vector<2x128xf32>
    %919 = arith.addf %913, %918 : vector<2x128xf32>
    %920 = vector.extract_strided_slice %919 {offsets = [0, 0], sizes = [1, 128], strides = [1, 1]} : vector<2x128xf32> to vector<1x128xf32>
    %921 = vector.extract_strided_slice %919 {offsets = [1, 0], sizes = [1, 128], strides = [1, 1]} : vector<2x128xf32> to vector<1x128xf32>
    %922 = arith.negf %920 : vector<1x128xf32>
    %923 = math.exp %922 : vector<1x128xf32>
    %cst_108 = arith.constant 1.000000e+00 : f32
    %924 = vector.broadcast %cst_108 : f32 to vector<1x128xf32>
    %925 = arith.addf %924, %923 : vector<1x128xf32>
    %926 = arith.divf %924, %925 : vector<1x128xf32>
    %927 = vector.broadcast %cst_25 : f32 to vector<1x128xf32>
    %928 = arith.addf %926, %927 : vector<1x128xf32>
    %929 = math.log %928 : vector<1x128xf32>
    %930 = arith.mulf %926, %929 : vector<1x128xf32>
    %cst_109 = arith.constant 1.000000e+00 : f32
    %931 = vector.broadcast %cst_109 : f32 to vector<1x128xf32>
    %932 = arith.subf %931, %926 : vector<1x128xf32>
    %cst_110 = arith.constant 1.000000e+00 : f32
    %933 = vector.broadcast %cst_110 : f32 to vector<1x128xf32>
    %934 = arith.subf %933, %926 : vector<1x128xf32>
    %935 = vector.broadcast %cst_25 : f32 to vector<1x128xf32>
    %936 = arith.addf %934, %935 : vector<1x128xf32>
    %937 = math.log %936 : vector<1x128xf32>
    %938 = arith.mulf %932, %937 : vector<1x128xf32>
    %939 = arith.addf %930, %938 : vector<1x128xf32>
    %cst_111 = arith.constant 0.000000e+00 : f32
    %940 = vector.broadcast %cst_111 : f32 to vector<1x128xf32>
    %941 = arith.subf %940, %939 : vector<1x128xf32>
    %942 = arith.index_cast %c4_i32 : i32 to index
    %c0_112 = arith.constant 0 : index
    %c0_113 = arith.constant 0 : index
    %943 = vector.load %arg12[%942, %c0_112, %c0_113] : memref<6x2x128xf32, #tpu.memory_space<vmem>>, vector<1x2x128xf32>
    %944 = vector.shape_cast %943 : vector<1x2x128xf32> to vector<2x128xf32>
    %945 = vector.extract_strided_slice %944 {offsets = [0, 0], sizes = [1, 128], strides = [1, 1]} : vector<2x128xf32> to vector<1x128xf32>
    %cst_114 = arith.constant 1.000000e-01 : f32
    %946 = vector.broadcast %cst_114 : f32 to vector<1x128xf32>
    %947 = arith.mulf %945, %946 : vector<1x128xf32>
    %948 = arith.addf %926, %947 : vector<1x128xf32>
    %cst_115 = arith.constant 0.00999999977 : f32
    %cst_116 = arith.constant 9.900000e-01 : f32
    %949 = vector.broadcast %cst_115 : f32 to vector<1x128xf32>
    %950 = arith.maximumf %949, %948 : vector<1x128xf32>
    %951 = vector.broadcast %cst_116 : f32 to vector<1x128xf32>
    %952 = arith.minimumf %951, %950 : vector<1x128xf32>
    %953 = vector.extract_strided_slice %944 {offsets = [1, 0], sizes = [1, 128], strides = [1, 1]} : vector<2x128xf32> to vector<1x128xf32>
    %954 = arith.cmpf olt, %953, %952 : vector<1x128xf32>
    %c5_i32_117 = arith.constant 5 : i32
    %955 = arith.cmpi eq, %c4_i32, %c5_i32_117 : i32
    %956 = vector.broadcast %955 : i1 to vector<1x128xi1>
    %957 = arith.ori %954, %956 : vector<1x128xi1>
    %958 = arith.andi %790, %957 : vector<1x128xi1>
    %cst_118 = arith.constant dense<true> : vector<1x128xi1>
    %959 = arith.xori %954, %cst_118 : vector<1x128xi1>
    %960 = arith.andi %790, %959 : vector<1x128xi1>
    %961 = arith.extui %958 : vector<1x128xi1> to vector<1x128xi32>
    %962 = arith.sitofp %961 : vector<1x128xi32> to vector<1x128xf32>
    %963 = arith.extui %960 : vector<1x128xi1> to vector<1x128xi32>
    %964 = arith.sitofp %963 : vector<1x128xi32> to vector<1x128xf32>
    %965 = arith.sitofp %c4_i32 : i32 to f32
    %cst_119 = arith.constant 2.000000e+00 : f32
    %966 = arith.addf %965, %cst_119 : f32
    %967 = arith.minimumf %966, %cst_26 : f32
    %968 = vector.broadcast %967 : f32 to vector<1x128xf32>
    %969 = arith.mulf %25, %968 : vector<1x128xf32>
    %970 = vector.broadcast %cst_25 : f32 to vector<1x128xf32>
    %971 = arith.addf %952, %970 : vector<1x128xf32>
    %972 = math.log %971 : vector<1x128xf32>
    %973 = tpu.concatenate %969, %972, %921, %941, %964, %26 in 0 : vector<1x128xf32>, vector<1x128xf32>, vector<1x128xf32>, vector<1x128xf32>, vector<1x128xf32>, vector<3x128xf32> -> vector<8x128xf32>
    %974 = tpu.concatenate %964, %962, %962, %962, %25, %26 in 0 : vector<1x128xf32>, vector<1x128xf32>, vector<1x128xf32>, vector<1x128xf32>, vector<1x128xf32>, vector<3x128xf32> -> vector<8x128xf32>
    %cst_120 = arith.constant 5.000000e-01 : f32
    %975 = vector.broadcast %cst_120 : f32 to vector<8x128xf32>
    %976 = arith.cmpf ogt, %974, %975 : vector<8x128xf32>
    %977 = arith.select %976, %973, %787 : vector<8x128xi1>, vector<8x128xf32>
    %c5_i32_121 = arith.constant 5 : i32
    %978 = vector.extract_strided_slice %977 {offsets = [4, 0], sizes = [1, 128], strides = [1, 1]} : vector<8x128xf32> to vector<1x128xf32>
    %cst_122 = arith.constant 0.000000e+00 : f32
    %979 = vector.broadcast %cst_122 : f32 to vector<1x128xf32>
    %980 = arith.cmpf ogt, %978, %979 : vector<1x128xf32>
    %c0_123 = arith.constant 0 : index
    %c0_124 = arith.constant 0 : index
    %981 = vector.load %arg1[%c0_123, %c0_124] : memref<128x128xf32, #tpu.memory_space<vmem>>, vector<128x128xf32>
    %cst_125 = arith.constant dense<0.000000e+00> : vector<8x128xf32>
    %982 = tpu.matmul %795, %981, %cst_125 {dimension_numbers = #tpu.dot_dimension_numbers<[1], [0], [0], [1], [0, 0, 1, 1], [], []>} : vector<8x128xf32>, vector<128x128xf32>, vector<8x128xf32> -> vector<8x128xf32>
    %983 = vector.shape_cast %980 : vector<1x128xi1> to vector<1x128xi1>
    %984 = vector.broadcast %983 : vector<1x128xi1> to vector<8x128xi1>
    %985 = arith.select %984, %982, %795 : vector<8x128xi1>, vector<8x128xf32>
    %986 = vector.extract_strided_slice %13 {offsets = [0, 0], sizes = [8, 1], strides = [1, 1]} : vector<8x8xf32> to vector<8x1xf32>
    %987 = vector.extract_strided_slice %985 {offsets = [0, 0], sizes = [1, 128], strides = [1, 1]} : vector<8x128xf32> to vector<1x128xf32>
    %988 = vector.broadcast %986 : vector<8x1xf32> to vector<8x128xf32>
    %989 = vector.broadcast %987 : vector<1x128xf32> to vector<8x128xf32>
    %990 = arith.mulf %988, %989 : vector<8x128xf32>
    %991 = arith.addf %18, %990 : vector<8x128xf32>
    %992 = vector.extract_strided_slice %13 {offsets = [0, 1], sizes = [8, 1], strides = [1, 1]} : vector<8x8xf32> to vector<8x1xf32>
    %993 = vector.extract_strided_slice %985 {offsets = [1, 0], sizes = [1, 128], strides = [1, 1]} : vector<8x128xf32> to vector<1x128xf32>
    %994 = vector.broadcast %992 : vector<8x1xf32> to vector<8x128xf32>
    %995 = vector.broadcast %993 : vector<1x128xf32> to vector<8x128xf32>
    %996 = arith.mulf %994, %995 : vector<8x128xf32>
    %997 = arith.addf %991, %996 : vector<8x128xf32>
    %998 = vector.extract_strided_slice %13 {offsets = [0, 2], sizes = [8, 1], strides = [1, 1]} : vector<8x8xf32> to vector<8x1xf32>
    %999 = vector.extract_strided_slice %985 {offsets = [2, 0], sizes = [1, 128], strides = [1, 1]} : vector<8x128xf32> to vector<1x128xf32>
    %1000 = vector.broadcast %998 : vector<8x1xf32> to vector<8x128xf32>
    %1001 = vector.broadcast %999 : vector<1x128xf32> to vector<8x128xf32>
    %1002 = arith.mulf %1000, %1001 : vector<8x128xf32>
    %1003 = arith.addf %997, %1002 : vector<8x128xf32>
    %1004 = vector.extract_strided_slice %13 {offsets = [0, 3], sizes = [8, 1], strides = [1, 1]} : vector<8x8xf32> to vector<8x1xf32>
    %1005 = vector.extract_strided_slice %985 {offsets = [3, 0], sizes = [1, 128], strides = [1, 1]} : vector<8x128xf32> to vector<1x128xf32>
    %1006 = vector.broadcast %1004 : vector<8x1xf32> to vector<8x128xf32>
    %1007 = vector.broadcast %1005 : vector<1x128xf32> to vector<8x128xf32>
    %1008 = arith.mulf %1006, %1007 : vector<8x128xf32>
    %1009 = arith.addf %1003, %1008 : vector<8x128xf32>
    %1010 = vector.extract_strided_slice %13 {offsets = [0, 4], sizes = [8, 1], strides = [1, 1]} : vector<8x8xf32> to vector<8x1xf32>
    %1011 = vector.extract_strided_slice %985 {offsets = [4, 0], sizes = [1, 128], strides = [1, 1]} : vector<8x128xf32> to vector<1x128xf32>
    %1012 = vector.broadcast %1010 : vector<8x1xf32> to vector<8x128xf32>
    %1013 = vector.broadcast %1011 : vector<1x128xf32> to vector<8x128xf32>
    %1014 = arith.mulf %1012, %1013 : vector<8x128xf32>
    %1015 = arith.addf %1009, %1014 : vector<8x128xf32>
    %1016 = vector.extract_strided_slice %13 {offsets = [0, 5], sizes = [8, 1], strides = [1, 1]} : vector<8x8xf32> to vector<8x1xf32>
    %1017 = vector.extract_strided_slice %985 {offsets = [5, 0], sizes = [1, 128], strides = [1, 1]} : vector<8x128xf32> to vector<1x128xf32>
    %1018 = vector.broadcast %1016 : vector<8x1xf32> to vector<8x128xf32>
    %1019 = vector.broadcast %1017 : vector<1x128xf32> to vector<8x128xf32>
    %1020 = arith.mulf %1018, %1019 : vector<8x128xf32>
    %1021 = arith.addf %1015, %1020 : vector<8x128xf32>
    %1022 = vector.extract_strided_slice %13 {offsets = [0, 6], sizes = [8, 1], strides = [1, 1]} : vector<8x8xf32> to vector<8x1xf32>
    %1023 = vector.extract_strided_slice %985 {offsets = [6, 0], sizes = [1, 128], strides = [1, 1]} : vector<8x128xf32> to vector<1x128xf32>
    %1024 = vector.broadcast %1022 : vector<8x1xf32> to vector<8x128xf32>
    %1025 = vector.broadcast %1023 : vector<1x128xf32> to vector<8x128xf32>
    %1026 = arith.mulf %1024, %1025 : vector<8x128xf32>
    %1027 = arith.addf %1021, %1026 : vector<8x128xf32>
    %1028 = vector.extract_strided_slice %13 {offsets = [0, 7], sizes = [8, 1], strides = [1, 1]} : vector<8x8xf32> to vector<8x1xf32>
    %1029 = vector.extract_strided_slice %985 {offsets = [7, 0], sizes = [1, 128], strides = [1, 1]} : vector<8x128xf32> to vector<1x128xf32>
    %1030 = vector.broadcast %1028 : vector<8x1xf32> to vector<8x128xf32>
    %1031 = vector.broadcast %1029 : vector<1x128xf32> to vector<8x128xf32>
    %1032 = arith.mulf %1030, %1031 : vector<8x128xf32>
    %1033 = arith.addf %1027, %1032 : vector<8x128xf32>
    %cst_126 = arith.constant 0.000000e+00 : f32
    %1034 = vector.broadcast %cst_126 : f32 to vector<8x128xf32>
    %1035 = arith.maximumf %1033, %1034 : vector<8x128xf32>
    %1036 = vector.extract_strided_slice %14 {offsets = [0, 0], sizes = [4, 1], strides = [1, 1]} : vector<4x8xf32> to vector<4x1xf32>
    %1037 = vector.extract_strided_slice %1035 {offsets = [0, 0], sizes = [1, 128], strides = [1, 1]} : vector<8x128xf32> to vector<1x128xf32>
    %1038 = vector.broadcast %1036 : vector<4x1xf32> to vector<4x128xf32>
    %1039 = vector.broadcast %1037 : vector<1x128xf32> to vector<4x128xf32>
    %1040 = arith.mulf %1038, %1039 : vector<4x128xf32>
    %1041 = arith.addf %21, %1040 : vector<4x128xf32>
    %1042 = vector.extract_strided_slice %14 {offsets = [0, 1], sizes = [4, 1], strides = [1, 1]} : vector<4x8xf32> to vector<4x1xf32>
    %1043 = vector.extract_strided_slice %1035 {offsets = [1, 0], sizes = [1, 128], strides = [1, 1]} : vector<8x128xf32> to vector<1x128xf32>
    %1044 = vector.broadcast %1042 : vector<4x1xf32> to vector<4x128xf32>
    %1045 = vector.broadcast %1043 : vector<1x128xf32> to vector<4x128xf32>
    %1046 = arith.mulf %1044, %1045 : vector<4x128xf32>
    %1047 = arith.addf %1041, %1046 : vector<4x128xf32>
    %1048 = vector.extract_strided_slice %14 {offsets = [0, 2], sizes = [4, 1], strides = [1, 1]} : vector<4x8xf32> to vector<4x1xf32>
    %1049 = vector.extract_strided_slice %1035 {offsets = [2, 0], sizes = [1, 128], strides = [1, 1]} : vector<8x128xf32> to vector<1x128xf32>
    %1050 = vector.broadcast %1048 : vector<4x1xf32> to vector<4x128xf32>
    %1051 = vector.broadcast %1049 : vector<1x128xf32> to vector<4x128xf32>
    %1052 = arith.mulf %1050, %1051 : vector<4x128xf32>
    %1053 = arith.addf %1047, %1052 : vector<4x128xf32>
    %1054 = vector.extract_strided_slice %14 {offsets = [0, 3], sizes = [4, 1], strides = [1, 1]} : vector<4x8xf32> to vector<4x1xf32>
    %1055 = vector.extract_strided_slice %1035 {offsets = [3, 0], sizes = [1, 128], strides = [1, 1]} : vector<8x128xf32> to vector<1x128xf32>
    %1056 = vector.broadcast %1054 : vector<4x1xf32> to vector<4x128xf32>
    %1057 = vector.broadcast %1055 : vector<1x128xf32> to vector<4x128xf32>
    %1058 = arith.mulf %1056, %1057 : vector<4x128xf32>
    %1059 = arith.addf %1053, %1058 : vector<4x128xf32>
    %1060 = vector.extract_strided_slice %14 {offsets = [0, 4], sizes = [4, 1], strides = [1, 1]} : vector<4x8xf32> to vector<4x1xf32>
    %1061 = vector.extract_strided_slice %1035 {offsets = [4, 0], sizes = [1, 128], strides = [1, 1]} : vector<8x128xf32> to vector<1x128xf32>
    %1062 = vector.broadcast %1060 : vector<4x1xf32> to vector<4x128xf32>
    %1063 = vector.broadcast %1061 : vector<1x128xf32> to vector<4x128xf32>
    %1064 = arith.mulf %1062, %1063 : vector<4x128xf32>
    %1065 = arith.addf %1059, %1064 : vector<4x128xf32>
    %1066 = vector.extract_strided_slice %14 {offsets = [0, 5], sizes = [4, 1], strides = [1, 1]} : vector<4x8xf32> to vector<4x1xf32>
    %1067 = vector.extract_strided_slice %1035 {offsets = [5, 0], sizes = [1, 128], strides = [1, 1]} : vector<8x128xf32> to vector<1x128xf32>
    %1068 = vector.broadcast %1066 : vector<4x1xf32> to vector<4x128xf32>
    %1069 = vector.broadcast %1067 : vector<1x128xf32> to vector<4x128xf32>
    %1070 = arith.mulf %1068, %1069 : vector<4x128xf32>
    %1071 = arith.addf %1065, %1070 : vector<4x128xf32>
    %1072 = vector.extract_strided_slice %14 {offsets = [0, 6], sizes = [4, 1], strides = [1, 1]} : vector<4x8xf32> to vector<4x1xf32>
    %1073 = vector.extract_strided_slice %1035 {offsets = [6, 0], sizes = [1, 128], strides = [1, 1]} : vector<8x128xf32> to vector<1x128xf32>
    %1074 = vector.broadcast %1072 : vector<4x1xf32> to vector<4x128xf32>
    %1075 = vector.broadcast %1073 : vector<1x128xf32> to vector<4x128xf32>
    %1076 = arith.mulf %1074, %1075 : vector<4x128xf32>
    %1077 = arith.addf %1071, %1076 : vector<4x128xf32>
    %1078 = vector.extract_strided_slice %14 {offsets = [0, 7], sizes = [4, 1], strides = [1, 1]} : vector<4x8xf32> to vector<4x1xf32>
    %1079 = vector.extract_strided_slice %1035 {offsets = [7, 0], sizes = [1, 128], strides = [1, 1]} : vector<8x128xf32> to vector<1x128xf32>
    %1080 = vector.broadcast %1078 : vector<4x1xf32> to vector<4x128xf32>
    %1081 = vector.broadcast %1079 : vector<1x128xf32> to vector<4x128xf32>
    %1082 = arith.mulf %1080, %1081 : vector<4x128xf32>
    %1083 = arith.addf %1077, %1082 : vector<4x128xf32>
    %cst_127 = arith.constant 0.000000e+00 : f32
    %1084 = vector.broadcast %cst_127 : f32 to vector<4x128xf32>
    %1085 = arith.maximumf %1083, %1084 : vector<4x128xf32>
    %1086 = vector.extract_strided_slice %15 {offsets = [0, 0], sizes = [2, 1], strides = [1, 1]} : vector<2x4xf32> to vector<2x1xf32>
    %1087 = vector.extract_strided_slice %1085 {offsets = [0, 0], sizes = [1, 128], strides = [1, 1]} : vector<4x128xf32> to vector<1x128xf32>
    %1088 = vector.broadcast %1086 : vector<2x1xf32> to vector<2x128xf32>
    %1089 = vector.broadcast %1087 : vector<1x128xf32> to vector<2x128xf32>
    %1090 = arith.mulf %1088, %1089 : vector<2x128xf32>
    %1091 = arith.addf %24, %1090 : vector<2x128xf32>
    %1092 = vector.extract_strided_slice %15 {offsets = [0, 1], sizes = [2, 1], strides = [1, 1]} : vector<2x4xf32> to vector<2x1xf32>
    %1093 = vector.extract_strided_slice %1085 {offsets = [1, 0], sizes = [1, 128], strides = [1, 1]} : vector<4x128xf32> to vector<1x128xf32>
    %1094 = vector.broadcast %1092 : vector<2x1xf32> to vector<2x128xf32>
    %1095 = vector.broadcast %1093 : vector<1x128xf32> to vector<2x128xf32>
    %1096 = arith.mulf %1094, %1095 : vector<2x128xf32>
    %1097 = arith.addf %1091, %1096 : vector<2x128xf32>
    %1098 = vector.extract_strided_slice %15 {offsets = [0, 2], sizes = [2, 1], strides = [1, 1]} : vector<2x4xf32> to vector<2x1xf32>
    %1099 = vector.extract_strided_slice %1085 {offsets = [2, 0], sizes = [1, 128], strides = [1, 1]} : vector<4x128xf32> to vector<1x128xf32>
    %1100 = vector.broadcast %1098 : vector<2x1xf32> to vector<2x128xf32>
    %1101 = vector.broadcast %1099 : vector<1x128xf32> to vector<2x128xf32>
    %1102 = arith.mulf %1100, %1101 : vector<2x128xf32>
    %1103 = arith.addf %1097, %1102 : vector<2x128xf32>
    %1104 = vector.extract_strided_slice %15 {offsets = [0, 3], sizes = [2, 1], strides = [1, 1]} : vector<2x4xf32> to vector<2x1xf32>
    %1105 = vector.extract_strided_slice %1085 {offsets = [3, 0], sizes = [1, 128], strides = [1, 1]} : vector<4x128xf32> to vector<1x128xf32>
    %1106 = vector.broadcast %1104 : vector<2x1xf32> to vector<2x128xf32>
    %1107 = vector.broadcast %1105 : vector<1x128xf32> to vector<2x128xf32>
    %1108 = arith.mulf %1106, %1107 : vector<2x128xf32>
    %1109 = arith.addf %1103, %1108 : vector<2x128xf32>
    %1110 = vector.extract_strided_slice %1109 {offsets = [0, 0], sizes = [1, 128], strides = [1, 1]} : vector<2x128xf32> to vector<1x128xf32>
    %1111 = vector.extract_strided_slice %1109 {offsets = [1, 0], sizes = [1, 128], strides = [1, 1]} : vector<2x128xf32> to vector<1x128xf32>
    %1112 = arith.negf %1110 : vector<1x128xf32>
    %1113 = math.exp %1112 : vector<1x128xf32>
    %cst_128 = arith.constant 1.000000e+00 : f32
    %1114 = vector.broadcast %cst_128 : f32 to vector<1x128xf32>
    %1115 = arith.addf %1114, %1113 : vector<1x128xf32>
    %1116 = arith.divf %1114, %1115 : vector<1x128xf32>
    %1117 = vector.broadcast %cst_25 : f32 to vector<1x128xf32>
    %1118 = arith.addf %1116, %1117 : vector<1x128xf32>
    %1119 = math.log %1118 : vector<1x128xf32>
    %1120 = arith.mulf %1116, %1119 : vector<1x128xf32>
    %cst_129 = arith.constant 1.000000e+00 : f32
    %1121 = vector.broadcast %cst_129 : f32 to vector<1x128xf32>
    %1122 = arith.subf %1121, %1116 : vector<1x128xf32>
    %cst_130 = arith.constant 1.000000e+00 : f32
    %1123 = vector.broadcast %cst_130 : f32 to vector<1x128xf32>
    %1124 = arith.subf %1123, %1116 : vector<1x128xf32>
    %1125 = vector.broadcast %cst_25 : f32 to vector<1x128xf32>
    %1126 = arith.addf %1124, %1125 : vector<1x128xf32>
    %1127 = math.log %1126 : vector<1x128xf32>
    %1128 = arith.mulf %1122, %1127 : vector<1x128xf32>
    %1129 = arith.addf %1120, %1128 : vector<1x128xf32>
    %cst_131 = arith.constant 0.000000e+00 : f32
    %1130 = vector.broadcast %cst_131 : f32 to vector<1x128xf32>
    %1131 = arith.subf %1130, %1129 : vector<1x128xf32>
    %1132 = arith.index_cast %c5_i32_121 : i32 to index
    %c0_132 = arith.constant 0 : index
    %c0_133 = arith.constant 0 : index
    %1133 = vector.load %arg12[%1132, %c0_132, %c0_133] : memref<6x2x128xf32, #tpu.memory_space<vmem>>, vector<1x2x128xf32>
    %1134 = vector.shape_cast %1133 : vector<1x2x128xf32> to vector<2x128xf32>
    %1135 = vector.extract_strided_slice %1134 {offsets = [0, 0], sizes = [1, 128], strides = [1, 1]} : vector<2x128xf32> to vector<1x128xf32>
    %cst_134 = arith.constant 1.000000e-01 : f32
    %1136 = vector.broadcast %cst_134 : f32 to vector<1x128xf32>
    %1137 = arith.mulf %1135, %1136 : vector<1x128xf32>
    %1138 = arith.addf %1116, %1137 : vector<1x128xf32>
    %cst_135 = arith.constant 0.00999999977 : f32
    %cst_136 = arith.constant 9.900000e-01 : f32
    %1139 = vector.broadcast %cst_135 : f32 to vector<1x128xf32>
    %1140 = arith.maximumf %1139, %1138 : vector<1x128xf32>
    %1141 = vector.broadcast %cst_136 : f32 to vector<1x128xf32>
    %1142 = arith.minimumf %1141, %1140 : vector<1x128xf32>
    %1143 = vector.extract_strided_slice %1134 {offsets = [1, 0], sizes = [1, 128], strides = [1, 1]} : vector<2x128xf32> to vector<1x128xf32>
    %1144 = arith.cmpf olt, %1143, %1142 : vector<1x128xf32>
    %c5_i32_137 = arith.constant 5 : i32
    %1145 = arith.cmpi eq, %c5_i32_121, %c5_i32_137 : i32
    %1146 = vector.broadcast %1145 : i1 to vector<1x128xi1>
    %1147 = arith.ori %1144, %1146 : vector<1x128xi1>
    %1148 = arith.andi %980, %1147 : vector<1x128xi1>
    %cst_138 = arith.constant dense<true> : vector<1x128xi1>
    %1149 = arith.xori %1144, %cst_138 : vector<1x128xi1>
    %1150 = arith.andi %980, %1149 : vector<1x128xi1>
    %1151 = arith.extui %1148 : vector<1x128xi1> to vector<1x128xi32>
    %1152 = arith.sitofp %1151 : vector<1x128xi32> to vector<1x128xf32>
    %1153 = arith.extui %1150 : vector<1x128xi1> to vector<1x128xi32>
    %1154 = arith.sitofp %1153 : vector<1x128xi32> to vector<1x128xf32>
    %1155 = arith.sitofp %c5_i32_121 : i32 to f32
    %cst_139 = arith.constant 2.000000e+00 : f32
    %1156 = arith.addf %1155, %cst_139 : f32
    %1157 = arith.minimumf %1156, %cst_26 : f32
    %1158 = vector.broadcast %1157 : f32 to vector<1x128xf32>
    %1159 = arith.mulf %25, %1158 : vector<1x128xf32>
    %1160 = vector.broadcast %cst_25 : f32 to vector<1x128xf32>
    %1161 = arith.addf %1142, %1160 : vector<1x128xf32>
    %1162 = math.log %1161 : vector<1x128xf32>
    %1163 = tpu.concatenate %1159, %1162, %1111, %1131, %1154, %26 in 0 : vector<1x128xf32>, vector<1x128xf32>, vector<1x128xf32>, vector<1x128xf32>, vector<1x128xf32>, vector<3x128xf32> -> vector<8x128xf32>
    %1164 = tpu.concatenate %1154, %1152, %1152, %1152, %25, %26 in 0 : vector<1x128xf32>, vector<1x128xf32>, vector<1x128xf32>, vector<1x128xf32>, vector<1x128xf32>, vector<3x128xf32> -> vector<8x128xf32>
    %cst_140 = arith.constant 5.000000e-01 : f32
    %1165 = vector.broadcast %cst_140 : f32 to vector<8x128xf32>
    %1166 = arith.cmpf ogt, %1164, %1165 : vector<8x128xf32>
    %1167 = arith.select %1166, %1163, %977 : vector<8x128xi1>, vector<8x128xf32>
    %c6_i32 = arith.constant 6 : i32
    %cst_141 = arith.constant dense<0xFF800000> : vector<128xf32>
    %1168 = vector.multi_reduction <maximumf>, %985, %cst_141 [0] : vector<8x128xf32> to vector<128xf32>
    %1169 = vector.shape_cast %1168 : vector<128xf32> to vector<1x128xf32>
    %1170 = vector.broadcast %1169 : vector<1x128xf32> to vector<8x128xf32>
    %1171 = arith.subf %985, %1170 : vector<8x128xf32>
    %1172 = math.exp %1171 : vector<8x128xf32>
    %cst_142 = arith.constant dense<0.000000e+00> : vector<128xf32>
    %1173 = vector.multi_reduction <add>, %1172, %cst_142 [0] : vector<8x128xf32> to vector<128xf32>
    %1174 = vector.shape_cast %1173 : vector<128xf32> to vector<1x128xf32>
    %1175 = math.log %1174 : vector<1x128xf32>
    %1176 = vector.broadcast %1175 : vector<1x128xf32> to vector<8x128xf32>
    %1177 = arith.subf %1171, %1176 : vector<8x128xf32>
    %c0_143 = arith.constant 0 : index
    %c0_144 = arith.constant 0 : index
    %1178 = vector.load %arg13[%c0_143, %c0_144] : memref<8x128xf32, #tpu.memory_space<vmem>>, vector<8x128xf32>
    tpu.vector_store %arg13[%c0_143, %c0_144], %1177 {strides = array<i32>} : memref<8x128xf32, #tpu.memory_space<vmem>>, vector<8x128xf32>,
    %c0_145 = arith.constant 0 : index
    %c0_146 = arith.constant 0 : index
    %1179 = vector.load %arg14[%c0_145, %c0_146] : memref<8x128xf32, #tpu.memory_space<vmem>>, vector<8x128xf32>
    tpu.vector_store %arg14[%c0_145, %c0_146], %1167 {strides = array<i32>} : memref<8x128xf32, #tpu.memory_space<vmem>>, vector<8x128xf32>,
    return
  }
}

</mosaic_0001>

<llo_original>
// kernel: tpu_custom_call.1
$region0: #{tpu_custom_call.1}
  #allocation0 [shape = 'u32[]', space=smem, size = 0x4, offset = 0x4, fixed_abs, tag = 'smem constant byte address 0x4 - core index']
  #allocation1 [shape = 'u32[144,128]{1,0:T(1,128)}', space=vmem, size = 0x12000, scoped, tag = 'internal scratch']
  %s0 = inlined_call_operand.vmem [shape: f32[16,128], index: 0, kind: input, shape index: {}]
  %s1 = inlined_call_operand.hbm [shape: f32[128,128], index: 1, kind: input, shape index: {}]
  %s2 = inlined_call_operand.vmem [shape: f32[32,16], index: 2, kind: input, shape index: {}]
  %s3 = inlined_call_operand.vmem [shape: f32[32,1], index: 3, kind: input, shape index: {}]
  %s4 = inlined_call_operand.vmem [shape: f32[8,32], index: 4, kind: input, shape index: {}]
  %s5 = inlined_call_operand.vmem [shape: f32[8,1], index: 5, kind: input, shape index: {}]
  %s6 = inlined_call_operand.vmem [shape: f32[8,8], index: 6, kind: input, shape index: {}]
  %s7 = inlined_call_operand.vmem [shape: f32[8,1], index: 7, kind: input, shape index: {}]
  %s8 = inlined_call_operand.vmem [shape: f32[4,8], index: 8, kind: input, shape index: {}]
  %s9 = inlined_call_operand.vmem [shape: f32[4,1], index: 9, kind: input, shape index: {}]
  %s10 = inlined_call_operand.vmem [shape: f32[2,4], index: 10, kind: input, shape index: {}]
  %s11 = inlined_call_operand.vmem [shape: f32[2,1], index: 11, kind: input, shape index: {}]
  %s12 = inlined_call_operand.vmem [shape: f32[6,2,128], index: 12, kind: input, shape index: {}]
  %s13 = inlined_call_operand.hbm [shape: f32[8,128], index: 13, kind: output, shape index: {0}]
  %s14 = inlined_call_operand.hbm [shape: f32[8,128], index: 14, kind: output, shape index: {1}]
  %15 = xla_tuple %s13, %s14
  %s16 = sld [smem:[#allocation0]]
  $region74: #{tpu_custom_call.1} parent=0
    _
  %s18 = ssub.s32 1, %s16
  %s19 = scalar_select 0, %s18, %s16
  $region1: #{tpu_custom_call.1} parent=0
    #allocation2 [shape = 'u8[65536]{0}', space=vmem, size = 0x10000, scoped, tag = 'input window, operand 1, single buffered']
    #allocation3 [shape = 's32[1]{0}', space=sflag, size = 0x4, scoped, tag = 'scoped memory for tpu_custom_call.1']
    #allocation4 [shape = 's32[1]{0}', space=sflag, size = 0x4, scoped, tag = 'scoped memory for tpu_custom_call.1']
    #allocation5 [shape = 'u8[4096]{0}', space=vmem, size = 0x1000, scoped, tag = 'output window, operand 0, single buffered']
    #allocation6 [shape = 'u8[4096]{0}', space=vmem, size = 0x1000, scoped, tag = 'output window, operand 1, single buffered']
    #allocation7 [shape = 's32[1]{0}', space=sflag, size = 0x4, scoped, tag = 'scoped memory for tpu_custom_call.1']
    %20 = vsyncpa [#allocation3], 0
    %21 = vsyncpa [#allocation4], 0
    %22 = vsyncpa [#allocation7], 0
    // Predicated region
    $region2: #{tpu_custom_call.1} parent=1 // pred_check
      _
    $region3: #{tpu_custom_call.1} parent=1 // pred_check_branch
      %24 = sbr.rel (0) target = $region5
    $region4: #{tpu_custom_call.1} parent=1 // pred_region
      _
    $region5: #{tpu_custom_call.1} parent=1 // pred_fallthru
      _
    // Predicated region
    $region6: #{tpu_custom_call.1} parent=1 // pred_check
      _
    $region7: #{tpu_custom_call.1} parent=1 // pred_check_branch
      %26 = sbr.rel (0) target = $region9
    $region8: #{tpu_custom_call.1} parent=1 // pred_region
      %s28 = ssub.s32 2048, 2048
      %29 = vsyncadd [#allocation3], %s28
      %s30 = sshll.u32 [#allocation2], 4
      %s31 = int_to_ptr.vmem [resolvable:$true] %s30
      %36 = dma.hbm_to_vmem [thread:$0]  %s1, 2048, %s31, [#allocation3], 128, 128, 8
    $region9: #{tpu_custom_call.1} parent=1 // pred_fallthru
      _
    // Predicated region
    $region10: #{tpu_custom_call.1} parent=1 // pred_check
      _
    $region11: #{tpu_custom_call.1} parent=1 // pred_check_branch
      %38 = sbr.rel (0) target = $region13
    $region12: #{tpu_custom_call.1} parent=1 // pred_region
      _
    $region13: #{tpu_custom_call.1} parent=1 // pred_fallthru
      _
    // Predicated region
    $region14: #{tpu_custom_call.1} parent=1 // pred_check
      _
    $region15: #{tpu_custom_call.1} parent=1 // pred_check_branch
      %40 = sbr.rel (0) target = $region17
    $region16: #{tpu_custom_call.1} parent=1 // pred_region
      _
    $region17: #{tpu_custom_call.1} parent=1 // pred_fallthru
      _
    // Predicated region
    $region18: #{tpu_custom_call.1} parent=1 // pred_check
      _
    $region19: #{tpu_custom_call.1} parent=1 // pred_check_branch
      %42 = sbr.rel (0) target = $region21
    $region20: #{tpu_custom_call.1} parent=1 // pred_region
      _
    $region21: #{tpu_custom_call.1} parent=1 // pred_fallthru
      _
    // Predicated region
    $region22: #{tpu_custom_call.1} parent=1 // pred_check
      _
    $region23: #{tpu_custom_call.1} parent=1 // pred_check_branch
      %44 = sbr.rel (0) target = $region25
    $region24: #{tpu_custom_call.1} parent=1 // pred_region
      _
    $region25: #{tpu_custom_call.1} parent=1 // pred_fallthru
      _
    // Predicated region
    $region26: #{tpu_custom_call.1} parent=1 // pred_check
      _
    $region27: #{tpu_custom_call.1} parent=1 // pred_check_branch
      %46 = sbr.rel (0) target = $region29
    $region28: #{tpu_custom_call.1} parent=1 // pred_region
      _
    $region29: #{tpu_custom_call.1} parent=1 // pred_fallthru
      _
    // Predicated region
    $region30: #{tpu_custom_call.1} parent=1 // pred_check
      _
    $region31: #{tpu_custom_call.1} parent=1 // pred_check_branch
      %48 = sbr.rel (0) target = $region33
    $region32: #{tpu_custom_call.1} parent=1 // pred_region
      _
    $region33: #{tpu_custom_call.1} parent=1 // pred_fallthru
      _
    // Predicated region
    $region34: #{tpu_custom_call.1} parent=1 // pred_check
      _
    $region35: #{tpu_custom_call.1} parent=1 // pred_check_branch
      %50 = sbr.rel (0) target = $region37
    $region36: #{tpu_custom_call.1} parent=1 // pred_region
      _
    $region37: #{tpu_custom_call.1} parent=1 // pred_fallthru
      _
    // Predicated region
    $region38: #{tpu_custom_call.1} parent=1 // pred_check
      _
    $region39: #{tpu_custom_call.1} parent=1 // pred_check_branch
      %52 = sbr.rel (0) target = $region41
    $region40: #{tpu_custom_call.1} parent=1 // pred_region
      _
    $region41: #{tpu_custom_call.1} parent=1 // pred_fallthru
      _
    // Predicated region
    $region42: #{tpu_custom_call.1} parent=1 // pred_check
      _
    $region43: #{tpu_custom_call.1} parent=1 // pred_check_branch
      %54 = sbr.rel (0) target = $region45
    $region44: #{tpu_custom_call.1} parent=1 // pred_region
      _
    $region45: #{tpu_custom_call.1} parent=1 // pred_fallthru
      _
    // Predicated region
    $region46: #{tpu_custom_call.1} parent=1 // pred_check
      _
    $region47: #{tpu_custom_call.1} parent=1 // pred_check_branch
      %56 = sbr.rel (0) target = $region49
    $region48: #{tpu_custom_call.1} parent=1 // pred_region
      _
    $region49: #{tpu_custom_call.1} parent=1 // pred_fallthru
      _
    // Predicated region
    $region50: #{tpu_custom_call.1} parent=1 // pred_check
      _
    $region51: #{tpu_custom_call.1} parent=1 // pred_check_branch
      %58 = sbr.rel (0) target = $region53
    $region52: #{tpu_custom_call.1} parent=1 // pred_region
      _
    $region53: #{tpu_custom_call.1} parent=1 // pred_fallthru
      _
    // Predicated region
    $region54: #{tpu_custom_call.1} parent=1 // pred_check
      _
    $region55: #{tpu_custom_call.1} parent=1 // pred_check_branch
      %60 = sbr.rel (0) target = $region57
    $region56: #{tpu_custom_call.1} parent=1 // pred_region
      %61 = dma.done [#allocation3], 2048
    $region57: #{tpu_custom_call.1} parent=1 // pred_fallthru
      _
    %v62 = vld [vmem:[%s0] sm:$0xff]
    %v63 = vld [vmem:[%s0 + $0x8] sm:$0xff]
    %v64 = vld [vmem:[%s2] sm:$0xff]
    %v65 = vld [vmem:[%s2 + $0x8] sm:$0xff]
    %v66 = vld [vmem:[%s2 + $0x10] sm:$0xff]
    %v67 = vld [vmem:[%s2 + $0x18] sm:$0xff]
    %v68 = vld [vmem:[%s3] sm:$0xff]
    %v69 = vld [vmem:[%s3 + $0x8] sm:$0xff]
    %v70 = vld [vmem:[%s3 + $0x10] sm:$0xff]
    %v71 = vld [vmem:[%s3 + $0x18] sm:$0xff]
    %73 = vset.pattern.permute.xlu0 0
    %74 = vperm.xlu0 %73, %v68
    %v75 = vpop.permute.xlu0 %74
    %78 = vset.pattern.permute.xlu0 0
    %79 = vperm.xlu0 %78, %v69
    %v80 = vpop.permute.xlu0 %79
    %83 = vset.pattern.permute.xlu0 0
    %84 = vperm.xlu0 %83, %v70
    %v85 = vpop.permute.xlu0 %84
    %88 = vset.pattern.permute.xlu0 0
    %89 = vperm.xlu0 %88, %v71
    %v90 = vpop.permute.xlu0 %89
    %vm92 = vcmask 130048
    %v94 = vsel %vm92, %v64, 0
    %v97 = vsel %vm92, %v65, 0
    %v100 = vsel %vm92, %v66, 0
    %v103 = vsel %vm92, %v67, 0
    %105 = vmatprep.subr.mxu0 0.0
    %106 = vmatpush1.msra.mxu0 0.0
    %107 = vmatprep.subr.mxu0 0.0
    %108 = vmatpush1.msra.mxu0 0.0
    %109 = vmatprep.subr.mxu0 0.0
    %110 = vmatpush1.msra.mxu0 0.0
    %111 = vmatprep.subr.mxu0 0.0
    %112 = vmatpush1.msra.mxu0 0.0
    %113 = vmatprep.subr.mxu0 0.0
    %114 = vmatpush1.msra.mxu0 0.0
    %115 = vmatprep.subr.mxu0 0.0
    %116 = vmatpush1.msra.mxu0 0.0
    %117 = vmatprep.subr.mxu0 0.0
    %118 = vmatpush1.msra.mxu0 0.0
    %119 = vmatprep.subr.mxu0 0.0
    %120 = vmatpush1.msra.mxu0 0.0
    %121 = vmatprep.subr.mxu0 0.0
    %122 = vmatpush1.msra.mxu0 0.0
    %123 = vmatprep.subr.mxu0 0.0
    %124 = vmatpush1.msra.mxu0 0.0
    %125 = vmatprep.subr.mxu0 0.0
    %126 = vmatpush1.msra.mxu0 0.0
    %127 = vmatprep.subr.mxu0 0.0
    %128 = vmatpush1.msra.mxu0 0.0
    %129 = vmatprep.subr.mxu0 0.0
    %130 = vmatpush1.msra.mxu0 0.0
    %131 = vmatprep.subr.mxu0 0.0
    %132 = vmatpush1.msra.mxu0 0.0
    %133 = vmatprep.subr.mxu0 0.0
    %134 = vmatpush1.msra.mxu0 %v63
    %135 = vmatprep.subr.mxu0 0.0
    %136 = vmatpush1.msra.mxu0 %v62
    %137 = vmatprep.subr.mxu0 0.0
    %138 = vmatpush2.msra.mxu0 0.0
    %139 = vmatprep.subr.mxu0 0.0
    %140 = vmatpush2.msra.mxu0 0.0
    %141 = vmatprep.subr.mxu0 0.0
    %142 = vmatpush2.msra.mxu0 0.0
    %143 = vmatprep.subr.mxu0 0.0
    %144 = vmatpush2.msra.mxu0 0.0
    %145 = vmatprep.subr.mxu0 0.0
    %146 = vmatpush2.msra.mxu0 0.0
    %147 = vmatprep.subr.mxu0 0.0
    %148 = vmatpush2.msra.mxu0 0.0
    %149 = vmatprep.subr.mxu0 0.0
    %150 = vmatpush2.msra.mxu0 0.0
    %151 = vmatprep.subr.mxu0 0.0
    %152 = vmatpush2.msra.mxu0 0.0
    %153 = vmatprep.subr.mxu0 0.0
    %154 = vmatpush2.msra.mxu0 0.0
    %155 = vmatprep.subr.mxu0 0.0
    %156 = vmatpush2.msra.mxu0 0.0
    %157 = vmatprep.subr.mxu0 0.0
    %158 = vmatpush2.msra.mxu0 0.0
    %159 = vmatprep.subr.mxu0 0.0
    %160 = vmatpush2.msra.mxu0 0.0
    %161 = vmatprep.subr.mxu0 0.0
    %162 = vmatpush2.msra.mxu0 0.0
    %163 = vmatprep.subr.mxu0 0.0
    %164 = vmatpush2.msra.mxu0 0.0
    %165 = vmatprep.subr.mxu0 0.0
    %166 = vmatpush2.msra.mxu0 0.0
    %167 = vmatprep.subr.mxu0 0.0
    %168 = vmatpush2.msra.mxu0 0.0
    %169 = vmatprep.mubr.f32.mxu0 0.0
    %170 = vmatmul.mubr.f32.gmra.mxu0 %v94
    %v171 = vpop.f32.mrf.mxu0
    %v172 = vadd.f32 %v75, %v171
    %v173 = vpop.f32.mrf.mxu0
    %174 = vmatprep.mubr.f32.mxu0 0.0
    %175 = vmatmul.mubr.f32.gmra.mxu0 %v97
    %v176 = vpop.f32.mrf.mxu0
    %v177 = vadd.f32 %v80, %v176
    %v178 = vpop.f32.mrf.mxu0
    %179 = vmatprep.mubr.f32.mxu0 0.0
    %180 = vmatmul.mubr.f32.gmra.mxu0 %v100
    %v181 = vpop.f32.mrf.mxu0
    %v182 = vadd.f32 %v85, %v181
    %v183 = vpop.f32.mrf.mxu0
    %184 = vmatprep.mubr.f32.mxu0 0.0
    %185 = vmatmul.mubr.f32.gmra.mxu0 %v103
    %v186 = vpop.f32.mrf.mxu0
    %v187 = vadd.f32 %v90, %v186
    %v188 = vpop.f32.mrf.mxu0
    %189 = vdwg.mxu0
    %v190 = vmax.f32 %v172, 0.0
    %v191 = vmax.f32 %v177, 0.0
    %v192 = vmax.f32 %v182, 0.0
    %v193 = vmax.f32 %v187, 0.0
    %v194 = vld [vmem:[%s4] sm:$0xff]
    %v195 = vld [vmem:[%s5] sm:$0xff]
    %197 = vset.pattern.permute.xlu0 0
    %198 = vperm.xlu0 %197, %v195
    %v199 = vpop.permute.xlu0 %198
    %vm201 = vcmask 261120
    %v203 = vsel %vm201, %v194, 0
    %205 = vmatprep.subr.mxu0 0.0
    %206 = vmatpush1.msra.mxu0 0.0
    %207 = vmatprep.subr.mxu0 0.0
    %208 = vmatpush1.msra.mxu0 0.0
    %209 = vmatprep.subr.mxu0 0.0
    %210 = vmatpush1.msra.mxu0 0.0
    %211 = vmatprep.subr.mxu0 0.0
    %212 = vmatpush1.msra.mxu0 0.0
    %213 = vmatprep.subr.mxu0 0.0
    %214 = vmatpush1.msra.mxu0 0.0
    %215 = vmatprep.subr.mxu0 0.0
    %216 = vmatpush1.msra.mxu0 0.0
    %217 = vmatprep.subr.mxu0 0.0
    %218 = vmatpush1.msra.mxu0 0.0
    %219 = vmatprep.subr.mxu0 0.0
    %220 = vmatpush1.msra.mxu0 0.0
    %221 = vmatprep.subr.mxu0 0.0
    %222 = vmatpush1.msra.mxu0 0.0
    %223 = vmatprep.subr.mxu0 0.0
    %224 = vmatpush1.msra.mxu0 0.0
    %225 = vmatprep.subr.mxu0 0.0
    %226 = vmatpush1.msra.mxu0 0.0
    %227 = vmatprep.subr.mxu0 0.0
    %228 = vmatpush1.msra.mxu0 0.0
    %229 = vmatprep.subr.mxu0 0.0
    %230 = vmatpush1.msra.mxu0 %v193
    %231 = vmatprep.subr.mxu0 0.0
    %232 = vmatpush1.msra.mxu0 %v192
    %233 = vmatprep.subr.mxu0 0.0
    %234 = vmatpush1.msra.mxu0 %v191
    %235 = vmatprep.subr.mxu0 0.0
    %236 = vmatpush1.msra.mxu0 %v190
    %237 = vmatprep.subr.mxu0 0.0
    %238 = vmatpush2.msra.mxu0 0.0
    %239 = vmatprep.subr.mxu0 0.0
    %240 = vmatpush2.msra.mxu0 0.0
    %241 = vmatprep.subr.mxu0 0.0
    %242 = vmatpush2.msra.mxu0 0.0
    %243 = vmatprep.subr.mxu0 0.0
    %244 = vmatpush2.msra.mxu0 0.0
    %245 = vmatprep.subr.mxu0 0.0
    %246 = vmatpush2.msra.mxu0 0.0
    %247 = vmatprep.subr.mxu0 0.0
    %248 = vmatpush2.msra.mxu0 0.0
    %249 = vmatprep.subr.mxu0 0.0
    %250 = vmatpush2.msra.mxu0 0.0
    %251 = vmatprep.subr.mxu0 0.0
    %252 = vmatpush2.msra.mxu0 0.0
    %253 = vmatprep.subr.mxu0 0.0
    %254 = vmatpush2.msra.mxu0 0.0
    %255 = vmatprep.subr.mxu0 0.0
    %256 = vmatpush2.msra.mxu0 0.0
    %257 = vmatprep.subr.mxu0 0.0
    %258 = vmatpush2.msra.mxu0 0.0
    %259 = vmatprep.subr.mxu0 0.0
    %260 = vmatpush2.msra.mxu0 0.0
    %261 = vmatprep.subr.mxu0 0.0
    %262 = vmatpush2.msra.mxu0 0.0
    %263 = vmatprep.subr.mxu0 0.0
    %264 = vmatpush2.msra.mxu0 0.0
    %265 = vmatprep.subr.mxu0 0.0
    %266 = vmatpush2.msra.mxu0 0.0
    %267 = vmatprep.subr.mxu0 0.0
    %268 = vmatpush2.msra.mxu0 0.0
    %269 = vmatprep.mubr.f32.mxu0 0.0
    %270 = vmatmul.mubr.f32.gmra.mxu0 %v203
    %v271 = vpop.f32.mrf.mxu0
    %v272 = vadd.f32 %v199, %v271
    %v273 = vpop.f32.mrf.mxu0
    %274 = vdwg.mxu0
    %v275 = vld [vmem:[%s6] sm:$0xff]
    %v276 = vld [vmem:[%s8] sm:$0xf]
    %v277 = vld [vmem:[%s10] sm:$0x3]
    %v278 = vld [vmem:[%s7] sm:$0xff]
    %280 = vset.pattern.permute.xlu0 0
    %281 = vperm.xlu0 %280, %v278
    %v282 = vpop.permute.xlu0 %281
    %v284 = vld [vmem:[%s9] sm:$0xf]
    %286 = vset.pattern.permute.xlu0 0
    %287 = vperm.xlu0 %286, %v284
    %v288 = vpop.permute.xlu0 %287
    %v290 = vld [vmem:[%s11] sm:$0x3]
    %292 = vset.pattern.permute.xlu0 0
    %293 = vperm.xlu0 %292, %v290
    %v294 = vpop.permute.xlu0 %293
    %vm296 = vcmask 1040384
    %v297 = vsel %vm296, 1.0, 0.0
    %vm298 = vcmask 1043456
    %v299 = vsel %vm298, %v297, 1.0
    %vm300 = vcmask 1044480
    %v301 = vsel %vm300, %v299, 0.0
    %vm302 = vcmp.gt.f32.partialorder %v301, 0.0
    %v303 = vld [vmem:[#allocation2] sm:$0xff]
    %v304 = vld [vmem:[#allocation2 + $0x8] sm:$0xff]
    %v305 = vld [vmem:[#allocation2 + $0x10] sm:$0xff]
    %v306 = vld [vmem:[#allocation2 + $0x18] sm:$0xff]
    %v307 = vld [vmem:[#allocation2 + $0x20] sm:$0xff]
    %v308 = vld [vmem:[#allocation2 + $0x28] sm:$0xff]
    %v309 = vld [vmem:[#allocation2 + $0x30] sm:$0xff]
    %v310 = vld [vmem:[#allocation2 + $0x38] sm:$0xff]
    %v311 = vld [vmem:[#allocation2 + $0x40] sm:$0xff]
    %v312 = vld [vmem:[#allocation2 + $0x48] sm:$0xff]
    %v313 = vld [vmem:[#allocation2 + $0x50] sm:$0xff]
    %v314 = vld [vmem:[#allocation2 + $0x58] sm:$0xff]
    %v315 = vld [vmem:[#allocation2 + $0x60] sm:$0xff]
    %v316 = vld [vmem:[#allocation2 + $0x68] sm:$0xff]
    %v317 = vld [vmem:[#allocation2 + $0x70] sm:$0xff]
    %v318 = vld [vmem:[#allocation2 + $0x78] sm:$0xff]
    %319 = vmatprep.subr.mxu0 0.0
    %320 = vmatpush1.msra.mxu0 %v318
    %321 = vmatprep.subr.mxu0 0.0
    %322 = vmatpush1.msra.mxu0 %v317
    %323 = vmatprep.subr.mxu0 0.0
    %324 = vmatpush1.msra.mxu0 %v316
    %325 = vmatprep.subr.mxu0 0.0
    %326 = vmatpush1.msra.mxu0 %v315
    %327 = vmatprep.subr.mxu0 0.0
    %328 = vmatpush1.msra.mxu0 %v314
    %329 = vmatprep.subr.mxu0 0.0
    %330 = vmatpush1.msra.mxu0 %v313
    %331 = vmatprep.subr.mxu0 0.0
    %332 = vmatpush1.msra.mxu0 %v312
    %333 = vmatprep.subr.mxu0 0.0
    %334 = vmatpush1.msra.mxu0 %v311
    %335 = vmatprep.subr.mxu0 0.0
    %336 = vmatpush1.msra.mxu0 %v310
    %337 = vmatprep.subr.mxu0 0.0
    %338 = vmatpush1.msra.mxu0 %v309
    %339 = vmatprep.subr.mxu0 0.0
    %340 = vmatpush1.msra.mxu0 %v308
    %341 = vmatprep.subr.mxu0 0.0
    %342 = vmatpush1.msra.mxu0 %v307
    %343 = vmatprep.subr.mxu0 0.0
    %344 = vmatpush1.msra.mxu0 %v306
    %345 = vmatprep.subr.mxu0 0.0
    %346 = vmatpush1.msra.mxu0 %v305
    %347 = vmatprep.subr.mxu0 0.0
    %348 = vmatpush1.msra.mxu0 %v304
    %349 = vmatprep.subr.mxu0 0.0
    %350 = vmatpush1.msra.mxu0 %v303
    %351 = vmatprep.subr.mxu0 0.0
    %352 = vmatpush2.msra.mxu0 0.0
    %353 = vmatprep.subr.mxu0 0.0
    %354 = vmatpush2.msra.mxu0 0.0
    %355 = vmatprep.subr.mxu0 0.0
    %356 = vmatpush2.msra.mxu0 0.0
    %357 = vmatprep.subr.mxu0 0.0
    %358 = vmatpush2.msra.mxu0 0.0
    %359 = vmatprep.subr.mxu0 0.0
    %360 = vmatpush2.msra.mxu0 0.0
    %361 = vmatprep.subr.mxu0 0.0
    %362 = vmatpush2.msra.mxu0 0.0
    %363 = vmatprep.subr.mxu0 0.0
    %364 = vmatpush2.msra.mxu0 0.0
    %365 = vmatprep.subr.mxu0 0.0
    %366 = vmatpush2.msra.mxu0 0.0
    %367 = vmatprep.subr.mxu0 0.0
    %368 = vmatpush2.msra.mxu0 0.0
    %369 = vmatprep.subr.mxu0 0.0
    %370 = vmatpush2.msra.mxu0 0.0
    %371 = vmatprep.subr.mxu0 0.0
    %372 = vmatpush2.msra.mxu0 0.0
    %373 = vmatprep.subr.mxu0 0.0
    %374 = vmatpush2.msra.mxu0 0.0
    %375 = vmatprep.subr.mxu0 0.0
    %376 = vmatpush2.msra.mxu0 0.0
    %377 = vmatprep.subr.mxu0 0.0
    %378 = vmatpush2.msra.mxu0 0.0
    %379 = vmatprep.subr.mxu0 0.0
    %380 = vmatpush2.msra.mxu0 0.0
    %381 = vmatprep.subr.mxu0 0.0
    %382 = vmatpush2.msra.mxu0 0.0
    %383 = vmatprep.mubr.f32.mxu0 0.0
    %384 = vmatmul.mubr.f32.gmra.mxu0 %v272
    %v385 = vpop.f32.mrf.mxu0
    %v386 = vadd.f32 0.0, %v385
    %v387 = vpop.f32.mrf.mxu0
    %388 = vdwg.mxu0
    %v389 = vsel %vm302, 1, 0
    %v390 = vlaneseq
    %v391 = vshrl.u32 %v390, 7
    %v392 = vsub.s32 4, %v391
    %v393 = vrot.slane %v389, %v392
    %vm394 = vcmp.eq.s32.totalorder %v393, 1
    %v395 = vsel %vm394, %v386, %v272
    %397 = vset.pattern.permute.xlu0 0
    %398 = vperm.xlu0 %397, %v275
    %v399 = vpop.permute.xlu0 %398
    %v401 = vlaneseq
    %v402 = vshrl.u32 %v401, 7
    %v403 = vsub.s32 0, %v402
    %v404 = vrot.slane %v395, %v403
    %v405 = vmul.f32 %v399, %v404
    %v406 = vadd.f32 %v282, %v405
    %407 = vset.pattern.permute.xlu0 1
    %408 = vperm.xlu0 %407, %v275
    %v409 = vpop.permute.xlu0 %408
    %v411 = vlaneseq
    %v412 = vshrl.u32 %v411, 7
    %v413 = vsub.s32 1, %v412
    %v414 = vrot.slane %v395, %v413
    %v415 = vmul.f32 %v409, %v414
    %v416 = vadd.f32 %v406, %v415
    %417 = vset.pattern.permute.xlu0 2
    %418 = vperm.xlu0 %417, %v275
    %v419 = vpop.permute.xlu0 %418
    %v421 = vlaneseq
    %v422 = vshrl.u32 %v421, 7
    %v423 = vsub.s32 2, %v422
    %v424 = vrot.slane %v395, %v423
    %v425 = vmul.f32 %v419, %v424
    %v426 = vadd.f32 %v416, %v425
    %427 = vset.pattern.permute.xlu0 3
    %428 = vperm.xlu0 %427, %v275
    %v429 = vpop.permute.xlu0 %428
    %v431 = vlaneseq
    %v432 = vshrl.u32 %v431, 7
    %v433 = vsub.s32 3, %v432
    %v434 = vrot.slane %v395, %v433
    %v435 = vmul.f32 %v429, %v434
    %v436 = vadd.f32 %v426, %v435
    %437 = vset.pattern.permute.xlu0 4
    %438 = vperm.xlu0 %437, %v275
    %v439 = vpop.permute.xlu0 %438
    %v441 = vlaneseq
    %v442 = vshrl.u32 %v441, 7
    %v443 = vsub.s32 4, %v442
    %v444 = vrot.slane %v395, %v443
    %v445 = vmul.f32 %v439, %v444
    %v446 = vadd.f32 %v436, %v445
    %447 = vset.pattern.permute.xlu0 5
    %448 = vperm.xlu0 %447, %v275
    %v449 = vpop.permute.xlu0 %448
    %v451 = vlaneseq
    %v452 = vshrl.u32 %v451, 7
    %v453 = vsub.s32 5, %v452
    %v454 = vrot.slane %v395, %v453
    %v455 = vmul.f32 %v449, %v454
    %v456 = vadd.f32 %v446, %v455
    %457 = vset.pattern.permute.xlu0 6
    %458 = vperm.xlu0 %457, %v275
    %v459 = vpop.permute.xlu0 %458
    %v461 = vlaneseq
    %v462 = vshrl.u32 %v461, 7
    %v463 = vsub.s32 6, %v462
    %v464 = vrot.slane %v395, %v463
    %v465 = vmul.f32 %v459, %v464
    %v466 = vadd.f32 %v456, %v465
    %467 = vset.pattern.permute.xlu0 7
    %468 = vperm.xlu0 %467, %v275
    %v469 = vpop.permute.xlu0 %468
    %v471 = vlaneseq
    %v472 = vshrl.u32 %v471, 7
    %v473 = vsub.s32 7, %v472
    %v474 = vrot.slane %v395, %v473
    %v475 = vmul.f32 %v469, %v474
    %v476 = vadd.f32 %v466, %v475
    %v477 = vmax.f32 %v476, 0.0
    %479 = vset.pattern.permute.xlu0 0
    %480 = vperm.xlu0 %479, %v276
    %v481 = vpop.permute.xlu0 %480
    %v483 = vlaneseq
    %v484 = vshrl.u32 %v483, 7
    %v485 = vsub.s32 0, %v484
    %v486 = vrot.slane %v477, %v485
    %v487 = vmul.f32 %v481, %v486
    %v488 = vadd.f32 %v288, %v487
    %489 = vset.pattern.permute.xlu0 1
    %490 = vperm.xlu0 %489, %v276
    %v491 = vpop.permute.xlu0 %490
    %v493 = vlaneseq
    %v494 = vshrl.u32 %v493, 7
    %v495 = vsub.s32 1, %v494
    %v496 = vrot.slane %v477, %v495
    %v497 = vmul.f32 %v491, %v496
    %v498 = vadd.f32 %v488, %v497
    %499 = vset.pattern.permute.xlu0 2
    %500 = vperm.xlu0 %499, %v276
    %v501 = vpop.permute.xlu0 %500
    %v503 = vlaneseq
    %v504 = vshrl.u32 %v503, 7
    %v505 = vsub.s32 2, %v504
    %v506 = vrot.slane %v477, %v505
    %v507 = vmul.f32 %v501, %v506
    %v508 = vadd.f32 %v498, %v507
    %509 = vset.pattern.permute.xlu0 3
    %510 = vperm.xlu0 %509, %v276
    %v511 = vpop.permute.xlu0 %510
    %v513 = vlaneseq
    %v514 = vshrl.u32 %v513, 7
    %v515 = vsub.s32 3, %v514
    %v516 = vrot.slane %v477, %v515
    %v517 = vmul.f32 %v511, %v516
    %v518 = vadd.f32 %v508, %v517
    %519 = vset.pattern.permute.xlu0 4
    %520 = vperm.xlu0 %519, %v276
    %v521 = vpop.permute.xlu0 %520
    %v523 = vlaneseq
    %v524 = vshrl.u32 %v523, 7
    %v525 = vsub.s32 4, %v524
    %v526 = vrot.slane %v477, %v525
    %v527 = vmul.f32 %v521, %v526
    %v528 = vadd.f32 %v518, %v527
    %529 = vset.pattern.permute.xlu0 5
    %530 = vperm.xlu0 %529, %v276
    %v531 = vpop.permute.xlu0 %530
    %v533 = vlaneseq
    %v534 = vshrl.u32 %v533, 7
    %v535 = vsub.s32 5, %v534
    %v536 = vrot.slane %v477, %v535
    %v537 = vmul.f32 %v531, %v536
    %v538 = vadd.f32 %v528, %v537
    %539 = vset.pattern.permute.xlu0 6
    %540 = vperm.xlu0 %539, %v276
    %v541 = vpop.permute.xlu0 %540
    %v543 = vlaneseq
    %v544 = vshrl.u32 %v543, 7
    %v545 = vsub.s32 6, %v544
    %v546 = vrot.slane %v477, %v545
    %v547 = vmul.f32 %v541, %v546
    %v548 = vadd.f32 %v538, %v547
    %549 = vset.pattern.permute.xlu0 7
    %550 = vperm.xlu0 %549, %v276
    %v551 = vpop.permute.xlu0 %550
    %v553 = vlaneseq
    %v554 = vshrl.u32 %v553, 7
    %v555 = vsub.s32 7, %v554
    %v556 = vrot.slane %v477, %v555
    %v557 = vmul.f32 %v551, %v556
    %v558 = vadd.f32 %v548, %v557
    %v559 = vmax.f32 %v558, 0.0
    %561 = vset.pattern.permute.xlu0 0
    %562 = vperm.xlu0 %561, %v277
    %v563 = vpop.permute.xlu0 %562
    %v565 = vlaneseq
    %v566 = vshrl.u32 %v565, 7
    %v567 = vsub.s32 0, %v566
    %v568 = vrot.slane %v559, %v567
    %v569 = vmul.f32 %v563, %v568
    %v570 = vadd.f32 %v294, %v569
    %571 = vset.pattern.permute.xlu0 1
    %572 = vperm.xlu0 %571, %v277
    %v573 = vpop.permute.xlu0 %572
    %v575 = vlaneseq
    %v576 = vshrl.u32 %v575, 7
    %v577 = vsub.s32 1, %v576
    %v578 = vrot.slane %v559, %v577
    %v579 = vmul.f32 %v573, %v578
    %v580 = vadd.f32 %v570, %v579
    %581 = vset.pattern.permute.xlu0 2
    %582 = vperm.xlu0 %581, %v277
    %v583 = vpop.permute.xlu0 %582
    %v585 = vlaneseq
    %v586 = vshrl.u32 %v585, 7
    %v587 = vsub.s32 2, %v586
    %v588 = vrot.slane %v559, %v587
    %v589 = vmul.f32 %v583, %v588
    %v590 = vadd.f32 %v580, %v589
    %591 = vset.pattern.permute.xlu0 3
    %592 = vperm.xlu0 %591, %v277
    %v593 = vpop.permute.xlu0 %592
    %v595 = vlaneseq
    %v596 = vshrl.u32 %v595, 7
    %v597 = vsub.s32 3, %v596
    %v598 = vrot.slane %v559, %v597
    %v599 = vmul.f32 %v593, %v598
    %v600 = vadd.f32 %v590, %v599
    %v601 = vxor.u32 %v600, 2147483648
    %v602 = vmul.f32 %v601, 1.442695
    %v603 = vpow.pop %v602
    %v604 = vadd.f32 %v603, 1.0
    %v605 = vrcp.pop %v604
    %v606 = vmul.f32 1.0, %v605
    %v607 = vadd.f32 %v606, 1e-10
    %v608 = vlog2.pop %v607
    %v609 = vmul.f32 %v608, 0.6931472
    %v610 = vmul.f32 %v606, %v609
    %v611 = vsub.f32 1.0, %v606
    %v612 = vadd.f32 %v611, 1e-10
    %v613 = vlog2.pop %v612
    %v614 = vmul.f32 %v613, 0.6931472
    %v615 = vmul.f32 %v611, %v614
    %v616 = vadd.f32 %v610, %v615
    %v617 = vsub.f32 0.0, %v616
    %v618 = vld [vmem:[%s12] sm:$0x3]
    %v619 = vmul.f32 %v618, 0.1
    %v620 = vadd.f32 %v606, %v619
    %v621 = vmax.f32 %v620, 0.01
    %v622 = vmin.f32 %v621, 0.99
    %v624 = vrot.slane %v622, 7
    %vm626 = vcmp.lt.f32.partialorder %v618, %v624
    %v627 = vsel %vm626, 1, 0
    %v628 = vrot.slane %v627, 5
    %vm629 = vcmp.ne.s32.totalorder %v628, 0
    %vm630 = vmand %vm302, %vm629
    %vm631 = vmxor %vm626, 1
    %v632 = vsel %vm631, 1, 0
    %v633 = vrot.slane %v632, 5
    %vm634 = vcmp.ne.s32.totalorder %v633, 0
    %vm635 = vmand %vm302, %vm634
    %v636 = vsel %vm630, 1, 0
    %v637 = vcvt.s32.f32 %v636
    %v638 = vsel %vm635, 1, 0
    %v639 = vcvt.s32.f32 %v638
    %v640 = vadd.f32 %v622, 1e-10
    %v641 = vlog2.pop %v640
    %v642 = vmul.f32 %v641, 0.6931472
    %v644 = vrot.slane %v642, 7
    %v647 = vrot.slane %v600, 7
    %v650 = vrot.slane %v617, 5
    %v652 = vsel %vm296, 2.0, %v644
    %vm653 = vcmask 1041408
    %v654 = vsel %vm653, %v652, %v647
    %vm655 = vcmask 1042432
    %v656 = vsel %vm655, %v654, %v650
    %v657 = vsel %vm298, %v656, %v639
    %v658 = vsel %vm300, %v657, 0.0
    %v660 = vrot.slane %v639, 4
    %v663 = vrot.slane %v637, 3
    %v665 = vrot.slane %v637, 2
    %v667 = vrot.slane %v637, 1
    %v669 = vsel %vm296, %v660, %v663
    %v670 = vsel %vm653, %v669, %v665
    %v671 = vsel %vm655, %v670, %v667
    %v672 = vsel %vm298, %v671, 1.0
    %v673 = vsel %vm300, %v672, 0.0
    %vm674 = vcmp.gt.f32.partialorder %v673, 0.5
    %v675 = vsel %vm674, %v658, %v301
    %vm676 = vcmp.gt.f32.partialorder %v675, 0.0
    %677 = vmatprep.subr.mxu0 0.0
    %678 = vmatpush1.msra.mxu0 %v318
    %679 = vmatprep.subr.mxu0 0.0
    %680 = vmatpush1.msra.mxu0 %v317
    %681 = vmatprep.subr.mxu0 0.0
    %682 = vmatpush1.msra.mxu0 %v316
    %683 = vmatprep.subr.mxu0 0.0
    %684 = vmatpush1.msra.mxu0 %v315
    %685 = vmatprep.subr.mxu0 0.0
    %686 = vmatpush1.msra.mxu0 %v314
    %687 = vmatprep.subr.mxu0 0.0
    %688 = vmatpush1.msra.mxu0 %v313
    %689 = vmatprep.subr.mxu0 0.0
    %690 = vmatpush1.msra.mxu0 %v312
    %691 = vmatprep.subr.mxu0 0.0
    %692 = vmatpush1.msra.mxu0 %v311
    %693 = vmatprep.subr.mxu0 0.0
    %694 = vmatpush1.msra.mxu0 %v310
    %695 = vmatprep.subr.mxu0 0.0
    %696 = vmatpush1.msra.mxu0 %v309
    %697 = vmatprep.subr.mxu0 0.0
    %698 = vmatpush1.msra.mxu0 %v308
    %699 = vmatprep.subr.mxu0 0.0
    %700 = vmatpush1.msra.mxu0 %v307
    %701 = vmatprep.subr.mxu0 0.0
    %702 = vmatpush1.msra.mxu0 %v306
    %703 = vmatprep.subr.mxu0 0.0
    %704 = vmatpush1.msra.mxu0 %v305
    %705 = vmatprep.subr.mxu0 0.0
    %706 = vmatpush1.msra.mxu0 %v304
    %707 = vmatprep.subr.mxu0 0.0
    %708 = vmatpush1.msra.mxu0 %v303
    %709 = vmatprep.subr.mxu0 0.0
    %710 = vmatpush2.msra.mxu0 0.0
    %711 = vmatprep.subr.mxu0 0.0
    %712 = vmatpush2.msra.mxu0 0.0
    %713 = vmatprep.subr.mxu0 0.0
    %714 = vmatpush2.msra.mxu0 0.0
    %715 = vmatprep.subr.mxu0 0.0
    %716 = vmatpush2.msra.mxu0 0.0
    %717 = vmatprep.subr.mxu0 0.0
    %718 = vmatpush2.msra.mxu0 0.0
    %719 = vmatprep.subr.mxu0 0.0
    %720 = vmatpush2.msra.mxu0 0.0
    %721 = vmatprep.subr.mxu0 0.0
    %722 = vmatpush2.msra.mxu0 0.0
    %723 = vmatprep.subr.mxu0 0.0
    %724 = vmatpush2.msra.mxu0 0.0
    %725 = vmatprep.subr.mxu0 0.0
    %726 = vmatpush2.msra.mxu0 0.0
    %727 = vmatprep.subr.mxu0 0.0
    %728 = vmatpush2.msra.mxu0 0.0
    %729 = vmatprep.subr.mxu0 0.0
    %730 = vmatpush2.msra.mxu0 0.0
    %731 = vmatprep.subr.mxu0 0.0
    %732 = vmatpush2.msra.mxu0 0.0
    %733 = vmatprep.subr.mxu0 0.0
    %734 = vmatpush2.msra.mxu0 0.0
    %735 = vmatprep.subr.mxu0 0.0
    %736 = vmatpush2.msra.mxu0 0.0
    %737 = vmatprep.subr.mxu0 0.0
    %738 = vmatpush2.msra.mxu0 0.0
    %739 = vmatprep.subr.mxu0 0.0
    %740 = vmatpush2.msra.mxu0 0.0
    %741 = vmatprep.mubr.f32.mxu0 0.0
    %742 = vmatmul.mubr.f32.gmra.mxu0 %v395
    %v743 = vpop.f32.mrf.mxu0
    %v744 = vadd.f32 0.0, %v743
    %v745 = vpop.f32.mrf.mxu0
    %746 = vdwg.mxu0
    %v747 = vsel %vm676, 1, 0
    %v748 = vlaneseq
    %v749 = vshrl.u32 %v748, 7
    %v750 = vsub.s32 4, %v749
    %v751 = vrot.slane %v747, %v750
    %vm752 = vcmp.eq.s32.totalorder %v751, 1
    %v753 = vsel %vm752, %v744, %v395
    %v754 = vlaneseq
    %v755 = vshrl.u32 %v754, 7
    %v756 = vsub.s32 0, %v755
    %v757 = vrot.slane %v753, %v756
    %v758 = vmul.f32 %v399, %v757
    %v759 = vadd.f32 %v282, %v758
    %v760 = vlaneseq
    %v761 = vshrl.u32 %v760, 7
    %v762 = vsub.s32 1, %v761
    %v763 = vrot.slane %v753, %v762
    %v764 = vmul.f32 %v409, %v763
    %v765 = vadd.f32 %v759, %v764
    %v766 = vlaneseq
    %v767 = vshrl.u32 %v766, 7
    %v768 = vsub.s32 2, %v767
    %v769 = vrot.slane %v753, %v768
    %v770 = vmul.f32 %v419, %v769
    %v771 = vadd.f32 %v765, %v770
    %v772 = vlaneseq
    %v773 = vshrl.u32 %v772, 7
    %v774 = vsub.s32 3, %v773
    %v775 = vrot.slane %v753, %v774
    %v776 = vmul.f32 %v429, %v775
    %v777 = vadd.f32 %v771, %v776
    %v778 = vlaneseq
    %v779 = vshrl.u32 %v778, 7
    %v780 = vsub.s32 4, %v779
    %v781 = vrot.slane %v753, %v780
    %v782 = vmul.f32 %v439, %v781
    %v783 = vadd.f32 %v777, %v782
    %v784 = vlaneseq
    %v785 = vshrl.u32 %v784, 7
    %v786 = vsub.s32 5, %v785
    %v787 = vrot.slane %v753, %v786
    %v788 = vmul.f32 %v449, %v787
    %v789 = vadd.f32 %v783, %v788
    %v790 = vlaneseq
    %v791 = vshrl.u32 %v790, 7
    %v792 = vsub.s32 6, %v791
    %v793 = vrot.slane %v753, %v792
    %v794 = vmul.f32 %v459, %v793
    %v795 = vadd.f32 %v789, %v794
    %v796 = vlaneseq
    %v797 = vshrl.u32 %v796, 7
    %v798 = vsub.s32 7, %v797
    %v799 = vrot.slane %v753, %v798
    %v800 = vmul.f32 %v469, %v799
    %v801 = vadd.f32 %v795, %v800
    %v802 = vmax.f32 %v801, 0.0
    %v803 = vlaneseq
    %v804 = vshrl.u32 %v803, 7
    %v805 = vsub.s32 0, %v804
    %v806 = vrot.slane %v802, %v805
    %v807 = vmul.f32 %v481, %v806
    %v808 = vadd.f32 %v288, %v807
    %v809 = vlaneseq
    %v810 = vshrl.u32 %v809, 7
    %v811 = vsub.s32 1, %v810
    %v812 = vrot.slane %v802, %v811
    %v813 = vmul.f32 %v491, %v812
    %v814 = vadd.f32 %v808, %v813
    %v815 = vlaneseq
    %v816 = vshrl.u32 %v815, 7
    %v817 = vsub.s32 2, %v816
    %v818 = vrot.slane %v802, %v817
    %v819 = vmul.f32 %v501, %v818
    %v820 = vadd.f32 %v814, %v819
    %v821 = vlaneseq
    %v822 = vshrl.u32 %v821, 7
    %v823 = vsub.s32 3, %v822
    %v824 = vrot.slane %v802, %v823
    %v825 = vmul.f32 %v511, %v824
    %v826 = vadd.f32 %v820, %v825
    %v827 = vlaneseq
    %v828 = vshrl.u32 %v827, 7
    %v829 = vsub.s32 4, %v828
    %v830 = vrot.slane %v802, %v829
    %v831 = vmul.f32 %v521, %v830
    %v832 = vadd.f32 %v826, %v831
    %v833 = vlaneseq
    %v834 = vshrl.u32 %v833, 7
    %v835 = vsub.s32 5, %v834
    %v836 = vrot.slane %v802, %v835
    %v837 = vmul.f32 %v531, %v836
    %v838 = vadd.f32 %v832, %v837
    %v839 = vlaneseq
    %v840 = vshrl.u32 %v839, 7
    %v841 = vsub.s32 6, %v840
    %v842 = vrot.slane %v802, %v841
    %v843 = vmul.f32 %v541, %v842
    %v844 = vadd.f32 %v838, %v843
    %v845 = vlaneseq
    %v846 = vshrl.u32 %v845, 7
    %v847 = vsub.s32 7, %v846
    %v848 = vrot.slane %v802, %v847
    %v849 = vmul.f32 %v551, %v848
    %v850 = vadd.f32 %v844, %v849
    %v851 = vmax.f32 %v850, 0.0
    %v852 = vlaneseq
    %v853 = vshrl.u32 %v852, 7
    %v854 = vsub.s32 0, %v853
    %v855 = vrot.slane %v851, %v854
    %v856 = vmul.f32 %v563, %v855
    %v857 = vadd.f32 %v294, %v856
    %v858 = vlaneseq
    %v859 = vshrl.u32 %v858, 7
    %v860 = vsub.s32 1, %v859
    %v861 = vrot.slane %v851, %v860
    %v862 = vmul.f32 %v573, %v861
    %v863 = vadd.f32 %v857, %v862
    %v864 = vlaneseq
    %v865 = vshrl.u32 %v864, 7
    %v866 = vsub.s32 2, %v865
    %v867 = vrot.slane %v851, %v866
    %v868 = vmul.f32 %v583, %v867
    %v869 = vadd.f32 %v863, %v868
    %v870 = vlaneseq
    %v871 = vshrl.u32 %v870, 7
    %v872 = vsub.s32 3, %v871
    %v873 = vrot.slane %v851, %v872
    %v874 = vmul.f32 %v593, %v873
    %v875 = vadd.f32 %v869, %v874
    %v876 = vxor.u32 %v875, 2147483648
    %v877 = vmul.f32 %v876, 1.442695
    %v878 = vpow.pop %v877
    %v879 = vadd.f32 %v878, 1.0
    %v880 = vrcp.pop %v879
    %v881 = vmul.f32 1.0, %v880
    %v882 = vadd.f32 %v881, 1e-10
    %v883 = vlog2.pop %v882
    %v884 = vmul.f32 %v883, 0.6931472
    %v885 = vmul.f32 %v881, %v884
    %v886 = vsub.f32 1.0, %v881
    %v887 = vadd.f32 %v886, 1e-10
    %v888 = vlog2.pop %v887
    %v889 = vmul.f32 %v888, 0.6931472
    %v890 = vmul.f32 %v886, %v889
    %v891 = vadd.f32 %v885, %v890
    %v892 = vsub.f32 0.0, %v891
    %s893 = scalar_lea.vmem %s12, 2
    %v894 = vld [vmem:[%s893] sm:$0x3]
    %v895 = vmul.f32 %v894, 0.1
    %v896 = vadd.f32 %v881, %v895
    %v897 = vmax.f32 %v896, 0.01
    %v898 = vmin.f32 %v897, 0.99
    %v900 = vrot.slane %v898, 7
    %vm902 = vcmp.lt.f32.partialorder %v894, %v900
    %v903 = vsel %vm902, 1, 0
    %v904 = vrot.slane %v903, 5
    %vm905 = vcmp.ne.s32.totalorder %v904, 0
    %vm906 = vmand %vm676, %vm905
    %vm907 = vmxor %vm902, 1
    %v908 = vsel %vm907, 1, 0
    %v909 = vrot.slane %v908, 5
    %vm910 = vcmp.ne.s32.totalorder %v909, 0
    %vm911 = vmand %vm676, %vm910
    %v912 = vsel %vm906, 1, 0
    %v913 = vcvt.s32.f32 %v912
    %v914 = vsel %vm911, 1, 0
    %v915 = vcvt.s32.f32 %v914
    %v916 = vadd.f32 %v898, 1e-10
    %v917 = vlog2.pop %v916
    %v918 = vmul.f32 %v917, 0.6931472
    %v920 = vrot.slane %v918, 7
    %v923 = vrot.slane %v875, 7
    %v926 = vrot.slane %v892, 5
    %v928 = vsel %vm296, 3.0, %v920
    %v929 = vsel %vm653, %v928, %v923
    %v930 = vsel %vm655, %v929, %v926
    %v931 = vsel %vm298, %v930, %v915
    %v932 = vsel %vm300, %v931, 0.0
    %v934 = vrot.slane %v915, 4
    %v937 = vrot.slane %v913, 3
    %v939 = vrot.slane %v913, 2
    %v941 = vrot.slane %v913, 1
    %v943 = vsel %vm296, %v934, %v937
    %v944 = vsel %vm653, %v943, %v939
    %v945 = vsel %vm655, %v944, %v941
    %v946 = vsel %vm298, %v945, 1.0
    %v947 = vsel %vm300, %v946, 0.0
    %vm948 = vcmp.gt.f32.partialorder %v947, 0.5
    %v949 = vsel %vm948, %v932, %v675
    %vm950 = vcmp.gt.f32.partialorder %v949, 0.0
    %951 = vmatprep.subr.mxu0 0.0
    %952 = vmatpush1.msra.mxu0 %v318
    %953 = vmatprep.subr.mxu0 0.0
    %954 = vmatpush1.msra.mxu0 %v317
    %955 = vmatprep.subr.mxu0 0.0
    %956 = vmatpush1.msra.mxu0 %v316
    %957 = vmatprep.subr.mxu0 0.0
    %958 = vmatpush1.msra.mxu0 %v315
    %959 = vmatprep.subr.mxu0 0.0
    %960 = vmatpush1.msra.mxu0 %v314
    %961 = vmatprep.subr.mxu0 0.0
    %962 = vmatpush1.msra.mxu0 %v313
    %963 = vmatprep.subr.mxu0 0.0
    %964 = vmatpush1.msra.mxu0 %v312
    %965 = vmatprep.subr.mxu0 0.0
    %966 = vmatpush1.msra.mxu0 %v311
    %967 = vmatprep.subr.mxu0 0.0
    %968 = vmatpush1.msra.mxu0 %v310
    %969 = vmatprep.subr.mxu0 0.0
    %970 = vmatpush1.msra.mxu0 %v309
    %971 = vmatprep.subr.mxu0 0.0
    %972 = vmatpush1.msra.mxu0 %v308
    %973 = vmatprep.subr.mxu0 0.0
    %974 = vmatpush1.msra.mxu0 %v307
    %975 = vmatprep.subr.mxu0 0.0
    %976 = vmatpush1.msra.mxu0 %v306
    %977 = vmatprep.subr.mxu0 0.0
    %978 = vmatpush1.msra.mxu0 %v305
    %979 = vmatprep.subr.mxu0 0.0
    %980 = vmatpush1.msra.mxu0 %v304
    %981 = vmatprep.subr.mxu0 0.0
    %982 = vmatpush1.msra.mxu0 %v303
    %983 = vmatprep.subr.mxu0 0.0
    %984 = vmatpush2.msra.mxu0 0.0
    %985 = vmatprep.subr.mxu0 0.0
    %986 = vmatpush2.msra.mxu0 0.0
    %987 = vmatprep.subr.mxu0 0.0
    %988 = vmatpush2.msra.mxu0 0.0
    %989 = vmatprep.subr.mxu0 0.0
    %990 = vmatpush2.msra.mxu0 0.0
    %991 = vmatprep.subr.mxu0 0.0
    %992 = vmatpush2.msra.mxu0 0.0
    %993 = vmatprep.subr.mxu0 0.0
    %994 = vmatpush2.msra.mxu0 0.0
    %995 = vmatprep.subr.mxu0 0.0
    %996 = vmatpush2.msra.mxu0 0.0
    %997 = vmatprep.subr.mxu0 0.0
    %998 = vmatpush2.msra.mxu0 0.0
    %999 = vmatprep.subr.mxu0 0.0
    %1000 = vmatpush2.msra.mxu0 0.0
    %1001 = vmatprep.subr.mxu0 0.0
    %1002 = vmatpush2.msra.mxu0 0.0
    %1003 = vmatprep.subr.mxu0 0.0
    %1004 = vmatpush2.msra.mxu0 0.0
    %1005 = vmatprep.subr.mxu0 0.0
    %1006 = vmatpush2.msra.mxu0 0.0
    %1007 = vmatprep.subr.mxu0 0.0
    %1008 = vmatpush2.msra.mxu0 0.0
    %1009 = vmatprep.subr.mxu0 0.0
    %1010 = vmatpush2.msra.mxu0 0.0
    %1011 = vmatprep.subr.mxu0 0.0
    %1012 = vmatpush2.msra.mxu0 0.0
    %1013 = vmatprep.subr.mxu0 0.0
    %1014 = vmatpush2.msra.mxu0 0.0
    %1015 = vmatprep.mubr.f32.mxu0 0.0
    %1016 = vmatmul.mubr.f32.gmra.mxu0 %v753
    %v1017 = vpop.f32.mrf.mxu0
    %v1018 = vadd.f32 0.0, %v1017
    %v1019 = vpop.f32.mrf.mxu0
    %1020 = vdwg.mxu0
    %v1021 = vsel %vm950, 1, 0
    %v1022 = vlaneseq
    %v1023 = vshrl.u32 %v1022, 7
    %v1024 = vsub.s32 4, %v1023
    %v1025 = vrot.slane %v1021, %v1024
    %vm1026 = vcmp.eq.s32.totalorder %v1025, 1
    %v1027 = vsel %vm1026, %v1018, %v753
    %v1028 = vlaneseq
    %v1029 = vshrl.u32 %v1028, 7
    %v1030 = vsub.s32 0, %v1029
    %v1031 = vrot.slane %v1027, %v1030
    %v1032 = vmul.f32 %v399, %v1031
    %v1033 = vadd.f32 %v282, %v1032
    %v1034 = vlaneseq
    %v1035 = vshrl.u32 %v1034, 7
    %v1036 = vsub.s32 1, %v1035
    %v1037 = vrot.slane %v1027, %v1036
    %v1038 = vmul.f32 %v409, %v1037
    %v1039 = vadd.f32 %v1033, %v1038
    %v1040 = vlaneseq
    %v1041 = vshrl.u32 %v1040, 7
    %v1042 = vsub.s32 2, %v1041
    %v1043 = vrot.slane %v1027, %v1042
    %v1044 = vmul.f32 %v419, %v1043
    %v1045 = vadd.f32 %v1039, %v1044
    %v1046 = vlaneseq
    %v1047 = vshrl.u32 %v1046, 7
    %v1048 = vsub.s32 3, %v1047
    %v1049 = vrot.slane %v1027, %v1048
    %v1050 = vmul.f32 %v429, %v1049
    %v1051 = vadd.f32 %v1045, %v1050
    %v1052 = vlaneseq
    %v1053 = vshrl.u32 %v1052, 7
    %v1054 = vsub.s32 4, %v1053
    %v1055 = vrot.slane %v1027, %v1054
    %v1056 = vmul.f32 %v439, %v1055
    %v1057 = vadd.f32 %v1051, %v1056
    %v1058 = vlaneseq
    %v1059 = vshrl.u32 %v1058, 7
    %v1060 = vsub.s32 5, %v1059
    %v1061 = vrot.slane %v1027, %v1060
    %v1062 = vmul.f32 %v449, %v1061
    %v1063 = vadd.f32 %v1057, %v1062
    %v1064 = vlaneseq
    %v1065 = vshrl.u32 %v1064, 7
    %v1066 = vsub.s32 6, %v1065
    %v1067 = vrot.slane %v1027, %v1066
    %v1068 = vmul.f32 %v459, %v1067
    %v1069 = vadd.f32 %v1063, %v1068
    %v1070 = vlaneseq
    %v1071 = vshrl.u32 %v1070, 7
    %v1072 = vsub.s32 7, %v1071
    %v1073 = vrot.slane %v1027, %v1072
    %v1074 = vmul.f32 %v469, %v1073
    %v1075 = vadd.f32 %v1069, %v1074
    %v1076 = vmax.f32 %v1075, 0.0
    %v1077 = vlaneseq
    %v1078 = vshrl.u32 %v1077, 7
    %v1079 = vsub.s32 0, %v1078
    %v1080 = vrot.slane %v1076, %v1079
    %v1081 = vmul.f32 %v481, %v1080
    %v1082 = vadd.f32 %v288, %v1081
    %v1083 = vlaneseq
    %v1084 = vshrl.u32 %v1083, 7
    %v1085 = vsub.s32 1, %v1084
    %v1086 = vrot.slane %v1076, %v1085
    %v1087 = vmul.f32 %v491, %v1086
    %v1088 = vadd.f32 %v1082, %v1087
    %v1089 = vlaneseq
    %v1090 = vshrl.u32 %v1089, 7
    %v1091 = vsub.s32 2, %v1090
    %v1092 = vrot.slane %v1076, %v1091
    %v1093 = vmul.f32 %v501, %v1092
    %v1094 = vadd.f32 %v1088, %v1093
    %v1095 = vlaneseq
    %v1096 = vshrl.u32 %v1095, 7
    %v1097 = vsub.s32 3, %v1096
    %v1098 = vrot.slane %v1076, %v1097
    %v1099 = vmul.f32 %v511, %v1098
    %v1100 = vadd.f32 %v1094, %v1099
    %v1101 = vlaneseq
    %v1102 = vshrl.u32 %v1101, 7
    %v1103 = vsub.s32 4, %v1102
    %v1104 = vrot.slane %v1076, %v1103
    %v1105 = vmul.f32 %v521, %v1104
    %v1106 = vadd.f32 %v1100, %v1105
    %v1107 = vlaneseq
    %v1108 = vshrl.u32 %v1107, 7
    %v1109 = vsub.s32 5, %v1108
    %v1110 = vrot.slane %v1076, %v1109
    %v1111 = vmul.f32 %v531, %v1110
    %v1112 = vadd.f32 %v1106, %v1111
    %v1113 = vlaneseq
    %v1114 = vshrl.u32 %v1113, 7
    %v1115 = vsub.s32 6, %v1114
    %v1116 = vrot.slane %v1076, %v1115
    %v1117 = vmul.f32 %v541, %v1116
    %v1118 = vadd.f32 %v1112, %v1117
    %v1119 = vlaneseq
    %v1120 = vshrl.u32 %v1119, 7
    %v1121 = vsub.s32 7, %v1120
    %v1122 = vrot.slane %v1076, %v1121
    %v1123 = vmul.f32 %v551, %v1122
    %v1124 = vadd.f32 %v1118, %v1123
    %v1125 = vmax.f32 %v1124, 0.0
    %v1126 = vlaneseq
    %v1127 = vshrl.u32 %v1126, 7
    %v1128 = vsub.s32 0, %v1127
    %v1129 = vrot.slane %v1125, %v1128
    %v1130 = vmul.f32 %v563, %v1129
    %v1131 = vadd.f32 %v294, %v1130
    %v1132 = vlaneseq
    %v1133 = vshrl.u32 %v1132, 7
    %v1134 = vsub.s32 1, %v1133
    %v1135 = vrot.slane %v1125, %v1134
    %v1136 = vmul.f32 %v573, %v1135
    %v1137 = vadd.f32 %v1131, %v1136
    %v1138 = vlaneseq
    %v1139 = vshrl.u32 %v1138, 7
    %v1140 = vsub.s32 2, %v1139
    %v1141 = vrot.slane %v1125, %v1140
    %v1142 = vmul.f32 %v583, %v1141
    %v1143 = vadd.f32 %v1137, %v1142
    %v1144 = vlaneseq
    %v1145 = vshrl.u32 %v1144, 7
    %v1146 = vsub.s32 3, %v1145
    %v1147 = vrot.slane %v1125, %v1146
    %v1148 = vmul.f32 %v593, %v1147
    %v1149 = vadd.f32 %v1143, %v1148
    %v1150 = vxor.u32 %v1149, 2147483648
    %v1151 = vmul.f32 %v1150, 1.442695
    %v1152 = vpow.pop %v1151
    %v1153 = vadd.f32 %v1152, 1.0
    %v1154 = vrcp.pop %v1153
    %v1155 = vmul.f32 1.0, %v1154
    %v1156 = vadd.f32 %v1155, 1e-10
    %v1157 = vlog2.pop %v1156
    %v1158 = vmul.f32 %v1157, 0.6931472
    %v1159 = vmul.f32 %v1155, %v1158
    %v1160 = vsub.f32 1.0, %v1155
    %v1161 = vadd.f32 %v1160, 1e-10
    %v1162 = vlog2.pop %v1161
    %v1163 = vmul.f32 %v1162, 0.6931472
    %v1164 = vmul.f32 %v1160, %v1163
    %v1165 = vadd.f32 %v1159, %v1164
    %v1166 = vsub.f32 0.0, %v1165
    %s1167 = scalar_lea.vmem %s12, 4
    %v1168 = vld [vmem:[%s1167] sm:$0x3]
    %v1169 = vmul.f32 %v1168, 0.1
    %v1170 = vadd.f32 %v1155, %v1169
    %v1171 = vmax.f32 %v1170, 0.01
    %v1172 = vmin.f32 %v1171, 0.99
    %v1174 = vrot.slane %v1172, 7
    %vm1176 = vcmp.lt.f32.partialorder %v1168, %v1174
    %v1177 = vsel %vm1176, 1, 0
    %v1178 = vrot.slane %v1177, 5
    %vm1179 = vcmp.ne.s32.totalorder %v1178, 0
    %vm1180 = vmand %vm950, %vm1179
    %vm1181 = vmxor %vm1176, 1
    %v1182 = vsel %vm1181, 1, 0
    %v1183 = vrot.slane %v1182, 5
    %vm1184 = vcmp.ne.s32.totalorder %v1183, 0
    %vm1185 = vmand %vm950, %vm1184
    %v1186 = vsel %vm1180, 1, 0
    %v1187 = vcvt.s32.f32 %v1186
    %v1188 = vsel %vm1185, 1, 0
    %v1189 = vcvt.s32.f32 %v1188
    %v1190 = vadd.f32 %v1172, 1e-10
    %v1191 = vlog2.pop %v1190
    %v1192 = vmul.f32 %v1191, 0.6931472
    %v1194 = vrot.slane %v1192, 7
    %v1197 = vrot.slane %v1149, 7
    %v1200 = vrot.slane %v1166, 5
    %v1202 = vsel %vm296, 4.0, %v1194
    %v1203 = vsel %vm653, %v1202, %v1197
    %v1204 = vsel %vm655, %v1203, %v1200
    %v1205 = vsel %vm298, %v1204, %v1189
    %v1206 = vsel %vm300, %v1205, 0.0
    %v1208 = vrot.slane %v1189, 4
    %v1211 = vrot.slane %v1187, 3
    %v1213 = vrot.slane %v1187, 2
    %v1215 = vrot.slane %v1187, 1
    %v1217 = vsel %vm296, %v1208, %v1211
    %v1218 = vsel %vm653, %v1217, %v1213
    %v1219 = vsel %vm655, %v1218, %v1215
    %v1220 = vsel %vm298, %v1219, 1.0
    %v1221 = vsel %vm300, %v1220, 0.0
    %vm1222 = vcmp.gt.f32.partialorder %v1221, 0.5
    %v1223 = vsel %vm1222, %v1206, %v949
    %vm1224 = vcmp.gt.f32.partialorder %v1223, 0.0
    %1225 = vmatprep.subr.mxu0 0.0
    %1226 = vmatpush1.msra.mxu0 %v318
    %1227 = vmatprep.subr.mxu0 0.0
    %1228 = vmatpush1.msra.mxu0 %v317
    %1229 = vmatprep.subr.mxu0 0.0
    %1230 = vmatpush1.msra.mxu0 %v316
    %1231 = vmatprep.subr.mxu0 0.0
    %1232 = vmatpush1.msra.mxu0 %v315
    %1233 = vmatprep.subr.mxu0 0.0
    %1234 = vmatpush1.msra.mxu0 %v314
    %1235 = vmatprep.subr.mxu0 0.0
    %1236 = vmatpush1.msra.mxu0 %v313
    %1237 = vmatprep.subr.mxu0 0.0
    %1238 = vmatpush1.msra.mxu0 %v312
    %1239 = vmatprep.subr.mxu0 0.0
    %1240 = vmatpush1.msra.mxu0 %v311
    %1241 = vmatprep.subr.mxu0 0.0
    %1242 = vmatpush1.msra.mxu0 %v310
    %1243 = vmatprep.subr.mxu0 0.0
    %1244 = vmatpush1.msra.mxu0 %v309
    %1245 = vmatprep.subr.mxu0 0.0
    %1246 = vmatpush1.msra.mxu0 %v308
    %1247 = vmatprep.subr.mxu0 0.0
    %1248 = vmatpush1.msra.mxu0 %v307
    %1249 = vmatprep.subr.mxu0 0.0
    %1250 = vmatpush1.msra.mxu0 %v306
    %1251 = vmatprep.subr.mxu0 0.0
    %1252 = vmatpush1.msra.mxu0 %v305
    %1253 = vmatprep.subr.mxu0 0.0
    %1254 = vmatpush1.msra.mxu0 %v304
    %1255 = vmatprep.subr.mxu0 0.0
    %1256 = vmatpush1.msra.mxu0 %v303
    %1257 = vmatprep.subr.mxu0 0.0
    %1258 = vmatpush2.msra.mxu0 0.0
    %1259 = vmatprep.subr.mxu0 0.0
    %1260 = vmatpush2.msra.mxu0 0.0
    %1261 = vmatprep.subr.mxu0 0.0
    %1262 = vmatpush2.msra.mxu0 0.0
    %1263 = vmatprep.subr.mxu0 0.0
    %1264 = vmatpush2.msra.mxu0 0.0
    %1265 = vmatprep.subr.mxu0 0.0
    %1266 = vmatpush2.msra.mxu0 0.0
    %1267 = vmatprep.subr.mxu0 0.0
    %1268 = vmatpush2.msra.mxu0 0.0
    %1269 = vmatprep.subr.mxu0 0.0
    %1270 = vmatpush2.msra.mxu0 0.0
    %1271 = vmatprep.subr.mxu0 0.0
    %1272 = vmatpush2.msra.mxu0 0.0
    %1273 = vmatprep.subr.mxu0 0.0
    %1274 = vmatpush2.msra.mxu0 0.0
    %1275 = vmatprep.subr.mxu0 0.0
    %1276 = vmatpush2.msra.mxu0 0.0
    %1277 = vmatprep.subr.mxu0 0.0
    %1278 = vmatpush2.msra.mxu0 0.0
    %1279 = vmatprep.subr.mxu0 0.0
    %1280 = vmatpush2.msra.mxu0 0.0
    %1281 = vmatprep.subr.mxu0 0.0
    %1282 = vmatpush2.msra.mxu0 0.0
    %1283 = vmatprep.subr.mxu0 0.0
    %1284 = vmatpush2.msra.mxu0 0.0
    %1285 = vmatprep.subr.mxu0 0.0
    %1286 = vmatpush2.msra.mxu0 0.0
    %1287 = vmatprep.subr.mxu0 0.0
    %1288 = vmatpush2.msra.mxu0 0.0
    %1289 = vmatprep.mubr.f32.mxu0 0.0
    %1290 = vmatmul.mubr.f32.gmra.mxu0 %v1027
    %v1291 = vpop.f32.mrf.mxu0
    %v1292 = vadd.f32 0.0, %v1291
    %v1293 = vpop.f32.mrf.mxu0
    %1294 = vdwg.mxu0
    %v1295 = vsel %vm1224, 1, 0
    %v1296 = vlaneseq
    %v1297 = vshrl.u32 %v1296, 7
    %v1298 = vsub.s32 4, %v1297
    %v1299 = vrot.slane %v1295, %v1298
    %vm1300 = vcmp.eq.s32.totalorder %v1299, 1
    %v1301 = vsel %vm1300, %v1292, %v1027
    %v1302 = vlaneseq
    %v1303 = vshrl.u32 %v1302, 7
    %v1304 = vsub.s32 0, %v1303
    %v1305 = vrot.slane %v1301, %v1304
    %v1306 = vmul.f32 %v399, %v1305
    %v1307 = vadd.f32 %v282, %v1306
    %v1308 = vlaneseq
    %v1309 = vshrl.u32 %v1308, 7
    %v1310 = vsub.s32 1, %v1309
    %v1311 = vrot.slane %v1301, %v1310
    %v1312 = vmul.f32 %v409, %v1311
    %v1313 = vadd.f32 %v1307, %v1312
    %v1314 = vlaneseq
    %v1315 = vshrl.u32 %v1314, 7
    %v1316 = vsub.s32 2, %v1315
    %v1317 = vrot.slane %v1301, %v1316
    %v1318 = vmul.f32 %v419, %v1317
    %v1319 = vadd.f32 %v1313, %v1318
    %v1320 = vlaneseq
    %v1321 = vshrl.u32 %v1320, 7
    %v1322 = vsub.s32 3, %v1321
    %v1323 = vrot.slane %v1301, %v1322
    %v1324 = vmul.f32 %v429, %v1323
    %v1325 = vadd.f32 %v1319, %v1324
    %v1326 = vlaneseq
    %v1327 = vshrl.u32 %v1326, 7
    %v1328 = vsub.s32 4, %v1327
    %v1329 = vrot.slane %v1301, %v1328
    %v1330 = vmul.f32 %v439, %v1329
    %v1331 = vadd.f32 %v1325, %v1330
    %v1332 = vlaneseq
    %v1333 = vshrl.u32 %v1332, 7
    %v1334 = vsub.s32 5, %v1333
    %v1335 = vrot.slane %v1301, %v1334
    %v1336 = vmul.f32 %v449, %v1335
    %v1337 = vadd.f32 %v1331, %v1336
    %v1338 = vlaneseq
    %v1339 = vshrl.u32 %v1338, 7
    %v1340 = vsub.s32 6, %v1339
    %v1341 = vrot.slane %v1301, %v1340
    %v1342 = vmul.f32 %v459, %v1341
    %v1343 = vadd.f32 %v1337, %v1342
    %v1344 = vlaneseq
    %v1345 = vshrl.u32 %v1344, 7
    %v1346 = vsub.s32 7, %v1345
    %v1347 = vrot.slane %v1301, %v1346
    %v1348 = vmul.f32 %v469, %v1347
    %v1349 = vadd.f32 %v1343, %v1348
    %v1350 = vmax.f32 %v1349, 0.0
    %v1351 = vlaneseq
    %v1352 = vshrl.u32 %v1351, 7
    %v1353 = vsub.s32 0, %v1352
    %v1354 = vrot.slane %v1350, %v1353
    %v1355 = vmul.f32 %v481, %v1354
    %v1356 = vadd.f32 %v288, %v1355
    %v1357 = vlaneseq
    %v1358 = vshrl.u32 %v1357, 7
    %v1359 = vsub.s32 1, %v1358
    %v1360 = vrot.slane %v1350, %v1359
    %v1361 = vmul.f32 %v491, %v1360
    %v1362 = vadd.f32 %v1356, %v1361
    %v1363 = vlaneseq
    %v1364 = vshrl.u32 %v1363, 7
    %v1365 = vsub.s32 2, %v1364
    %v1366 = vrot.slane %v1350, %v1365
    %v1367 = vmul.f32 %v501, %v1366
    %v1368 = vadd.f32 %v1362, %v1367
    %v1369 = vlaneseq
    %v1370 = vshrl.u32 %v1369, 7
    %v1371 = vsub.s32 3, %v1370
    %v1372 = vrot.slane %v1350, %v1371
    %v1373 = vmul.f32 %v511, %v1372
    %v1374 = vadd.f32 %v1368, %v1373
    %v1375 = vlaneseq
    %v1376 = vshrl.u32 %v1375, 7
    %v1377 = vsub.s32 4, %v1376
    %v1378 = vrot.slane %v1350, %v1377
    %v1379 = vmul.f32 %v521, %v1378
    %v1380 = vadd.f32 %v1374, %v1379
    %v1381 = vlaneseq
    %v1382 = vshrl.u32 %v1381, 7
    %v1383 = vsub.s32 5, %v1382
    %v1384 = vrot.slane %v1350, %v1383
    %v1385 = vmul.f32 %v531, %v1384
    %v1386 = vadd.f32 %v1380, %v1385
    %v1387 = vlaneseq
    %v1388 = vshrl.u32 %v1387, 7
    %v1389 = vsub.s32 6, %v1388
    %v1390 = vrot.slane %v1350, %v1389
    %v1391 = vmul.f32 %v541, %v1390
    %v1392 = vadd.f32 %v1386, %v1391
    %v1393 = vlaneseq
    %v1394 = vshrl.u32 %v1393, 7
    %v1395 = vsub.s32 7, %v1394
    %v1396 = vrot.slane %v1350, %v1395
    %v1397 = vmul.f32 %v551, %v1396
    %v1398 = vadd.f32 %v1392, %v1397
    %v1399 = vmax.f32 %v1398, 0.0
    %v1400 = vlaneseq
    %v1401 = vshrl.u32 %v1400, 7
    %v1402 = vsub.s32 0, %v1401
    %v1403 = vrot.slane %v1399, %v1402
    %v1404 = vmul.f32 %v563, %v1403
    %v1405 = vadd.f32 %v294, %v1404
    %v1406 = vlaneseq
    %v1407 = vshrl.u32 %v1406, 7
    %v1408 = vsub.s32 1, %v1407
    %v1409 = vrot.slane %v1399, %v1408
    %v1410 = vmul.f32 %v573, %v1409
    %v1411 = vadd.f32 %v1405, %v1410
    %v1412 = vlaneseq
    %v1413 = vshrl.u32 %v1412, 7
    %v1414 = vsub.s32 2, %v1413
    %v1415 = vrot.slane %v1399, %v1414
    %v1416 = vmul.f32 %v583, %v1415
    %v1417 = vadd.f32 %v1411, %v1416
    %v1418 = vlaneseq
    %v1419 = vshrl.u32 %v1418, 7
    %v1420 = vsub.s32 3, %v1419
    %v1421 = vrot.slane %v1399, %v1420
    %v1422 = vmul.f32 %v593, %v1421
    %v1423 = vadd.f32 %v1417, %v1422
    %v1424 = vxor.u32 %v1423, 2147483648
    %v1425 = vmul.f32 %v1424, 1.442695
    %v1426 = vpow.pop %v1425
    %v1427 = vadd.f32 %v1426, 1.0
    %v1428 = vrcp.pop %v1427
    %v1429 = vmul.f32 1.0, %v1428
    %v1430 = vadd.f32 %v1429, 1e-10
    %v1431 = vlog2.pop %v1430
    %v1432 = vmul.f32 %v1431, 0.6931472
    %v1433 = vmul.f32 %v1429, %v1432
    %v1434 = vsub.f32 1.0, %v1429
    %v1435 = vadd.f32 %v1434, 1e-10
    %v1436 = vlog2.pop %v1435
    %v1437 = vmul.f32 %v1436, 0.6931472
    %v1438 = vmul.f32 %v1434, %v1437
    %v1439 = vadd.f32 %v1433, %v1438
    %v1440 = vsub.f32 0.0, %v1439
    %s1441 = scalar_lea.vmem %s12, 6
    %v1442 = vld [vmem:[%s1441] sm:$0x3]
    %v1443 = vmul.f32 %v1442, 0.1
    %v1444 = vadd.f32 %v1429, %v1443
    %v1445 = vmax.f32 %v1444, 0.01
    %v1446 = vmin.f32 %v1445, 0.99
    %v1448 = vrot.slane %v1446, 7
    %vm1450 = vcmp.lt.f32.partialorder %v1442, %v1448
    %v1451 = vsel %vm1450, 1, 0
    %v1452 = vrot.slane %v1451, 5
    %vm1453 = vcmp.ne.s32.totalorder %v1452, 0
    %vm1454 = vmand %vm1224, %vm1453
    %vm1455 = vmxor %vm1450, 1
    %v1456 = vsel %vm1455, 1, 0
    %v1457 = vrot.slane %v1456, 5
    %vm1458 = vcmp.ne.s32.totalorder %v1457, 0
    %vm1459 = vmand %vm1224, %vm1458
    %v1460 = vsel %vm1454, 1, 0
    %v1461 = vcvt.s32.f32 %v1460
    %v1462 = vsel %vm1459, 1, 0
    %v1463 = vcvt.s32.f32 %v1462
    %v1464 = vadd.f32 %v1446, 1e-10
    %v1465 = vlog2.pop %v1464
    %v1466 = vmul.f32 %v1465, 0.6931472
    %v1468 = vrot.slane %v1466, 7
    %v1471 = vrot.slane %v1423, 7
    %v1474 = vrot.slane %v1440, 5
    %v1476 = vsel %vm296, 5.0, %v1468
    %v1477 = vsel %vm653, %v1476, %v1471
    %v1478 = vsel %vm655, %v1477, %v1474
    %v1479 = vsel %vm298, %v1478, %v1463
    %v1480 = vsel %vm300, %v1479, 0.0
    %v1482 = vrot.slane %v1463, 4
    %v1485 = vrot.slane %v1461, 3
    %v1487 = vrot.slane %v1461, 2
    %v1489 = vrot.slane %v1461, 1
    %v1491 = vsel %vm296, %v1482, %v1485
    %v1492 = vsel %vm653, %v1491, %v1487
    %v1493 = vsel %vm655, %v1492, %v1489
    %v1494 = vsel %vm298, %v1493, 1.0
    %v1495 = vsel %vm300, %v1494, 0.0
    %vm1496 = vcmp.gt.f32.partialorder %v1495, 0.5
    %v1497 = vsel %vm1496, %v1480, %v1223
    %vm1498 = vcmp.gt.f32.partialorder %v1497, 0.0
    %1499 = vmatprep.subr.mxu0 0.0
    %1500 = vmatpush1.msra.mxu0 %v318
    %1501 = vmatprep.subr.mxu0 0.0
    %1502 = vmatpush1.msra.mxu0 %v317
    %1503 = vmatprep.subr.mxu0 0.0
    %1504 = vmatpush1.msra.mxu0 %v316
    %1505 = vmatprep.subr.mxu0 0.0
    %1506 = vmatpush1.msra.mxu0 %v315
    %1507 = vmatprep.subr.mxu0 0.0
    %1508 = vmatpush1.msra.mxu0 %v314
    %1509 = vmatprep.subr.mxu0 0.0
    %1510 = vmatpush1.msra.mxu0 %v313
    %1511 = vmatprep.subr.mxu0 0.0
    %1512 = vmatpush1.msra.mxu0 %v312
    %1513 = vmatprep.subr.mxu0 0.0
    %1514 = vmatpush1.msra.mxu0 %v311
    %1515 = vmatprep.subr.mxu0 0.0
    %1516 = vmatpush1.msra.mxu0 %v310
    %1517 = vmatprep.subr.mxu0 0.0
    %1518 = vmatpush1.msra.mxu0 %v309
    %1519 = vmatprep.subr.mxu0 0.0
    %1520 = vmatpush1.msra.mxu0 %v308
    %1521 = vmatprep.subr.mxu0 0.0
    %1522 = vmatpush1.msra.mxu0 %v307
    %1523 = vmatprep.subr.mxu0 0.0
    %1524 = vmatpush1.msra.mxu0 %v306
    %1525 = vmatprep.subr.mxu0 0.0
    %1526 = vmatpush1.msra.mxu0 %v305
    %1527 = vmatprep.subr.mxu0 0.0
    %1528 = vmatpush1.msra.mxu0 %v304
    %1529 = vmatprep.subr.mxu0 0.0
    %1530 = vmatpush1.msra.mxu0 %v303
    %1531 = vmatprep.subr.mxu0 0.0
    %1532 = vmatpush2.msra.mxu0 0.0
    %1533 = vmatprep.subr.mxu0 0.0
    %1534 = vmatpush2.msra.mxu0 0.0
    %1535 = vmatprep.subr.mxu0 0.0
    %1536 = vmatpush2.msra.mxu0 0.0
    %1537 = vmatprep.subr.mxu0 0.0
    %1538 = vmatpush2.msra.mxu0 0.0
    %1539 = vmatprep.subr.mxu0 0.0
    %1540 = vmatpush2.msra.mxu0 0.0
    %1541 = vmatprep.subr.mxu0 0.0
    %1542 = vmatpush2.msra.mxu0 0.0
    %1543 = vmatprep.subr.mxu0 0.0
    %1544 = vmatpush2.msra.mxu0 0.0
    %1545 = vmatprep.subr.mxu0 0.0
    %1546 = vmatpush2.msra.mxu0 0.0
    %1547 = vmatprep.subr.mxu0 0.0
    %1548 = vmatpush2.msra.mxu0 0.0
    %1549 = vmatprep.subr.mxu0 0.0
    %1550 = vmatpush2.msra.mxu0 0.0
    %1551 = vmatprep.subr.mxu0 0.0
    %1552 = vmatpush2.msra.mxu0 0.0
    %1553 = vmatprep.subr.mxu0 0.0
    %1554 = vmatpush2.msra.mxu0 0.0
    %1555 = vmatprep.subr.mxu0 0.0
    %1556 = vmatpush2.msra.mxu0 0.0
    %1557 = vmatprep.subr.mxu0 0.0
    %1558 = vmatpush2.msra.mxu0 0.0
    %1559 = vmatprep.subr.mxu0 0.0
    %1560 = vmatpush2.msra.mxu0 0.0
    %1561 = vmatprep.subr.mxu0 0.0
    %1562 = vmatpush2.msra.mxu0 0.0
    %1563 = vmatprep.mubr.f32.mxu0 0.0
    %1564 = vmatmul.mubr.f32.gmra.mxu0 %v1301
    %v1565 = vpop.f32.mrf.mxu0
    %v1566 = vadd.f32 0.0, %v1565
    %v1567 = vpop.f32.mrf.mxu0
    %1568 = vdwg.mxu0
    %v1569 = vsel %vm1498, 1, 0
    %v1570 = vlaneseq
    %v1571 = vshrl.u32 %v1570, 7
    %v1572 = vsub.s32 4, %v1571
    %v1573 = vrot.slane %v1569, %v1572
    %vm1574 = vcmp.eq.s32.totalorder %v1573, 1
    %v1575 = vsel %vm1574, %v1566, %v1301
    %v1576 = vlaneseq
    %v1577 = vshrl.u32 %v1576, 7
    %v1578 = vsub.s32 0, %v1577
    %v1579 = vrot.slane %v1575, %v1578
    %v1580 = vmul.f32 %v399, %v1579
    %v1581 = vadd.f32 %v282, %v1580
    %v1582 = vlaneseq
    %v1583 = vshrl.u32 %v1582, 7
    %v1584 = vsub.s32 1, %v1583
    %v1585 = vrot.slane %v1575, %v1584
    %v1586 = vmul.f32 %v409, %v1585
    %v1587 = vadd.f32 %v1581, %v1586
    %v1588 = vlaneseq
    %v1589 = vshrl.u32 %v1588, 7
    %v1590 = vsub.s32 2, %v1589
    %v1591 = vrot.slane %v1575, %v1590
    %v1592 = vmul.f32 %v419, %v1591
    %v1593 = vadd.f32 %v1587, %v1592
    %v1594 = vlaneseq
    %v1595 = vshrl.u32 %v1594, 7
    %v1596 = vsub.s32 3, %v1595
    %v1597 = vrot.slane %v1575, %v1596
    %v1598 = vmul.f32 %v429, %v1597
    %v1599 = vadd.f32 %v1593, %v1598
    %v1600 = vlaneseq
    %v1601 = vshrl.u32 %v1600, 7
    %v1602 = vsub.s32 4, %v1601
    %v1603 = vrot.slane %v1575, %v1602
    %v1604 = vmul.f32 %v439, %v1603
    %v1605 = vadd.f32 %v1599, %v1604
    %v1606 = vlaneseq
    %v1607 = vshrl.u32 %v1606, 7
    %v1608 = vsub.s32 5, %v1607
    %v1609 = vrot.slane %v1575, %v1608
    %v1610 = vmul.f32 %v449, %v1609
    %v1611 = vadd.f32 %v1605, %v1610
    %v1612 = vlaneseq
    %v1613 = vshrl.u32 %v1612, 7
    %v1614 = vsub.s32 6, %v1613
    %v1615 = vrot.slane %v1575, %v1614
    %v1616 = vmul.f32 %v459, %v1615
    %v1617 = vadd.f32 %v1611, %v1616
    %v1618 = vlaneseq
    %v1619 = vshrl.u32 %v1618, 7
    %v1620 = vsub.s32 7, %v1619
    %v1621 = vrot.slane %v1575, %v1620
    %v1622 = vmul.f32 %v469, %v1621
    %v1623 = vadd.f32 %v1617, %v1622
    %v1624 = vmax.f32 %v1623, 0.0
    %v1625 = vlaneseq
    %v1626 = vshrl.u32 %v1625, 7
    %v1627 = vsub.s32 0, %v1626
    %v1628 = vrot.slane %v1624, %v1627
    %v1629 = vmul.f32 %v481, %v1628
    %v1630 = vadd.f32 %v288, %v1629
    %v1631 = vlaneseq
    %v1632 = vshrl.u32 %v1631, 7
    %v1633 = vsub.s32 1, %v1632
    %v1634 = vrot.slane %v1624, %v1633
    %v1635 = vmul.f32 %v491, %v1634
    %v1636 = vadd.f32 %v1630, %v1635
    %v1637 = vlaneseq
    %v1638 = vshrl.u32 %v1637, 7
    %v1639 = vsub.s32 2, %v1638
    %v1640 = vrot.slane %v1624, %v1639
    %v1641 = vmul.f32 %v501, %v1640
    %v1642 = vadd.f32 %v1636, %v1641
    %v1643 = vlaneseq
    %v1644 = vshrl.u32 %v1643, 7
    %v1645 = vsub.s32 3, %v1644
    %v1646 = vrot.slane %v1624, %v1645
    %v1647 = vmul.f32 %v511, %v1646
    %v1648 = vadd.f32 %v1642, %v1647
    %v1649 = vlaneseq
    %v1650 = vshrl.u32 %v1649, 7
    %v1651 = vsub.s32 4, %v1650
    %v1652 = vrot.slane %v1624, %v1651
    %v1653 = vmul.f32 %v521, %v1652
    %v1654 = vadd.f32 %v1648, %v1653
    %v1655 = vlaneseq
    %v1656 = vshrl.u32 %v1655, 7
    %v1657 = vsub.s32 5, %v1656
    %v1658 = vrot.slane %v1624, %v1657
    %v1659 = vmul.f32 %v531, %v1658
    %v1660 = vadd.f32 %v1654, %v1659
    %v1661 = vlaneseq
    %v1662 = vshrl.u32 %v1661, 7
    %v1663 = vsub.s32 6, %v1662
    %v1664 = vrot.slane %v1624, %v1663
    %v1665 = vmul.f32 %v541, %v1664
    %v1666 = vadd.f32 %v1660, %v1665
    %v1667 = vlaneseq
    %v1668 = vshrl.u32 %v1667, 7
    %v1669 = vsub.s32 7, %v1668
    %v1670 = vrot.slane %v1624, %v1669
    %v1671 = vmul.f32 %v551, %v1670
    %v1672 = vadd.f32 %v1666, %v1671
    %v1673 = vmax.f32 %v1672, 0.0
    %v1674 = vlaneseq
    %v1675 = vshrl.u32 %v1674, 7
    %v1676 = vsub.s32 0, %v1675
    %v1677 = vrot.slane %v1673, %v1676
    %v1678 = vmul.f32 %v563, %v1677
    %v1679 = vadd.f32 %v294, %v1678
    %v1680 = vlaneseq
    %v1681 = vshrl.u32 %v1680, 7
    %v1682 = vsub.s32 1, %v1681
    %v1683 = vrot.slane %v1673, %v1682
    %v1684 = vmul.f32 %v573, %v1683
    %v1685 = vadd.f32 %v1679, %v1684
    %v1686 = vlaneseq
    %v1687 = vshrl.u32 %v1686, 7
    %v1688 = vsub.s32 2, %v1687
    %v1689 = vrot.slane %v1673, %v1688
    %v1690 = vmul.f32 %v583, %v1689
    %v1691 = vadd.f32 %v1685, %v1690
    %v1692 = vlaneseq
    %v1693 = vshrl.u32 %v1692, 7
    %v1694 = vsub.s32 3, %v1693
    %v1695 = vrot.slane %v1673, %v1694
    %v1696 = vmul.f32 %v593, %v1695
    %v1697 = vadd.f32 %v1691, %v1696
    %v1698 = vxor.u32 %v1697, 2147483648
    %v1699 = vmul.f32 %v1698, 1.442695
    %v1700 = vpow.pop %v1699
    %v1701 = vadd.f32 %v1700, 1.0
    %v1702 = vrcp.pop %v1701
    %v1703 = vmul.f32 1.0, %v1702
    %v1704 = vadd.f32 %v1703, 1e-10
    %v1705 = vlog2.pop %v1704
    %v1706 = vmul.f32 %v1705, 0.6931472
    %v1707 = vmul.f32 %v1703, %v1706
    %v1708 = vsub.f32 1.0, %v1703
    %v1709 = vadd.f32 %v1708, 1e-10
    %v1710 = vlog2.pop %v1709
    %v1711 = vmul.f32 %v1710, 0.6931472
    %v1712 = vmul.f32 %v1708, %v1711
    %v1713 = vadd.f32 %v1707, %v1712
    %v1714 = vsub.f32 0.0, %v1713
    %s1715 = scalar_lea.vmem %s12, 8
    %v1716 = vld [vmem:[%s1715] sm:$0x3]
    %v1717 = vmul.f32 %v1716, 0.1
    %v1718 = vadd.f32 %v1703, %v1717
    %v1719 = vmax.f32 %v1718, 0.01
    %v1720 = vmin.f32 %v1719, 0.99
    %v1722 = vrot.slane %v1720, 7
    %vm1724 = vcmp.lt.f32.partialorder %v1716, %v1722
    %v1725 = vsel %vm1724, 1, 0
    %v1726 = vrot.slane %v1725, 5
    %vm1727 = vcmp.ne.s32.totalorder %v1726, 0
    %vm1728 = vmand %vm1498, %vm1727
    %vm1729 = vmxor %vm1724, 1
    %v1730 = vsel %vm1729, 1, 0
    %v1731 = vrot.slane %v1730, 5
    %vm1732 = vcmp.ne.s32.totalorder %v1731, 0
    %vm1733 = vmand %vm1498, %vm1732
    %v1734 = vsel %vm1728, 1, 0
    %v1735 = vcvt.s32.f32 %v1734
    %v1736 = vsel %vm1733, 1, 0
    %v1737 = vcvt.s32.f32 %v1736
    %v1738 = vadd.f32 %v1720, 1e-10
    %v1739 = vlog2.pop %v1738
    %v1740 = vmul.f32 %v1739, 0.6931472
    %v1742 = vrot.slane %v1740, 7
    %v1745 = vrot.slane %v1697, 7
    %v1748 = vrot.slane %v1714, 5
    %v1750 = vsel %vm296, 6.0, %v1742
    %v1751 = vsel %vm653, %v1750, %v1745
    %v1752 = vsel %vm655, %v1751, %v1748
    %v1753 = vsel %vm298, %v1752, %v1737
    %v1754 = vsel %vm300, %v1753, 0.0
    %v1756 = vrot.slane %v1737, 4
    %v1759 = vrot.slane %v1735, 3
    %v1761 = vrot.slane %v1735, 2
    %v1763 = vrot.slane %v1735, 1
    %v1765 = vsel %vm296, %v1756, %v1759
    %v1766 = vsel %vm653, %v1765, %v1761
    %v1767 = vsel %vm655, %v1766, %v1763
    %v1768 = vsel %vm298, %v1767, 1.0
    %v1769 = vsel %vm300, %v1768, 0.0
    %vm1770 = vcmp.gt.f32.partialorder %v1769, 0.5
    %v1771 = vsel %vm1770, %v1754, %v1497
    %vm1772 = vcmp.gt.f32.partialorder %v1771, 0.0
    %1773 = vmatprep.subr.mxu0 0.0
    %1774 = vmatpush1.msra.mxu0 %v318
    %1775 = vmatprep.subr.mxu0 0.0
    %1776 = vmatpush1.msra.mxu0 %v317
    %1777 = vmatprep.subr.mxu0 0.0
    %1778 = vmatpush1.msra.mxu0 %v316
    %1779 = vmatprep.subr.mxu0 0.0
    %1780 = vmatpush1.msra.mxu0 %v315
    %1781 = vmatprep.subr.mxu0 0.0
    %1782 = vmatpush1.msra.mxu0 %v314
    %1783 = vmatprep.subr.mxu0 0.0
    %1784 = vmatpush1.msra.mxu0 %v313
    %1785 = vmatprep.subr.mxu0 0.0
    %1786 = vmatpush1.msra.mxu0 %v312
    %1787 = vmatprep.subr.mxu0 0.0
    %1788 = vmatpush1.msra.mxu0 %v311
    %1789 = vmatprep.subr.mxu0 0.0
    %1790 = vmatpush1.msra.mxu0 %v310
    %1791 = vmatprep.subr.mxu0 0.0
    %1792 = vmatpush1.msra.mxu0 %v309
    %1793 = vmatprep.subr.mxu0 0.0
    %1794 = vmatpush1.msra.mxu0 %v308
    %1795 = vmatprep.subr.mxu0 0.0
    %1796 = vmatpush1.msra.mxu0 %v307
    %1797 = vmatprep.subr.mxu0 0.0
    %1798 = vmatpush1.msra.mxu0 %v306
    %1799 = vmatprep.subr.mxu0 0.0
    %1800 = vmatpush1.msra.mxu0 %v305
    %1801 = vmatprep.subr.mxu0 0.0
    %1802 = vmatpush1.msra.mxu0 %v304
    %1803 = vmatprep.subr.mxu0 0.0
    %1804 = vmatpush1.msra.mxu0 %v303
    %1805 = vmatprep.subr.mxu0 0.0
    %1806 = vmatpush2.msra.mxu0 0.0
    %1807 = vmatprep.subr.mxu0 0.0
    %1808 = vmatpush2.msra.mxu0 0.0
    %1809 = vmatprep.subr.mxu0 0.0
    %1810 = vmatpush2.msra.mxu0 0.0
    %1811 = vmatprep.subr.mxu0 0.0
    %1812 = vmatpush2.msra.mxu0 0.0
    %1813 = vmatprep.subr.mxu0 0.0
    %1814 = vmatpush2.msra.mxu0 0.0
    %1815 = vmatprep.subr.mxu0 0.0
    %1816 = vmatpush2.msra.mxu0 0.0
    %1817 = vmatprep.subr.mxu0 0.0
    %1818 = vmatpush2.msra.mxu0 0.0
    %1819 = vmatprep.subr.mxu0 0.0
    %1820 = vmatpush2.msra.mxu0 0.0
    %1821 = vmatprep.subr.mxu0 0.0
    %1822 = vmatpush2.msra.mxu0 0.0
    %1823 = vmatprep.subr.mxu0 0.0
    %1824 = vmatpush2.msra.mxu0 0.0
    %1825 = vmatprep.subr.mxu0 0.0
    %1826 = vmatpush2.msra.mxu0 0.0
    %1827 = vmatprep.subr.mxu0 0.0
    %1828 = vmatpush2.msra.mxu0 0.0
    %1829 = vmatprep.subr.mxu0 0.0
    %1830 = vmatpush2.msra.mxu0 0.0
    %1831 = vmatprep.subr.mxu0 0.0
    %1832 = vmatpush2.msra.mxu0 0.0
    %1833 = vmatprep.subr.mxu0 0.0
    %1834 = vmatpush2.msra.mxu0 0.0
    %1835 = vmatprep.subr.mxu0 0.0
    %1836 = vmatpush2.msra.mxu0 0.0
    %1837 = vmatprep.mubr.f32.mxu0 0.0
    %1838 = vmatmul.mubr.f32.gmra.mxu0 %v1575
    %v1839 = vpop.f32.mrf.mxu0
    %v1840 = vadd.f32 0.0, %v1839
    %v1841 = vpop.f32.mrf.mxu0
    %1842 = vdwg.mxu0
    %v1843 = vsel %vm1772, 1, 0
    %v1844 = vlaneseq
    %v1845 = vshrl.u32 %v1844, 7
    %v1846 = vsub.s32 4, %v1845
    %v1847 = vrot.slane %v1843, %v1846
    %vm1848 = vcmp.eq.s32.totalorder %v1847, 1
    %v1849 = vsel %vm1848, %v1840, %v1575
    %v1850 = vlaneseq
    %v1851 = vshrl.u32 %v1850, 7
    %v1852 = vsub.s32 0, %v1851
    %v1853 = vrot.slane %v1849, %v1852
    %v1854 = vmul.f32 %v399, %v1853
    %v1855 = vadd.f32 %v282, %v1854
    %v1856 = vlaneseq
    %v1857 = vshrl.u32 %v1856, 7
    %v1858 = vsub.s32 1, %v1857
    %v1859 = vrot.slane %v1849, %v1858
    %v1860 = vmul.f32 %v409, %v1859
    %v1861 = vadd.f32 %v1855, %v1860
    %v1862 = vlaneseq
    %v1863 = vshrl.u32 %v1862, 7
    %v1864 = vsub.s32 2, %v1863
    %v1865 = vrot.slane %v1849, %v1864
    %v1866 = vmul.f32 %v419, %v1865
    %v1867 = vadd.f32 %v1861, %v1866
    %v1868 = vlaneseq
    %v1869 = vshrl.u32 %v1868, 7
    %v1870 = vsub.s32 3, %v1869
    %v1871 = vrot.slane %v1849, %v1870
    %v1872 = vmul.f32 %v429, %v1871
    %v1873 = vadd.f32 %v1867, %v1872
    %v1874 = vlaneseq
    %v1875 = vshrl.u32 %v1874, 7
    %v1876 = vsub.s32 4, %v1875
    %v1877 = vrot.slane %v1849, %v1876
    %v1878 = vmul.f32 %v439, %v1877
    %v1879 = vadd.f32 %v1873, %v1878
    %v1880 = vlaneseq
    %v1881 = vshrl.u32 %v1880, 7
    %v1882 = vsub.s32 5, %v1881
    %v1883 = vrot.slane %v1849, %v1882
    %v1884 = vmul.f32 %v449, %v1883
    %v1885 = vadd.f32 %v1879, %v1884
    %v1886 = vlaneseq
    %v1887 = vshrl.u32 %v1886, 7
    %v1888 = vsub.s32 6, %v1887
    %v1889 = vrot.slane %v1849, %v1888
    %v1890 = vmul.f32 %v459, %v1889
    %v1891 = vadd.f32 %v1885, %v1890
    %v1892 = vlaneseq
    %v1893 = vshrl.u32 %v1892, 7
    %v1894 = vsub.s32 7, %v1893
    %v1895 = vrot.slane %v1849, %v1894
    %v1896 = vmul.f32 %v469, %v1895
    %v1897 = vadd.f32 %v1891, %v1896
    %v1898 = vmax.f32 %v1897, 0.0
    %v1899 = vlaneseq
    %v1900 = vshrl.u32 %v1899, 7
    %v1901 = vsub.s32 0, %v1900
    %v1902 = vrot.slane %v1898, %v1901
    %v1903 = vmul.f32 %v481, %v1902
    %v1904 = vadd.f32 %v288, %v1903
    %v1905 = vlaneseq
    %v1906 = vshrl.u32 %v1905, 7
    %v1907 = vsub.s32 1, %v1906
    %v1908 = vrot.slane %v1898, %v1907
    %v1909 = vmul.f32 %v491, %v1908
    %v1910 = vadd.f32 %v1904, %v1909
    %v1911 = vlaneseq
    %v1912 = vshrl.u32 %v1911, 7
    %v1913 = vsub.s32 2, %v1912
    %v1914 = vrot.slane %v1898, %v1913
    %v1915 = vmul.f32 %v501, %v1914
    %v1916 = vadd.f32 %v1910, %v1915
    %v1917 = vlaneseq
    %v1918 = vshrl.u32 %v1917, 7
    %v1919 = vsub.s32 3, %v1918
    %v1920 = vrot.slane %v1898, %v1919
    %v1921 = vmul.f32 %v511, %v1920
    %v1922 = vadd.f32 %v1916, %v1921
    %v1923 = vlaneseq
    %v1924 = vshrl.u32 %v1923, 7
    %v1925 = vsub.s32 4, %v1924
    %v1926 = vrot.slane %v1898, %v1925
    %v1927 = vmul.f32 %v521, %v1926
    %v1928 = vadd.f32 %v1922, %v1927
    %v1929 = vlaneseq
    %v1930 = vshrl.u32 %v1929, 7
    %v1931 = vsub.s32 5, %v1930
    %v1932 = vrot.slane %v1898, %v1931
    %v1933 = vmul.f32 %v531, %v1932
    %v1934 = vadd.f32 %v1928, %v1933
    %v1935 = vlaneseq
    %v1936 = vshrl.u32 %v1935, 7
    %v1937 = vsub.s32 6, %v1936
    %v1938 = vrot.slane %v1898, %v1937
    %v1939 = vmul.f32 %v541, %v1938
    %v1940 = vadd.f32 %v1934, %v1939
    %v1941 = vlaneseq
    %v1942 = vshrl.u32 %v1941, 7
    %v1943 = vsub.s32 7, %v1942
    %v1944 = vrot.slane %v1898, %v1943
    %v1945 = vmul.f32 %v551, %v1944
    %v1946 = vadd.f32 %v1940, %v1945
    %v1947 = vmax.f32 %v1946, 0.0
    %v1948 = vlaneseq
    %v1949 = vshrl.u32 %v1948, 7
    %v1950 = vsub.s32 0, %v1949
    %v1951 = vrot.slane %v1947, %v1950
    %v1952 = vmul.f32 %v563, %v1951
    %v1953 = vadd.f32 %v294, %v1952
    %v1954 = vlaneseq
    %v1955 = vshrl.u32 %v1954, 7
    %v1956 = vsub.s32 1, %v1955
    %v1957 = vrot.slane %v1947, %v1956
    %v1958 = vmul.f32 %v573, %v1957
    %v1959 = vadd.f32 %v1953, %v1958
    %v1960 = vlaneseq
    %v1961 = vshrl.u32 %v1960, 7
    %v1962 = vsub.s32 2, %v1961
    %v1963 = vrot.slane %v1947, %v1962
    %v1964 = vmul.f32 %v583, %v1963
    %v1965 = vadd.f32 %v1959, %v1964
    %v1966 = vlaneseq
    %v1967 = vshrl.u32 %v1966, 7
    %v1968 = vsub.s32 3, %v1967
    %v1969 = vrot.slane %v1947, %v1968
    %v1970 = vmul.f32 %v593, %v1969
    %v1971 = vadd.f32 %v1965, %v1970
    %v1972 = vxor.u32 %v1971, 2147483648
    %v1973 = vmul.f32 %v1972, 1.442695
    %v1974 = vpow.pop %v1973
    %v1975 = vadd.f32 %v1974, 1.0
    %v1976 = vrcp.pop %v1975
    %v1977 = vmul.f32 1.0, %v1976
    %v1978 = vadd.f32 %v1977, 1e-10
    %v1979 = vlog2.pop %v1978
    %v1980 = vmul.f32 %v1979, 0.6931472
    %v1981 = vmul.f32 %v1977, %v1980
    %v1982 = vsub.f32 1.0, %v1977
    %v1983 = vadd.f32 %v1982, 1e-10
    %v1984 = vlog2.pop %v1983
    %v1985 = vmul.f32 %v1984, 0.6931472
    %v1986 = vmul.f32 %v1982, %v1985
    %v1987 = vadd.f32 %v1981, %v1986
    %v1988 = vsub.f32 0.0, %v1987
    %s1989 = scalar_lea.vmem %s12, 10
    %v1990 = vld [vmem:[%s1989] sm:$0x3]
    %v1991 = vmul.f32 %v1990, 0.1
    %v1992 = vadd.f32 %v1977, %v1991
    %v1993 = vmax.f32 %v1992, 0.01
    %v1994 = vmin.f32 %v1993, 0.99
    %v1996 = vrot.slane %v1994, 7
    %vm1998 = vcmp.lt.f32.partialorder %v1990, %v1996
    %vm1999 = vmxor %vm1998, 1
    %v2000 = vsel %vm1999, 1, 0
    %v2001 = vrot.slane %v2000, 5
    %vm2002 = vcmp.ne.s32.totalorder %v2001, 0
    %vm2003 = vmand %vm1772, %vm2002
    %v2004 = vcvt.s32.f32 %v1843
    %v2005 = vsel %vm2003, 1, 0
    %v2006 = vcvt.s32.f32 %v2005
    %v2007 = vadd.f32 %v1994, 1e-10
    %v2008 = vlog2.pop %v2007
    %v2009 = vmul.f32 %v2008, 0.6931472
    %v2011 = vrot.slane %v2009, 7
    %v2014 = vrot.slane %v1971, 7
    %v2017 = vrot.slane %v1988, 5
    %v2019 = vsel %vm296, 6.0, %v2011
    %v2020 = vsel %vm653, %v2019, %v2014
    %v2021 = vsel %vm655, %v2020, %v2017
    %v2022 = vsel %vm298, %v2021, %v2006
    %v2023 = vsel %vm300, %v2022, 0.0
    %v2025 = vrot.slane %v2006, 4
    %v2028 = vrot.slane %v2004, 3
    %v2030 = vrot.slane %v2004, 2
    %v2032 = vrot.slane %v2004, 1
    %v2034 = vsel %vm296, %v2025, %v2028
    %v2035 = vsel %vm653, %v2034, %v2030
    %v2036 = vsel %vm655, %v2035, %v2032
    %v2037 = vsel %vm298, %v2036, 1.0
    %v2038 = vsel %vm300, %v2037, 0.0
    %vm2039 = vcmp.gt.f32.partialorder %v2038, 0.5
    %v2040 = vsel %vm2039, %v2023, %v1771
    %v2041 = vrot.slane %v1849, 4
    %v2042 = vmax.f32 %v1849, %v2041
    %v2043 = vrot.slane %v2042, 2
    %v2044 = vmax.f32 %v2042, %v2043
    %v2045 = vrot.slane %v2044, 1
    %v2046 = vmax.f32 %v2044, %v2045
    %v2047 = vsub.f32 %v1849, %v2046
    %v2048 = vmul.f32 %v2047, 1.442695
    %v2049 = vpow.pop %v2048
    %v2050 = vrot.slane %v2049, 4
    %v2051 = vadd.f32 %v2049, %v2050
    %v2052 = vrot.slane %v2051, 2
    %v2053 = vadd.f32 %v2051, %v2052
    %v2054 = vrot.slane %v2053, 1
    %v2055 = vadd.f32 %v2053, %v2054
    %v2056 = vlog2.pop %v2055
    %v2057 = vmul.f32 %v2056, 0.6931472
    %v2058 = vsub.f32 %v2047, %v2057
    %2059 = vst [vmem:[#allocation5] sm:$0xff] %v2058
    %2060 = vst [vmem:[#allocation6] sm:$0xff] %v2040
    // Predicated region
    $region58: #{tpu_custom_call.1} parent=1 // pred_check
      _
    $region59: #{tpu_custom_call.1} parent=1 // pred_check_branch
      %2062 = sbr.rel (0) target = $region61
    $region60: #{tpu_custom_call.1} parent=1 // pred_region
      %s2064 = ssub.s32 128, 128
      %2065 = vsyncadd [#allocation4], %s2064
      %s2067 = sshll.u32 [#allocation5], 4
      %s2068 = int_to_ptr.vmem [resolvable:$true] %s2067
      %2070 = dma.vmem_to_hbm [thread:$0]  %s2068, 128, %s13, [#allocation4]
    $region61: #{tpu_custom_call.1} parent=1 // pred_fallthru
      _
    // Predicated region
    $region62: #{tpu_custom_call.1} parent=1 // pred_check
      _
    $region63: #{tpu_custom_call.1} parent=1 // pred_check_branch
      %2072 = sbr.rel (0) target = $region65
    $region64: #{tpu_custom_call.1} parent=1 // pred_region
      %s2074 = ssub.s32 128, 128
      %2075 = vsyncadd [#allocation7], %s2074
      %s2077 = sshll.u32 [#allocation6], 4
      %s2078 = int_to_ptr.vmem [resolvable:$true] %s2077
      %2080 = dma.vmem_to_hbm [thread:$0]  %s2078, 128, %s14, [#allocation7]
    $region65: #{tpu_custom_call.1} parent=1 // pred_fallthru
      _
    // Predicated region
    $region66: #{tpu_custom_call.1} parent=1 // pred_check
      _
    $region67: #{tpu_custom_call.1} parent=1 // pred_check_branch
      %2082 = sbr.rel (0) target = $region69
    $region68: #{tpu_custom_call.1} parent=1 // pred_region
      %2083 = dma.done [#allocation4], 128
    $region69: #{tpu_custom_call.1} parent=1 // pred_fallthru
      _
    // Predicated region
    $region70: #{tpu_custom_call.1} parent=1 // pred_check
      _
    $region71: #{tpu_custom_call.1} parent=1 // pred_check_branch
      %2085 = sbr.rel (0) target = $region73
    $region72: #{tpu_custom_call.1} parent=1 // pred_region
      %2086 = dma.done [#allocation7], 128
    $region73: #{tpu_custom_call.1} parent=1 // pred_fallthru
      _
    %2087 = vsyncpa [#allocation3], 1
    %2088 = vsyncpa [#allocation4], 1
    %2089 = vsyncpa [#allocation7], 1

</llo_original>
